<compile_context>
chip_gen: v6e
topology: v6e:2x2x1
jax: 0.10.0
libtpu: 0.0.40
codegen_flags: <defaults>
</compile_context>

<pallas_src>
import functools

import jax
import jax.numpy as jnp
from jax import lax
from jax.experimental import pallas as pl
from jax.experimental.pallas import tpu as pltpu


# ----------------------------- Pallas kernels -------------------------------

def _encoder_layers_kernel(
        patches_ref, pe_w_ref, pe_b_ref, pos_ref,
        in_w_ref, in_b_ref, ow_ref, ob_ref,
        g1_ref, b1_ref, g2_ref, b2_ref,
        f1w_ref, f1b_ref, f2w_ref, f2b_ref,
        o_ref, *, num_heads, eps):
    """grid=(batch, num_layers): one step == one transformer layer for one batch.

    The (S, E) state for the current batch element lives in o_ref's VMEM block,
    which is resident across the layer ("arbitrary") axis.  Step l == 0 also
    performs patch embedding + positional encoding into that block.
    """
    bf16, f32 = jnp.bfloat16, jnp.float32
    l = pl.program_id(1)
    H = num_heads
    S, E = pos_ref.shape
    Dh = E // H
    scale = 1.0 / (Dh ** 0.5)

    @pl.when(l == 0)
    def _embed():
        emb = jnp.dot(patches_ref[...].astype(bf16), pe_w_ref[...],
                      preferred_element_type=f32)
        o_ref[...] = emb + pe_b_ref[...] + pos_ref[...]

    def layer_norm(z, g, b):
        mu = jnp.mean(z, axis=-1, keepdims=True)
        zc = z - mu
        var = jnp.mean(zc * zc, axis=-1, keepdims=True)
        return zc * lax.rsqrt(var + eps) * g + b

    x = o_ref[...]                                                # (S, E) f32
    qkv = jnp.dot(x.astype(bf16), in_w_ref[0],
                  preferred_element_type=f32) + in_b_ref[0]       # (S, 3E) f32
    # scale / cast once for the whole Q/K/V blocks (not per head)
    q_all = (qkv[:, :E] * scale).astype(bf16)
    k_all = qkv[:, E:2 * E].astype(bf16)
    v_all = qkv[:, 2 * E:].astype(bf16)

    head_outs = []
    for h in range(H):                                            # static unroll
        sl = slice(h * Dh, (h + 1) * Dh)
        s_h = lax.dot_general(                                    # (S, S)
            q_all[:, sl], k_all[:, sl],
            dimension_numbers=(((1,), (1,)), ((), ())),
            preferred_element_type=f32)
        m = jnp.max(s_h, axis=-1, keepdims=True)
        p = jnp.exp(s_h - m)
        p = p * pl.reciprocal(jnp.sum(p, axis=-1, keepdims=True), approx=True)
        head_outs.append(jnp.dot(p.astype(bf16), v_all[:, sl],
                                 preferred_element_type=f32))     # (S, Dh)
    a = jnp.concatenate(head_outs, axis=-1).astype(bf16)          # (S, E)
    # single out-projection matmul per layer
    attn = jnp.dot(a, ow_ref[0], preferred_element_type=f32) + ob_ref[0]

    x1 = layer_norm(x + attn, g1_ref[0], b1_ref[0])               # norm1(x+attn)
    h1 = jnp.maximum(jnp.dot(x1.astype(bf16), f1w_ref[0],
                             preferred_element_type=f32) + f1b_ref[0], 0.0)
    h2 = jnp.dot(h1.astype(bf16), f2w_ref[0],
                 preferred_element_type=f32) + f2b_ref[0]
    o_ref[...] = layer_norm(x1 + h2, g2_ref[0], b2_ref[0])        # norm2(x+ff)


def _output_interp_kernel(x_ref, ow_ref, ob_ref, w_ref, o_ref):
    """Fused (per batch): Linear(E->C) + permute to (C, S) + linear interp.

    projT[c, s] = sum_e out_w[e, c] * x[s, e]; the interpolation is then ONE
    MXU matmul (C, S) @ (S, OUT) with f32 lerp taps (K = S), replacing the
    former S-tap VPU broadcast-MAC loop that saturated the vector-store slot.
    """
    bf16, f32 = jnp.bfloat16, jnp.float32
    projT = lax.dot_general(                                      # (C, S)
        ow_ref[...], x_ref[...].astype(bf16),
        dimension_numbers=(((0,), (1,)), ((), ())),
        preferred_element_type=f32) + ob_ref[...]
    # keep interp taps in f32 for precision; K=S so the matmul cost is trivial
    o_ref[0] = jnp.dot(projT, w_ref[...], preferred_element_type=f32)


# --------------------------- Model (glue in JAX) -----------------------------

def interp_matrix(in_size, out_size):
    """Linear interpolation (align_corners=False) as an (in_size, out_size) matrix."""
    j = jnp.arange(out_size, dtype=jnp.float32)
    scale = in_size / out_size
    src = jnp.maximum((j + 0.5) * scale - 0.5, 0.0)
    i0 = jnp.minimum(jnp.floor(src).astype(jnp.int32), in_size - 1)
    lam = src - i0.astype(jnp.float32)
    i1 = jnp.minimum(i0 + 1, in_size - 1)
    rows = jnp.arange(in_size)[:, None]
    M = ((rows == i0[None, :]).astype(jnp.float32) * (1.0 - lam)[None, :]
         + (rows == i1[None, :]).astype(jnp.float32) * lam[None, :])
    return M


def transformer_encoder(x, params, *, patch_size, num_heads, out_size=2500):
    # x: (B, 1, L)  -- PyTorch Conv1d NCL layout.
    B, _, L = x.shape
    assert L % patch_size == 0
    S = L // patch_size
    E = params["pe_w"].shape[1]
    C = params["out_w"].shape[1]
    F = params["layers"][0]["ff1_w"].shape[1]
    n_layers = len(params["layers"])
    bf16, f32 = jnp.bfloat16, jnp.float32

    # Patch extraction: Conv1d(1, E, k=patch, stride=patch) == per-patch linear.
    patches = x.reshape(B * S, patch_size).astype(f32)            # rows = (b, s)
    pe_w = params["pe_w"].astype(bf16)
    pe_b = params["pe_b"].reshape(1, E).astype(f32)
    pos = params["pos"].astype(f32)                               # (S, E)

    def stk(name, tail_shape, dtype=f32):
        return jnp.stack([lp[name] for lp in params["layers"]]
                         ).reshape((n_layers,) + tail_shape).astype(dtype)

    in_w = stk("in_w", (E, 3 * E), bf16); in_b = stk("in_b", (1, 3 * E))
    ow = stk("out_w", (E, E), bf16);      ob = stk("out_b", (1, E))
    g1 = stk("ln1_g", (1, E));            b1 = stk("ln1_b", (1, E))
    g2 = stk("ln2_g", (1, E));            b2 = stk("ln2_b", (1, E))
    f1w = stk("ff1_w", (E, F), bf16);     f1b = stk("ff1_b", (1, F))
    f2w = stk("ff2_w", (F, E), bf16);     f2b = stk("ff2_b", (1, E))

    const2 = lambda shape: pl.BlockSpec(shape, lambda b, l: (0, 0))
    per_layer = lambda shape: pl.BlockSpec((1,) + shape, lambda b, l: (l, 0, 0))

    # ---- kernel 1: embed + all transformer layers, per-batch state resident --
    xs = pl.pallas_call(
        functools.partial(_encoder_layers_kernel, num_heads=num_heads, eps=1e-5),
        grid=(B, n_layers),
        in_specs=[
            pl.BlockSpec((S, patch_size), lambda b, l: (b, 0)),   # patches
            const2((patch_size, E)),                              # pe_w
            const2((1, E)),                                       # pe_b
            const2((S, E)),                                       # positional enc
            per_layer((E, 3 * E)), per_layer((1, 3 * E)),         # qkv proj
            per_layer((E, E)),     per_layer((1, E)),             # attn out proj
            per_layer((1, E)),     per_layer((1, E)),             # ln1
            per_layer((1, E)),     per_layer((1, E)),             # ln2
            per_layer((E, F)),     per_layer((1, F)),             # ff1
            per_layer((F, E)),     per_layer((1, E)),             # ff2
        ],
        out_specs=pl.BlockSpec((S, E), lambda b, l: (b, 0)),
        out_shape=jax.ShapeDtypeStruct((B * S, E), f32),
        compiler_params=pltpu.CompilerParams(
            dimension_semantics=("parallel", "arbitrary")),
    )(patches, pe_w, pe_b, pos,
      in_w, in_b, ow, ob, g1, b1, g2, b2, f1w, f1b, f2w, f2b)

    # ---- kernel 2: output projection + permute + interpolation (per batch) ---
    W = interp_matrix(S, out_size)                                # (S, OUT) f32
    out_w = params["out_w"].astype(bf16)                          # (E, C)
    out_b = params["out_b"].reshape(C, 1).astype(f32)
    y = pl.pallas_call(
        _output_interp_kernel,
        grid=(B,),
        in_specs=[
            pl.BlockSpec((S, E), lambda b: (b, 0)),               # rows of batch b
            pl.BlockSpec((E, C), lambda b: (0, 0)),
            pl.BlockSpec((C, 1), lambda b: (0, 0)),
            pl.BlockSpec((S, out_size), lambda b: (0, 0)),
        ],
        out_specs=pl.BlockSpec((1, C, out_size), lambda b: (b, 0, 0)),
        out_shape=jax.ShapeDtypeStruct((B, C, out_size), f32),
        compiler_params=pltpu.CompilerParams(dimension_semantics=("parallel",)),
    )(xs, out_w, out_b, W)
    return y


# ------------------------ deterministic parameter init -----------------------

def init_params(key, *, patch_size, embed_dim, ff_dim, num_layers, num_patches):
    ks = jax.random.split(key, 4 + num_layers)

    def w(k, shape, scale=0.05):
        return (scale * jax.random.normal(k, shape)).astype(jnp.float32)

    params = {
        "pe_w": w(ks[0], (patch_size, embed_dim)),
        "pe_b": jnp.zeros((embed_dim,), jnp.float32),
        "pos": w(ks[1], (num_patches, embed_dim)),
        "out_w": w(ks[2], (embed_dim, 256)),
        "out_b": jnp.zeros((256,), jnp.float32),
        "layers": [],
    }
    for l in range(num_layers):
        lk = jax.random.split(ks[3 + l], 4)
        params["layers"].append({
            "in_w": w(lk[0], (embed_dim, 3 * embed_dim)),
            "in_b": jnp.zeros((3 * embed_dim,), jnp.float32),
            "out_w": w(lk[1], (embed_dim, embed_dim)),
            "out_b": jnp.zeros((embed_dim,), jnp.float32),
            "ln1_g": jnp.ones((embed_dim,), jnp.float32),
            "ln1_b": jnp.zeros((embed_dim,), jnp.float32),
            "ln2_g": jnp.ones((embed_dim,), jnp.float32),
            "ln2_b": jnp.zeros((embed_dim,), jnp.float32),
            "ff1_w": w(lk[2], (embed_dim, ff_dim)),
            "ff1_b": jnp.zeros((ff_dim,), jnp.float32),
            "ff2_w": w(lk[3], (ff_dim, embed_dim)),
            "ff2_b": jnp.zeros((embed_dim,), jnp.float32),
        })
    return params


# ------------------------------ reference (jnp) -------------------------------

def reference_forward(x, params, *, patch_size, num_heads, out_size=2500):
    B, _, L = x.shape
    S = L // patch_size
    E = params["pe_w"].shape[1]
    H = num_heads
    Dh = E // H
    emb = x.reshape(B, S, patch_size) @ params["pe_w"] + params["pe_b"]
    xs = emb.transpose(1, 0, 2) + params["pos"][:, None, :]

    def ln(z, g, b):
        mu = z.mean(-1, keepdims=True)
        var = ((z - mu) ** 2).mean(-1, keepdims=True)
        return (z - mu) / jnp.sqrt(var + 1e-5) * g + b

    for p in params["layers"]:
        x2 = xs.reshape(S * B, E)
        qkv = (x2 @ p["in_w"] + p["in_b"]).reshape(S, B, 3 * E)
        q, k, v = jnp.split(qkv, 3, axis=-1)
        heads = lambda t: t.reshape(S, B * H, Dh).transpose(1, 0, 2)
        qh, kh, vh = heads(q), heads(k), heads(v)
        s = (qh / jnp.sqrt(Dh)) @ kh.transpose(0, 2, 1)
        ah = jax.nn.softmax(s, axis=-1) @ vh
        a = ah.transpose(1, 0, 2).reshape(S * B, E)
        attn_out = a @ p["out_w"] + p["out_b"]
        x1 = ln(x2 + attn_out, p["ln1_g"], p["ln1_b"])
        h = jnp.maximum(x1 @ p["ff1_w"] + p["ff1_b"], 0.0) @ p["ff2_w"] + p["ff2_b"]
        xs = ln(x1 + h, p["ln2_g"], p["ln2_b"]).reshape(S, B, E)

    out = (xs.reshape(S * B, E) @ params["out_w"] + params["out_b"])
    out = out.reshape(S, B, 256).transpose(1, 2, 0)
    M = interp_matrix(S, out_size)
    return (out.reshape(B * 256, S) @ M).reshape(B, 256, out_size)


# ----------------------------------- main ------------------------------------

if __name__ == "__main__":
    batch = 2
    patch_size = 50
    input_size = 400            # -> num_patches = 8
    embed_dim = 32
    num_heads = 4
    ff_dim = 64
    num_layers = 2
    num_patches = input_size // patch_size

    key = jax.random.PRNGKey(0)
    k_x, k_p = jax.random.split(key)
    x = jax.random.normal(k_x, (batch, 1, input_size), dtype=jnp.float32)
    params = init_params(k_p, patch_size=patch_size, embed_dim=embed_dim,
                         ff_dim=ff_dim, num_layers=num_layers,
                         num_patches=num_patches)

    fwd = jax.jit(functools.partial(transformer_encoder,
                                    patch_size=patch_size, num_heads=num_heads))
    y = jax.block_until_ready(fwd(x, params))
    assert y.shape == (batch, 256, 2500), y.shape

    y_ref = jax.block_until_ready(
        reference_forward(x, params, patch_size=patch_size, num_heads=num_heads))
    # bf16 MXU operands (f32 accumulation) + approx reciprocal -> slightly
    # looser tolerance than the pure-f32 reference.
    if not bool(jnp.allclose(y, y_ref, rtol=2e-2, atol=2e-2)):
        err = float(jnp.max(jnp.abs(y - y_ref)))
        raise AssertionError(f"Pallas output does not match jnp reference (max|err|={err})")

    print("KERNEL_OK")
</pallas_src>

<mosaic_0001>
module attributes {stable_mosaic.version = 11 : i64} {
  func.func @_encoder_layers_kernel(%arg0: i32, %arg1: i32, %arg2: memref<8x50xf32, #tpu.memory_space<vmem>>, %arg3: memref<50x32xbf16, #tpu.memory_space<vmem>>, %arg4: memref<1x32xf32, #tpu.memory_space<vmem>>, %arg5: memref<8x32xf32, #tpu.memory_space<vmem>>, %arg6: memref<1x32x96xbf16, #tpu.memory_space<vmem>>, %arg7: memref<1x1x96xf32, #tpu.memory_space<vmem>>, %arg8: memref<1x32x32xbf16, #tpu.memory_space<vmem>>, %arg9: memref<1x1x32xf32, #tpu.memory_space<vmem>>, %arg10: memref<1x1x32xf32, #tpu.memory_space<vmem>>, %arg11: memref<1x1x32xf32, #tpu.memory_space<vmem>>, %arg12: memref<1x1x32xf32, #tpu.memory_space<vmem>>, %arg13: memref<1x1x32xf32, #tpu.memory_space<vmem>>, %arg14: memref<1x32x64xbf16, #tpu.memory_space<vmem>>, %arg15: memref<1x1x64xf32, #tpu.memory_space<vmem>>, %arg16: memref<1x64x32xbf16, #tpu.memory_space<vmem>>, %arg17: memref<1x1x32xf32, #tpu.memory_space<vmem>>, %arg18: memref<8x32xf32, #tpu.memory_space<vmem>>) attributes {dimension_semantics = [#tpu.dimension_semantics<parallel>, #tpu.dimension_semantics<arbitrary>], iteration_bounds = array<i64: 2, 2>, scalar_prefetch = 0 : i64, scratch_operands = 0 : i64, tpu.core_type = #tpu.core_type<tc>, window_params = [{transform_indices = @transform_0, window_bounds = array<i64: 8, 50>}, {pipeline_mode = #tpu.pipeline_mode<synchronous>, transform_indices = @transform_1, window_bounds = array<i64: 50, 32>}, {pipeline_mode = #tpu.pipeline_mode<synchronous>, transform_indices = @transform_2, window_bounds = array<i64: 1, 32>}, {pipeline_mode = #tpu.pipeline_mode<synchronous>, transform_indices = @transform_3, window_bounds = array<i64: 8, 32>}, {transform_indices = @transform_4, window_bounds = array<i64: 1, 32, 96>}, {transform_indices = @transform_5, window_bounds = array<i64: 1, 1, 96>}, {transform_indices = @transform_6, window_bounds = array<i64: 1, 32, 32>}, {transform_indices = @transform_7, window_bounds = array<i64: 1, 1, 32>}, {transform_indices = @transform_8, window_bounds = array<i64: 1, 1, 32>}, {transform_indices = @transform_9, window_bounds = array<i64: 1, 1, 32>}, {transform_indices = @transform_10, window_bounds = array<i64: 1, 1, 32>}, {transform_indices = @transform_11, window_bounds = array<i64: 1, 1, 32>}, {transform_indices = @transform_12, window_bounds = array<i64: 1, 32, 64>}, {transform_indices = @transform_13, window_bounds = array<i64: 1, 1, 64>}, {transform_indices = @transform_14, window_bounds = array<i64: 1, 64, 32>}, {transform_indices = @transform_15, window_bounds = array<i64: 1, 1, 32>}, {transform_indices = @transform_16, window_bounds = array<i64: 8, 32>}]} {
    %c0_i32 = arith.constant 0 : i32
    %0 = arith.cmpi eq, %arg1, %c0_i32 : i32
    %1 = arith.extui %0 : i1 to i32
    %c0_i32_0 = arith.constant 0 : i32
    %2 = arith.cmpi ne, %1, %c0_i32_0 : i32
    scf.if %2 {
      %c0_71 = arith.constant 0 : index
      %c0_72 = arith.constant 0 : index
      %162 = vector.load %arg2[%c0_71, %c0_72] : memref<8x50xf32, #tpu.memory_space<vmem>>, vector<8x50xf32>
      %163 = arith.truncf %162 : vector<8x50xf32> to vector<8x50xbf16>
      %c0_73 = arith.constant 0 : index
      %c0_74 = arith.constant 0 : index
      %164 = vector.load %arg3[%c0_73, %c0_74] : memref<50x32xbf16, #tpu.memory_space<vmem>>, vector<50x32xbf16>
      %cst_75 = arith.constant dense<0.000000e+00> : vector<8x32xf32>
      %165 = tpu.matmul %163, %164, %cst_75 {dimension_numbers = #tpu.dot_dimension_numbers<[1], [0], [0], [1], [0, 0, 1, 1], [], []>} : vector<8x50xbf16>, vector<50x32xbf16>, vector<8x32xf32> -> vector<8x32xf32>
      %c0_76 = arith.constant 0 : index
      %c0_77 = arith.constant 0 : index
      %166 = vector.load %arg4[%c0_76, %c0_77] : memref<1x32xf32, #tpu.memory_space<vmem>>, vector<1x32xf32>
      %167 = vector.broadcast %166 : vector<1x32xf32> to vector<8x32xf32>
      %168 = arith.addf %165, %167 : vector<8x32xf32>
      %c0_78 = arith.constant 0 : index
      %c0_79 = arith.constant 0 : index
      %169 = vector.load %arg5[%c0_78, %c0_79] : memref<8x32xf32, #tpu.memory_space<vmem>>, vector<8x32xf32>
      %170 = arith.addf %168, %169 : vector<8x32xf32>
      %c0_80 = arith.constant 0 : index
      %c0_81 = arith.constant 0 : index
      %171 = vector.load %arg18[%c0_80, %c0_81] : memref<8x32xf32, #tpu.memory_space<vmem>>, vector<8x32xf32>
      tpu.vector_store %arg18[%c0_80, %c0_81], %170 {strides = array<i32>} : memref<8x32xf32, #tpu.memory_space<vmem>>, vector<8x32xf32>,
    } else {
    }
    %c0 = arith.constant 0 : index
    %c0_1 = arith.constant 0 : index
    %3 = vector.load %arg18[%c0, %c0_1] : memref<8x32xf32, #tpu.memory_space<vmem>>, vector<8x32xf32>
    %4 = arith.truncf %3 : vector<8x32xf32> to vector<8x32xbf16>
    %c0_2 = arith.constant 0 : index
    %c0_3 = arith.constant 0 : index
    %c0_4 = arith.constant 0 : index
    %5 = vector.load %arg6[%c0_2, %c0_3, %c0_4] : memref<1x32x96xbf16, #tpu.memory_space<vmem>>, vector<1x32x96xbf16>
    %6 = vector.shape_cast %5 : vector<1x32x96xbf16> to vector<32x96xbf16>
    %cst = arith.constant dense<0.000000e+00> : vector<8x96xf32>
    %7 = tpu.matmul %4, %6, %cst {dimension_numbers = #tpu.dot_dimension_numbers<[1], [0], [0], [1], [0, 0, 1, 1], [], []>} : vector<8x32xbf16>, vector<32x96xbf16>, vector<8x96xf32> -> vector<8x96xf32>
    %c0_5 = arith.constant 0 : index
    %c0_6 = arith.constant 0 : index
    %c0_7 = arith.constant 0 : index
    %8 = vector.load %arg7[%c0_5, %c0_6, %c0_7] : memref<1x1x96xf32, #tpu.memory_space<vmem>>, vector<1x1x96xf32>
    %9 = vector.shape_cast %8 : vector<1x1x96xf32> to vector<1x96xf32>
    %10 = vector.broadcast %9 : vector<1x96xf32> to vector<8x96xf32>
    %11 = arith.addf %7, %10 : vector<8x96xf32>
    %12 = vector.extract_strided_slice %11 {offsets = [0, 0], sizes = [8, 32], strides = [1, 1]} : vector<8x96xf32> to vector<8x32xf32>
    %cst_8 = arith.constant 0.353553385 : f32
    %13 = vector.broadcast %cst_8 : f32 to vector<8x32xf32>
    %14 = arith.mulf %12, %13 : vector<8x32xf32>
    %15 = arith.truncf %14 : vector<8x32xf32> to vector<8x32xbf16>
    %16 = vector.extract_strided_slice %11 {offsets = [0, 32], sizes = [8, 32], strides = [1, 1]} : vector<8x96xf32> to vector<8x32xf32>
    %17 = arith.truncf %16 : vector<8x32xf32> to vector<8x32xbf16>
    %18 = vector.extract_strided_slice %11 {offsets = [0, 64], sizes = [8, 32], strides = [1, 1]} : vector<8x96xf32> to vector<8x32xf32>
    %19 = arith.truncf %18 : vector<8x32xf32> to vector<8x32xbf16>
    %20 = vector.extract_strided_slice %15 {offsets = [0, 0], sizes = [8, 8], strides = [1, 1]} : vector<8x32xbf16> to vector<8x8xbf16>
    %21 = vector.extract_strided_slice %17 {offsets = [0, 0], sizes = [8, 8], strides = [1, 1]} : vector<8x32xbf16> to vector<8x8xbf16>
    %cst_9 = arith.constant dense<0.000000e+00> : vector<8x8xf32>
    %22 = tpu.matmul %20, %21, %cst_9 {dimension_numbers = #tpu.dot_dimension_numbers<[1], [1], [0], [0], [0, 0, 1, 0], [], []>} : vector<8x8xbf16>, vector<8x8xbf16>, vector<8x8xf32> -> vector<8x8xf32>
    %cst_10 = arith.constant dense<0xFF800000> : vector<8xf32>
    %23 = vector.multi_reduction <maximumf>, %22, %cst_10 [1] : vector<8x8xf32> to vector<8xf32>
    %24 = vector.shape_cast %23 : vector<8xf32> to vector<8x1xf32>
    %25 = vector.broadcast %24 : vector<8x1xf32> to vector<8x8xf32>
    %26 = arith.subf %22, %25 : vector<8x8xf32>
    %27 = math.exp %26 : vector<8x8xf32>
    %cst_11 = arith.constant dense<0.000000e+00> : vector<8xf32>
    %28 = vector.multi_reduction <add>, %27, %cst_11 [1] : vector<8x8xf32> to vector<8xf32>
    %29 = vector.shape_cast %28 : vector<8xf32> to vector<8x1xf32>
    %30 = tpu.reciprocal %29 {approx = true} : vector<8x1xf32> -> vector<8x1xf32>
    %31 = vector.broadcast %30 : vector<8x1xf32> to vector<8x8xf32>
    %32 = arith.mulf %27, %31 : vector<8x8xf32>
    %33 = arith.truncf %32 : vector<8x8xf32> to vector<8x8xbf16>
    %34 = vector.extract_strided_slice %19 {offsets = [0, 0], sizes = [8, 8], strides = [1, 1]} : vector<8x32xbf16> to vector<8x8xbf16>
    %cst_12 = arith.constant dense<0.000000e+00> : vector<8x8xf32>
    %35 = tpu.matmul %33, %34, %cst_12 {dimension_numbers = #tpu.dot_dimension_numbers<[1], [0], [0], [1], [0, 0, 1, 1], [], []>} : vector<8x8xbf16>, vector<8x8xbf16>, vector<8x8xf32> -> vector<8x8xf32>
    %36 = vector.extract_strided_slice %15 {offsets = [0, 8], sizes = [8, 8], strides = [1, 1]} : vector<8x32xbf16> to vector<8x8xbf16>
    %37 = vector.extract_strided_slice %17 {offsets = [0, 8], sizes = [8, 8], strides = [1, 1]} : vector<8x32xbf16> to vector<8x8xbf16>
    %cst_13 = arith.constant dense<0.000000e+00> : vector<8x8xf32>
    %38 = tpu.matmul %36, %37, %cst_13 {dimension_numbers = #tpu.dot_dimension_numbers<[1], [1], [0], [0], [0, 0, 1, 0], [], []>} : vector<8x8xbf16>, vector<8x8xbf16>, vector<8x8xf32> -> vector<8x8xf32>
    %cst_14 = arith.constant dense<0xFF800000> : vector<8xf32>
    %39 = vector.multi_reduction <maximumf>, %38, %cst_14 [1] : vector<8x8xf32> to vector<8xf32>
    %40 = vector.shape_cast %39 : vector<8xf32> to vector<8x1xf32>
    %41 = vector.broadcast %40 : vector<8x1xf32> to vector<8x8xf32>
    %42 = arith.subf %38, %41 : vector<8x8xf32>
    %43 = math.exp %42 : vector<8x8xf32>
    %cst_15 = arith.constant dense<0.000000e+00> : vector<8xf32>
    %44 = vector.multi_reduction <add>, %43, %cst_15 [1] : vector<8x8xf32> to vector<8xf32>
    %45 = vector.shape_cast %44 : vector<8xf32> to vector<8x1xf32>
    %46 = tpu.reciprocal %45 {approx = true} : vector<8x1xf32> -> vector<8x1xf32>
    %47 = vector.broadcast %46 : vector<8x1xf32> to vector<8x8xf32>
    %48 = arith.mulf %43, %47 : vector<8x8xf32>
    %49 = arith.truncf %48 : vector<8x8xf32> to vector<8x8xbf16>
    %50 = vector.extract_strided_slice %19 {offsets = [0, 8], sizes = [8, 8], strides = [1, 1]} : vector<8x32xbf16> to vector<8x8xbf16>
    %cst_16 = arith.constant dense<0.000000e+00> : vector<8x8xf32>
    %51 = tpu.matmul %49, %50, %cst_16 {dimension_numbers = #tpu.dot_dimension_numbers<[1], [0], [0], [1], [0, 0, 1, 1], [], []>} : vector<8x8xbf16>, vector<8x8xbf16>, vector<8x8xf32> -> vector<8x8xf32>
    %52 = vector.extract_strided_slice %15 {offsets = [0, 16], sizes = [8, 8], strides = [1, 1]} : vector<8x32xbf16> to vector<8x8xbf16>
    %53 = vector.extract_strided_slice %17 {offsets = [0, 16], sizes = [8, 8], strides = [1, 1]} : vector<8x32xbf16> to vector<8x8xbf16>
    %cst_17 = arith.constant dense<0.000000e+00> : vector<8x8xf32>
    %54 = tpu.matmul %52, %53, %cst_17 {dimension_numbers = #tpu.dot_dimension_numbers<[1], [1], [0], [0], [0, 0, 1, 0], [], []>} : vector<8x8xbf16>, vector<8x8xbf16>, vector<8x8xf32> -> vector<8x8xf32>
    %cst_18 = arith.constant dense<0xFF800000> : vector<8xf32>
    %55 = vector.multi_reduction <maximumf>, %54, %cst_18 [1] : vector<8x8xf32> to vector<8xf32>
    %56 = vector.shape_cast %55 : vector<8xf32> to vector<8x1xf32>
    %57 = vector.broadcast %56 : vector<8x1xf32> to vector<8x8xf32>
    %58 = arith.subf %54, %57 : vector<8x8xf32>
    %59 = math.exp %58 : vector<8x8xf32>
    %cst_19 = arith.constant dense<0.000000e+00> : vector<8xf32>
    %60 = vector.multi_reduction <add>, %59, %cst_19 [1] : vector<8x8xf32> to vector<8xf32>
    %61 = vector.shape_cast %60 : vector<8xf32> to vector<8x1xf32>
    %62 = tpu.reciprocal %61 {approx = true} : vector<8x1xf32> -> vector<8x1xf32>
    %63 = vector.broadcast %62 : vector<8x1xf32> to vector<8x8xf32>
    %64 = arith.mulf %59, %63 : vector<8x8xf32>
    %65 = arith.truncf %64 : vector<8x8xf32> to vector<8x8xbf16>
    %66 = vector.extract_strided_slice %19 {offsets = [0, 16], sizes = [8, 8], strides = [1, 1]} : vector<8x32xbf16> to vector<8x8xbf16>
    %cst_20 = arith.constant dense<0.000000e+00> : vector<8x8xf32>
    %67 = tpu.matmul %65, %66, %cst_20 {dimension_numbers = #tpu.dot_dimension_numbers<[1], [0], [0], [1], [0, 0, 1, 1], [], []>} : vector<8x8xbf16>, vector<8x8xbf16>, vector<8x8xf32> -> vector<8x8xf32>
    %68 = vector.extract_strided_slice %15 {offsets = [0, 24], sizes = [8, 8], strides = [1, 1]} : vector<8x32xbf16> to vector<8x8xbf16>
    %69 = vector.extract_strided_slice %17 {offsets = [0, 24], sizes = [8, 8], strides = [1, 1]} : vector<8x32xbf16> to vector<8x8xbf16>
    %cst_21 = arith.constant dense<0.000000e+00> : vector<8x8xf32>
    %70 = tpu.matmul %68, %69, %cst_21 {dimension_numbers = #tpu.dot_dimension_numbers<[1], [1], [0], [0], [0, 0, 1, 0], [], []>} : vector<8x8xbf16>, vector<8x8xbf16>, vector<8x8xf32> -> vector<8x8xf32>
    %cst_22 = arith.constant dense<0xFF800000> : vector<8xf32>
    %71 = vector.multi_reduction <maximumf>, %70, %cst_22 [1] : vector<8x8xf32> to vector<8xf32>
    %72 = vector.shape_cast %71 : vector<8xf32> to vector<8x1xf32>
    %73 = vector.broadcast %72 : vector<8x1xf32> to vector<8x8xf32>
    %74 = arith.subf %70, %73 : vector<8x8xf32>
    %75 = math.exp %74 : vector<8x8xf32>
    %cst_23 = arith.constant dense<0.000000e+00> : vector<8xf32>
    %76 = vector.multi_reduction <add>, %75, %cst_23 [1] : vector<8x8xf32> to vector<8xf32>
    %77 = vector.shape_cast %76 : vector<8xf32> to vector<8x1xf32>
    %78 = tpu.reciprocal %77 {approx = true} : vector<8x1xf32> -> vector<8x1xf32>
    %79 = vector.broadcast %78 : vector<8x1xf32> to vector<8x8xf32>
    %80 = arith.mulf %75, %79 : vector<8x8xf32>
    %81 = arith.truncf %80 : vector<8x8xf32> to vector<8x8xbf16>
    %82 = vector.extract_strided_slice %19 {offsets = [0, 24], sizes = [8, 8], strides = [1, 1]} : vector<8x32xbf16> to vector<8x8xbf16>
    %cst_24 = arith.constant dense<0.000000e+00> : vector<8x8xf32>
    %83 = tpu.matmul %81, %82, %cst_24 {dimension_numbers = #tpu.dot_dimension_numbers<[1], [0], [0], [1], [0, 0, 1, 1], [], []>} : vector<8x8xbf16>, vector<8x8xbf16>, vector<8x8xf32> -> vector<8x8xf32>
    %84 = tpu.concatenate %35, %51, %67, %83 in 1 : vector<8x8xf32>, vector<8x8xf32>, vector<8x8xf32>, vector<8x8xf32> -> vector<8x32xf32>
    %85 = arith.truncf %84 : vector<8x32xf32> to vector<8x32xbf16>
    %c0_25 = arith.constant 0 : index
    %c0_26 = arith.constant 0 : index
    %c0_27 = arith.constant 0 : index
    %86 = vector.load %arg8[%c0_25, %c0_26, %c0_27] : memref<1x32x32xbf16, #tpu.memory_space<vmem>>, vector<1x32x32xbf16>
    %87 = vector.shape_cast %86 : vector<1x32x32xbf16> to vector<32x32xbf16>
    %cst_28 = arith.constant dense<0.000000e+00> : vector<8x32xf32>
    %88 = tpu.matmul %85, %87, %cst_28 {dimension_numbers = #tpu.dot_dimension_numbers<[1], [0], [0], [1], [0, 0, 1, 1], [], []>} : vector<8x32xbf16>, vector<32x32xbf16>, vector<8x32xf32> -> vector<8x32xf32>
    %c0_29 = arith.constant 0 : index
    %c0_30 = arith.constant 0 : index
    %c0_31 = arith.constant 0 : index
    %89 = vector.load %arg9[%c0_29, %c0_30, %c0_31] : memref<1x1x32xf32, #tpu.memory_space<vmem>>, vector<1x1x32xf32>
    %90 = vector.shape_cast %89 : vector<1x1x32xf32> to vector<1x32xf32>
    %91 = vector.broadcast %90 : vector<1x32xf32> to vector<8x32xf32>
    %92 = arith.addf %88, %91 : vector<8x32xf32>
    %93 = arith.addf %3, %92 : vector<8x32xf32>
    %c0_32 = arith.constant 0 : index
    %c0_33 = arith.constant 0 : index
    %c0_34 = arith.constant 0 : index
    %94 = vector.load %arg10[%c0_32, %c0_33, %c0_34] : memref<1x1x32xf32, #tpu.memory_space<vmem>>, vector<1x1x32xf32>
    %95 = vector.shape_cast %94 : vector<1x1x32xf32> to vector<1x32xf32>
    %c0_35 = arith.constant 0 : index
    %c0_36 = arith.constant 0 : index
    %c0_37 = arith.constant 0 : index
    %96 = vector.load %arg11[%c0_35, %c0_36, %c0_37] : memref<1x1x32xf32, #tpu.memory_space<vmem>>, vector<1x1x32xf32>
    %97 = vector.shape_cast %96 : vector<1x1x32xf32> to vector<1x32xf32>
    %cst_38 = arith.constant dense<0.000000e+00> : vector<8xf32>
    %98 = vector.multi_reduction <add>, %93, %cst_38 [1] : vector<8x32xf32> to vector<8xf32>
    %99 = vector.shape_cast %98 : vector<8xf32> to vector<8x1xf32>
    %cst_39 = arith.constant 3.200000e+01 : f32
    %100 = vector.broadcast %cst_39 : f32 to vector<8x1xf32>
    %101 = arith.divf %99, %100 : vector<8x1xf32>
    %102 = vector.broadcast %101 : vector<8x1xf32> to vector<8x32xf32>
    %103 = arith.subf %93, %102 : vector<8x32xf32>
    %104 = arith.mulf %103, %103 : vector<8x32xf32>
    %cst_40 = arith.constant dense<0.000000e+00> : vector<8xf32>
    %105 = vector.multi_reduction <add>, %104, %cst_40 [1] : vector<8x32xf32> to vector<8xf32>
    %106 = vector.shape_cast %105 : vector<8xf32> to vector<8x1xf32>
    %cst_41 = arith.constant 3.200000e+01 : f32
    %107 = vector.broadcast %cst_41 : f32 to vector<8x1xf32>
    %108 = arith.divf %106, %107 : vector<8x1xf32>
    %cst_42 = arith.constant 9.99999974E-6 : f32
    %109 = vector.broadcast %cst_42 : f32 to vector<8x1xf32>
    %110 = arith.addf %108, %109 : vector<8x1xf32>
    %111 = math.rsqrt %110 : vector<8x1xf32>
    %112 = vector.broadcast %111 : vector<8x1xf32> to vector<8x32xf32>
    %113 = arith.mulf %103, %112 : vector<8x32xf32>
    %114 = vector.broadcast %95 : vector<1x32xf32> to vector<8x32xf32>
    %115 = arith.mulf %113, %114 : vector<8x32xf32>
    %116 = vector.broadcast %97 : vector<1x32xf32> to vector<8x32xf32>
    %117 = arith.addf %115, %116 : vector<8x32xf32>
    %118 = arith.truncf %117 : vector<8x32xf32> to vector<8x32xbf16>
    %c0_43 = arith.constant 0 : index
    %c0_44 = arith.constant 0 : index
    %c0_45 = arith.constant 0 : index
    %119 = vector.load %arg14[%c0_43, %c0_44, %c0_45] : memref<1x32x64xbf16, #tpu.memory_space<vmem>>, vector<1x32x64xbf16>
    %120 = vector.shape_cast %119 : vector<1x32x64xbf16> to vector<32x64xbf16>
    %cst_46 = arith.constant dense<0.000000e+00> : vector<8x64xf32>
    %121 = tpu.matmul %118, %120, %cst_46 {dimension_numbers = #tpu.dot_dimension_numbers<[1], [0], [0], [1], [0, 0, 1, 1], [], []>} : vector<8x32xbf16>, vector<32x64xbf16>, vector<8x64xf32> -> vector<8x64xf32>
    %c0_47 = arith.constant 0 : index
    %c0_48 = arith.constant 0 : index
    %c0_49 = arith.constant 0 : index
    %122 = vector.load %arg15[%c0_47, %c0_48, %c0_49] : memref<1x1x64xf32, #tpu.memory_space<vmem>>, vector<1x1x64xf32>
    %123 = vector.shape_cast %122 : vector<1x1x64xf32> to vector<1x64xf32>
    %124 = vector.broadcast %123 : vector<1x64xf32> to vector<8x64xf32>
    %125 = arith.addf %121, %124 : vector<8x64xf32>
    %cst_50 = arith.constant 0.000000e+00 : f32
    %126 = vector.broadcast %cst_50 : f32 to vector<8x64xf32>
    %127 = arith.maximumf %125, %126 : vector<8x64xf32>
    %128 = arith.truncf %127 : vector<8x64xf32> to vector<8x64xbf16>
    %c0_51 = arith.constant 0 : index
    %c0_52 = arith.constant 0 : index
    %c0_53 = arith.constant 0 : index
    %129 = vector.load %arg16[%c0_51, %c0_52, %c0_53] : memref<1x64x32xbf16, #tpu.memory_space<vmem>>, vector<1x64x32xbf16>
    %130 = vector.shape_cast %129 : vector<1x64x32xbf16> to vector<64x32xbf16>
    %cst_54 = arith.constant dense<0.000000e+00> : vector<8x32xf32>
    %131 = tpu.matmul %128, %130, %cst_54 {dimension_numbers = #tpu.dot_dimension_numbers<[1], [0], [0], [1], [0, 0, 1, 1], [], []>} : vector<8x64xbf16>, vector<64x32xbf16>, vector<8x32xf32> -> vector<8x32xf32>
    %c0_55 = arith.constant 0 : index
    %c0_56 = arith.constant 0 : index
    %c0_57 = arith.constant 0 : index
    %132 = vector.load %arg17[%c0_55, %c0_56, %c0_57] : memref<1x1x32xf32, #tpu.memory_space<vmem>>, vector<1x1x32xf32>
    %133 = vector.shape_cast %132 : vector<1x1x32xf32> to vector<1x32xf32>
    %134 = vector.broadcast %133 : vector<1x32xf32> to vector<8x32xf32>
    %135 = arith.addf %131, %134 : vector<8x32xf32>
    %136 = arith.addf %117, %135 : vector<8x32xf32>
    %c0_58 = arith.constant 0 : index
    %c0_59 = arith.constant 0 : index
    %c0_60 = arith.constant 0 : index
    %137 = vector.load %arg12[%c0_58, %c0_59, %c0_60] : memref<1x1x32xf32, #tpu.memory_space<vmem>>, vector<1x1x32xf32>
    %138 = vector.shape_cast %137 : vector<1x1x32xf32> to vector<1x32xf32>
    %c0_61 = arith.constant 0 : index
    %c0_62 = arith.constant 0 : index
    %c0_63 = arith.constant 0 : index
    %139 = vector.load %arg13[%c0_61, %c0_62, %c0_63] : memref<1x1x32xf32, #tpu.memory_space<vmem>>, vector<1x1x32xf32>
    %140 = vector.shape_cast %139 : vector<1x1x32xf32> to vector<1x32xf32>
    %cst_64 = arith.constant dense<0.000000e+00> : vector<8xf32>
    %141 = vector.multi_reduction <add>, %136, %cst_64 [1] : vector<8x32xf32> to vector<8xf32>
    %142 = vector.shape_cast %141 : vector<8xf32> to vector<8x1xf32>
    %cst_65 = arith.constant 3.200000e+01 : f32
    %143 = vector.broadcast %cst_65 : f32 to vector<8x1xf32>
    %144 = arith.divf %142, %143 : vector<8x1xf32>
    %145 = vector.broadcast %144 : vector<8x1xf32> to vector<8x32xf32>
    %146 = arith.subf %136, %145 : vector<8x32xf32>
    %147 = arith.mulf %146, %146 : vector<8x32xf32>
    %cst_66 = arith.constant dense<0.000000e+00> : vector<8xf32>
    %148 = vector.multi_reduction <add>, %147, %cst_66 [1] : vector<8x32xf32> to vector<8xf32>
    %149 = vector.shape_cast %148 : vector<8xf32> to vector<8x1xf32>
    %cst_67 = arith.constant 3.200000e+01 : f32
    %150 = vector.broadcast %cst_67 : f32 to vector<8x1xf32>
    %151 = arith.divf %149, %150 : vector<8x1xf32>
    %cst_68 = arith.constant 9.99999974E-6 : f32
    %152 = vector.broadcast %cst_68 : f32 to vector<8x1xf32>
    %153 = arith.addf %151, %152 : vector<8x1xf32>
    %154 = math.rsqrt %153 : vector<8x1xf32>
    %155 = vector.broadcast %154 : vector<8x1xf32> to vector<8x32xf32>
    %156 = arith.mulf %146, %155 : vector<8x32xf32>
    %157 = vector.broadcast %138 : vector<1x32xf32> to vector<8x32xf32>
    %158 = arith.mulf %156, %157 : vector<8x32xf32>
    %159 = vector.broadcast %140 : vector<1x32xf32> to vector<8x32xf32>
    %160 = arith.addf %158, %159 : vector<8x32xf32>
    %c0_69 = arith.constant 0 : index
    %c0_70 = arith.constant 0 : index
    %161 = vector.load %arg18[%c0_69, %c0_70] : memref<8x32xf32, #tpu.memory_space<vmem>>, vector<8x32xf32>
    tpu.vector_store %arg18[%c0_69, %c0_70], %160 {strides = array<i32>} : memref<8x32xf32, #tpu.memory_space<vmem>>, vector<8x32xf32>,
    return
  }
  func.func @transform_0(%arg0: i32, %arg1: i32) -> (i32, i32) {
    %c0_i32 = arith.constant 0 : i32
    %c0_i32_0 = arith.constant 0 : i32
    return %arg0, %c0_i32 : i32, i32
  }
  func.func @transform_1(%arg0: i32, %arg1: i32) -> (i32, i32) {
    %c0_i32 = arith.constant 0 : i32
    %c0_i32_0 = arith.constant 0 : i32
    %c0_i32_1 = arith.constant 0 : i32
    return %c0_i32, %c0_i32_0 : i32, i32
  }
  func.func @transform_2(%arg0: i32, %arg1: i32) -> (i32, i32) {
    %c0_i32 = arith.constant 0 : i32
    %c0_i32_0 = arith.constant 0 : i32
    %c0_i32_1 = arith.constant 0 : i32
    return %c0_i32, %c0_i32_0 : i32, i32
  }
  func.func @transform_3(%arg0: i32, %arg1: i32) -> (i32, i32) {
    %c0_i32 = arith.constant 0 : i32
    %c0_i32_0 = arith.constant 0 : i32
    %c0_i32_1 = arith.constant 0 : i32
    return %c0_i32, %c0_i32_0 : i32, i32
  }
  func.func @transform_4(%arg0: i32, %arg1: i32) -> (i32, i32, i32) {
    %c0_i32 = arith.constant 0 : i32
    %c0_i32_0 = arith.constant 0 : i32
    %c0_i32_1 = arith.constant 0 : i32
    return %arg1, %c0_i32, %c0_i32_0 : i32, i32, i32
  }
  func.func @transform_5(%arg0: i32, %arg1: i32) -> (i32, i32, i32) {
    %c0_i32 = arith.constant 0 : i32
    %c0_i32_0 = arith.constant 0 : i32
    %c0_i32_1 = arith.constant 0 : i32
    return %arg1, %c0_i32, %c0_i32_0 : i32, i32, i32
  }
  func.func @transform_6(%arg0: i32, %arg1: i32) -> (i32, i32, i32) {
    %c0_i32 = arith.constant 0 : i32
    %c0_i32_0 = arith.constant 0 : i32
    %c0_i32_1 = arith.constant 0 : i32
    return %arg1, %c0_i32, %c0_i32_0 : i32, i32, i32
  }
  func.func @transform_7(%arg0: i32, %arg1: i32) -> (i32, i32, i32) {
    %c0_i32 = arith.constant 0 : i32
    %c0_i32_0 = arith.constant 0 : i32
    %c0_i32_1 = arith.constant 0 : i32
    return %arg1, %c0_i32, %c0_i32_0 : i32, i32, i32
  }
  func.func @transform_8(%arg0: i32, %arg1: i32) -> (i32, i32, i32) {
    %c0_i32 = arith.constant 0 : i32
    %c0_i32_0 = arith.constant 0 : i32
    %c0_i32_1 = arith.constant 0 : i32
    return %arg1, %c0_i32, %c0_i32_0 : i32, i32, i32
  }
  func.func @transform_9(%arg0: i32, %arg1: i32) -> (i32, i32, i32) {
    %c0_i32 = arith.constant 0 : i32
    %c0_i32_0 = arith.constant 0 : i32
    %c0_i32_1 = arith.constant 0 : i32
    return %arg1, %c0_i32, %c0_i32_0 : i32, i32, i32
  }
  func.func @transform_10(%arg0: i32, %arg1: i32) -> (i32, i32, i32) {
    %c0_i32 = arith.constant 0 : i32
    %c0_i32_0 = arith.constant 0 : i32
    %c0_i32_1 = arith.constant 0 : i32
    return %arg1, %c0_i32, %c0_i32_0 : i32, i32, i32
  }
  func.func @transform_11(%arg0: i32, %arg1: i32) -> (i32, i32, i32) {
    %c0_i32 = arith.constant 0 : i32
    %c0_i32_0 = arith.constant 0 : i32
    %c0_i32_1 = arith.constant 0 : i32
    return %arg1, %c0_i32, %c0_i32_0 : i32, i32, i32
  }
  func.func @transform_12(%arg0: i32, %arg1: i32) -> (i32, i32, i32) {
    %c0_i32 = arith.constant 0 : i32
    %c0_i32_0 = arith.constant 0 : i32
    %c0_i32_1 = arith.constant 0 : i32
    return %arg1, %c0_i32, %c0_i32_0 : i32, i32, i32
  }
  func.func @transform_13(%arg0: i32, %arg1: i32) -> (i32, i32, i32) {
    %c0_i32 = arith.constant 0 : i32
    %c0_i32_0 = arith.constant 0 : i32
    %c0_i32_1 = arith.constant 0 : i32
    return %arg1, %c0_i32, %c0_i32_0 : i32, i32, i32
  }
  func.func @transform_14(%arg0: i32, %arg1: i32) -> (i32, i32, i32) {
    %c0_i32 = arith.constant 0 : i32
    %c0_i32_0 = arith.constant 0 : i32
    %c0_i32_1 = arith.constant 0 : i32
    return %arg1, %c0_i32, %c0_i32_0 : i32, i32, i32
  }
  func.func @transform_15(%arg0: i32, %arg1: i32) -> (i32, i32, i32) {
    %c0_i32 = arith.constant 0 : i32
    %c0_i32_0 = arith.constant 0 : i32
    %c0_i32_1 = arith.constant 0 : i32
    return %arg1, %c0_i32, %c0_i32_0 : i32, i32, i32
  }
  func.func @transform_16(%arg0: i32, %arg1: i32) -> (i32, i32) {
    %c0_i32 = arith.constant 0 : i32
    %c0_i32_0 = arith.constant 0 : i32
    return %arg0, %c0_i32 : i32, i32
  }
}

module attributes {stable_mosaic.version = 11 : i64} {
  func.func @_output_interp_kernel(%arg0: i32, %arg1: memref<8x32xf32, #tpu.memory_space<vmem>>, %arg2: memref<32x256xbf16, #tpu.memory_space<vmem>>, %arg3: memref<256x1xf32, #tpu.memory_space<vmem>>, %arg4: memref<8x2500xf32, #tpu.memory_space<vmem>>, %arg5: memref<1x256x2500xf32, #tpu.memory_space<vmem>>) attributes {dimension_semantics = [#tpu.dimension_semantics<parallel>], iteration_bounds = array<i64: 2>, scalar_prefetch = 0 : i64, scratch_operands = 0 : i64, tpu.core_type = #tpu.core_type<tc>, window_params = [{transform_indices = @transform_0, window_bounds = array<i64: 8, 32>}, {pipeline_mode = #tpu.pipeline_mode<synchronous>, transform_indices = @transform_1, window_bounds = array<i64: 32, 256>}, {pipeline_mode = #tpu.pipeline_mode<synchronous>, transform_indices = @transform_2, window_bounds = array<i64: 256, 1>}, {pipeline_mode = #tpu.pipeline_mode<synchronous>, transform_indices = @transform_3, window_bounds = array<i64: 8, 2500>}, {transform_indices = @transform_4, window_bounds = array<i64: 1, 256, 2500>}]} {
    %c0 = arith.constant 0 : index
    %c0_0 = arith.constant 0 : index
    %0 = vector.load %arg2[%c0, %c0_0] : memref<32x256xbf16, #tpu.memory_space<vmem>>, vector<32x256xbf16>
    %c0_1 = arith.constant 0 : index
    %c0_2 = arith.constant 0 : index
    %1 = vector.load %arg1[%c0_1, %c0_2] : memref<8x32xf32, #tpu.memory_space<vmem>>, vector<8x32xf32>
    %2 = arith.truncf %1 : vector<8x32xf32> to vector<8x32xbf16>
    %cst = arith.constant dense<0.000000e+00> : vector<256x8xf32>
    %3 = tpu.matmul %0, %2, %cst {dimension_numbers = #tpu.dot_dimension_numbers<[0], [1], [1], [0], [0, 1, 1, 0], [], []>} : vector<32x256xbf16>, vector<8x32xbf16>, vector<256x8xf32> -> vector<256x8xf32>
    %c0_3 = arith.constant 0 : index
    %c0_4 = arith.constant 0 : index
    %4 = vector.load %arg3[%c0_3, %c0_4] : memref<256x1xf32, #tpu.memory_space<vmem>>, vector<256x1xf32>
    %5 = vector.broadcast %4 : vector<256x1xf32> to vector<256x8xf32>
    %6 = arith.addf %3, %5 : vector<256x8xf32>
    %c0_5 = arith.constant 0 : index
    %c0_6 = arith.constant 0 : index
    %7 = vector.load %arg4[%c0_5, %c0_6] : memref<8x2500xf32, #tpu.memory_space<vmem>>, vector<8x2500xf32>
    %cst_7 = arith.constant dense<0.000000e+00> : vector<256x2500xf32>
    %8 = tpu.matmul %6, %7, %cst_7 {dimension_numbers = #tpu.dot_dimension_numbers<[1], [0], [0], [1], [0, 0, 1, 1], [], []>} : vector<256x8xf32>, vector<8x2500xf32>, vector<256x2500xf32> -> vector<256x2500xf32>
    %c0_8 = arith.constant 0 : index
    %c0_9 = arith.constant 0 : index
    %c0_10 = arith.constant 0 : index
    %9 = vector.load %arg5[%c0_8, %c0_9, %c0_10] : memref<1x256x2500xf32, #tpu.memory_space<vmem>>, vector<1x256x2500xf32>
    %10 = vector.shape_cast %9 : vector<1x256x2500xf32> to vector<256x2500xf32>
    %11 = vector.shape_cast %8 : vector<256x2500xf32> to vector<1x256x2500xf32>
    tpu.vector_store %arg5[%c0_8, %c0_9, %c0_10], %11 {strides = array<i32>} : memref<1x256x2500xf32, #tpu.memory_space<vmem>>, vector<1x256x2500xf32>,
    return
  }
  func.func @transform_0(%arg0: i32) -> (i32, i32) {
    %c0_i32 = arith.constant 0 : i32
    %c0_i32_0 = arith.constant 0 : i32
    return %arg0, %c0_i32 : i32, i32
  }
  func.func @transform_1(%arg0: i32) -> (i32, i32) {
    %c0_i32 = arith.constant 0 : i32
    %c0_i32_0 = arith.constant 0 : i32
    %c0_i32_1 = arith.constant 0 : i32
    return %c0_i32, %c0_i32_0 : i32, i32
  }
  func.func @transform_2(%arg0: i32) -> (i32, i32) {
    %c0_i32 = arith.constant 0 : i32
    %c0_i32_0 = arith.constant 0 : i32
    %c0_i32_1 = arith.constant 0 : i32
    return %c0_i32, %c0_i32_0 : i32, i32
  }
  func.func @transform_3(%arg0: i32) -> (i32, i32) {
    %c0_i32 = arith.constant 0 : i32
    %c0_i32_0 = arith.constant 0 : i32
    %c0_i32_1 = arith.constant 0 : i32
    return %c0_i32, %c0_i32_0 : i32, i32
  }
  func.func @transform_4(%arg0: i32) -> (i32, i32, i32) {
    %c0_i32 = arith.constant 0 : i32
    %c0_i32_0 = arith.constant 0 : i32
    %c0_i32_1 = arith.constant 0 : i32
    return %arg0, %c0_i32, %c0_i32_0 : i32, i32, i32
  }
}

</mosaic_0001>

<llo_original>
// kernel: transformer_encoder.2
$region0: #{transformer_encoder.2}
  #allocation0 [shape = 'u32[]', space=smem, size = 0x4, offset = 0x4, fixed_abs, tag = 'smem constant byte address 0x4 - core index']
  #allocation1 [shape = 'u32[144,128]{1,0:T(1,128)}', space=vmem, size = 0x12000, scoped, tag = 'internal scratch']
  %s0 = inlined_call_operand.vmem [shape: f32[16,50], index: 0, kind: input, shape index: {}]
  %s1 = inlined_call_operand.vmem [shape: bf16[50,32], index: 1, kind: input, shape index: {}]
  %s2 = inlined_call_operand.hbm [shape: f32[1,32], index: 2, kind: input, shape index: {}]
  %s3 = inlined_call_operand.hbm [shape: f32[8,32], index: 3, kind: input, shape index: {}]
  %s4 = inlined_call_operand.vmem [shape: bf16[2,32,96], index: 4, kind: input, shape index: {}]
  %s5 = inlined_call_operand.vmem [shape: f32[2,1,96], index: 5, kind: input, shape index: {}]
  %s6 = inlined_call_operand.vmem [shape: bf16[2,32,32], index: 6, kind: input, shape index: {}]
  %s7 = inlined_call_operand.vmem [shape: f32[2,1,32], index: 7, kind: input, shape index: {}]
  %s8 = inlined_call_operand.vmem [shape: f32[2,1,32], index: 8, kind: input, shape index: {}]
  %s9 = inlined_call_operand.vmem [shape: f32[2,1,32], index: 9, kind: input, shape index: {}]
  %s10 = inlined_call_operand.vmem [shape: f32[2,1,32], index: 10, kind: input, shape index: {}]
  %s11 = inlined_call_operand.vmem [shape: f32[2,1,32], index: 11, kind: input, shape index: {}]
  %s12 = inlined_call_operand.vmem [shape: bf16[2,32,64], index: 12, kind: input, shape index: {}]
  %s13 = inlined_call_operand.vmem [shape: f32[2,1,64], index: 13, kind: input, shape index: {}]
  %s14 = inlined_call_operand.vmem [shape: bf16[2,64,32], index: 14, kind: input, shape index: {}]
  %s15 = inlined_call_operand.vmem [shape: f32[2,1,32], index: 15, kind: input, shape index: {}]
  %s16 = inlined_call_operand.vmem [shape: f32[16,32], index: 16, kind: output, shape index: {}]
  %s17 = sld [smem:[#allocation0]]
  $region109: #{transformer_encoder.2} parent=0
    _
  %s19 = ssub.s32 1, %s17
  %s20 = scalar_select 0, %s19, %s17
  $region1: #{transformer_encoder.2} parent=0
    #allocation2 [shape = 'u8[512]{0}', space=vmem, size = 0x400, scoped, tag = 'input window, operand 2, single buffered']
    #allocation3 [shape = 's32[2]{0}', space=sflag, size = 0x8, scoped, tag = 'scoped memory for transformer_encoder.2']
    #allocation4 [shape = 'u8[4096]{0}', space=vmem, size = 0x1000, scoped, tag = 'input window, operand 3, single buffered']
    #allocation5 [shape = 's32[1]{0}', space=sflag, size = 0x4, scoped, tag = 'scoped memory for transformer_encoder.2']
    %21 = vsyncpa [#allocation3], 0
    %22 = vsyncpa [#allocation5], 0
    loop: start=0, step=1, limit=6
    $region2: #{transformer_encoder.2} parent=1 // loop_pre_header
      _
    $region3: #{transformer_encoder.2} parent=1 // loop_header
      %s24 = sphi 0, %s28
      %p25 = scmp.ge.s32.totalorder %s24, 6
      %s31 = sphi 0, %s43
      %s32 = sphi 0, %s39
      %s33 = sphi 0, %s31
      %s34 = sphi 0, %s32
      %s35 = sphi 0, %s33
      %s36 = sphi 0, %s34
      %s46 = sphi 0, %s48
      %s49 = sphi 0, %s46
      %s50 = sphi 0, %s49
      %s66 = sphi 0, %s50
      %s70 = sphi 0, %s70
      %s72 = sphi 0, %s70
      %s73 = sphi 0, %s72
      %s87 = sphi 0, %s73
      %s91 = sphi 0, %s91
      %s93 = sphi 0, %s91
      %s94 = sphi 0, %s93
      %s108 = sphi 0, %s94
      %s112 = sphi 0, %s112
      %s114 = sphi 0, %s112
      %s115 = sphi 0, %s114
      %s129 = sphi 0, %s115
      %s135 = sphi 0, %s137
      %s138 = sphi 0, %s135
      %s139 = sphi 0, %s138
      %s155 = sphi 0, %s139
      %s161 = sphi 0, %s163
      %s164 = sphi 0, %s161
      %s165 = sphi 0, %s164
      %s181 = sphi 0, %s165
      %s187 = sphi 0, %s189
      %s190 = sphi 0, %s187
      %s191 = sphi 0, %s190
      %s207 = sphi 0, %s191
      %s213 = sphi 0, %s215
      %s216 = sphi 0, %s213
      %s217 = sphi 0, %s216
      %s233 = sphi 0, %s217
      %s239 = sphi 0, %s241
      %s242 = sphi 0, %s239
      %s243 = sphi 0, %s242
      %s259 = sphi 0, %s243
      %s265 = sphi 0, %s267
      %s268 = sphi 0, %s265
      %s269 = sphi 0, %s268
      %s285 = sphi 0, %s269
      %s291 = sphi 0, %s293
      %s294 = sphi 0, %s291
      %s295 = sphi 0, %s294
      %s311 = sphi 0, %s295
      %s317 = sphi 0, %s319
      %s320 = sphi 0, %s317
      %s321 = sphi 0, %s320
      %s337 = sphi 0, %s321
      %s343 = sphi 0, %s345
      %s346 = sphi 0, %s343
      %s347 = sphi 0, %s346
      %s363 = sphi 0, %s347
      %s369 = sphi 0, %s371
      %s372 = sphi 0, %s369
      %s373 = sphi 0, %s372
      %s389 = sphi 0, %s373
      %s395 = sphi 0, %s397
      %s398 = sphi 0, %s395
      %s399 = sphi 0, %s398
      %s415 = sphi 0, %s399
      %s421 = sphi 0, %s423
      %s424 = sphi 0, %s421
      %s425 = sphi 0, %s424
      %s441 = sphi 0, %s425
      %s447 = sphi 0, %s449
      %s450 = sphi 0, %s447
      %s451 = sphi 0, %s450
      %s467 = sphi 0, %s451
    $region4: #{transformer_encoder.2} parent=1 // loop_header_branch
      %27 = sbr.rel (%p25) target = $region8
    $region5: #{transformer_encoder.2} parent=1 // loop_body
      %s29 = ssub.s32 %s24, 1
      %s30 = ssub.s32 %s24, 2
      %s37 = sadd.s32 1, %s32
      %p38 = scmp.ge.s32.totalorder %s37, 2
      %s39 = scalar_select %p38, 0, %s37
      %s40 = sadd.s32 1, %s31
      %s41 = scalar_select %p38, %s40, %s31
      %p42 = scmp.ge.s32.totalorder %s41, 2
      %s43 = scalar_select %p42, 0, %s41
      %s44 = ssub.s32 %s31, %s43
      %p45 = scmp.eq.s32.totalorder %s44, 0
      %s47 = sadd.s32 %s46, 1
      %s48 = scalar_select %p45, %s46, %s47
      %p51 = pneg %p45
      %p52 = scmp.eq.s32.totalorder %s24, 3
      %p53 = por %p51, %p52
      %p54 = scmp.ne.s32.totalorder %s46, %s49
      %p55 = scmp.eq.s32.totalorder %s24, 0
      %p56 = por %p54, %p55
      %p57 = scmp.ne.s32.totalorder %s46, %s49
      %p58 = scmp.eq.s32.totalorder %s29, 3
      %p59 = por %p57, %p58
      %p60 = scmp.ne.s32.totalorder %s49, %s50
      %p61 = scmp.eq.s32.totalorder %s29, 0
      %p62 = por %p60, %p61
      %p63 = scmp.ne.s32.totalorder %s49, %s50
      %p64 = scmp.eq.s32.totalorder %s30, 3
      %p65 = por %p63, %p64
      %p67 = scmp.ne.s32.totalorder %s50, %s66
      %p68 = scmp.eq.s32.totalorder %s30, 0
      %p69 = por %p67, %p68
      %s71 = sadd.s32 %s70, 1
      %p74 = scmp.eq.s32.totalorder %s24, 3
      %p75 = scmp.ne.s32.totalorder %s70, %s72
      %p76 = scmp.eq.s32.totalorder %s24, 0
      %p77 = por %p75, %p76
      %p78 = scmp.ne.s32.totalorder %s70, %s72
      %p79 = scmp.eq.s32.totalorder %s29, 3
      %p80 = por %p78, %p79
      %p81 = scmp.ne.s32.totalorder %s72, %s73
      %p82 = scmp.eq.s32.totalorder %s29, 0
      %p83 = por %p81, %p82
      %p84 = scmp.ne.s32.totalorder %s72, %s73
      %p85 = scmp.eq.s32.totalorder %s30, 3
      %p86 = por %p84, %p85
      %p88 = scmp.ne.s32.totalorder %s73, %s87
      %p89 = scmp.eq.s32.totalorder %s30, 0
      %p90 = por %p88, %p89
      %s92 = sadd.s32 %s91, 1
      %p95 = scmp.eq.s32.totalorder %s24, 3
      %p96 = scmp.ne.s32.totalorder %s91, %s93
      %p97 = scmp.eq.s32.totalorder %s24, 0
      %p98 = por %p96, %p97
      %p99 = scmp.ne.s32.totalorder %s91, %s93
      %p100 = scmp.eq.s32.totalorder %s29, 3
      %p101 = por %p99, %p100
      %p102 = scmp.ne.s32.totalorder %s93, %s94
      %p103 = scmp.eq.s32.totalorder %s29, 0
      %p104 = por %p102, %p103
      %p105 = scmp.ne.s32.totalorder %s93, %s94
      %p106 = scmp.eq.s32.totalorder %s30, 3
      %p107 = por %p105, %p106
      %p109 = scmp.ne.s32.totalorder %s94, %s108
      %p110 = scmp.eq.s32.totalorder %s30, 0
      %p111 = por %p109, %p110
      %s113 = sadd.s32 %s112, 1
      %p116 = scmp.eq.s32.totalorder %s24, 3
      %p117 = scmp.ne.s32.totalorder %s112, %s114
      %p118 = scmp.eq.s32.totalorder %s24, 0
      %p119 = por %p117, %p118
      %p120 = scmp.ne.s32.totalorder %s112, %s114
      %p121 = scmp.eq.s32.totalorder %s29, 3
      %p122 = por %p120, %p121
      %p123 = scmp.ne.s32.totalorder %s114, %s115
      %p124 = scmp.eq.s32.totalorder %s29, 0
      %p125 = por %p123, %p124
      %p126 = scmp.ne.s32.totalorder %s114, %s115
      %p127 = scmp.eq.s32.totalorder %s30, 3
      %p128 = por %p126, %p127
      %p130 = scmp.ne.s32.totalorder %s115, %s129
      %p131 = scmp.eq.s32.totalorder %s30, 0
      %p132 = por %p130, %p131
      %s133 = ssub.s32 %s32, %s39
      %p134 = scmp.eq.s32.totalorder %s133, 0
      %s136 = sadd.s32 %s135, 1
      %s137 = scalar_select %p134, %s135, %s136
      %p140 = pneg %p134
      %p141 = scmp.eq.s32.totalorder %s24, 3
      %p142 = por %p140, %p141
      %p143 = scmp.ne.s32.totalorder %s135, %s138
      %p144 = scmp.eq.s32.totalorder %s24, 0
      %p145 = por %p143, %p144
      %p146 = scmp.ne.s32.totalorder %s135, %s138
      %p147 = scmp.eq.s32.totalorder %s29, 3
      %p148 = por %p146, %p147
      %p149 = scmp.ne.s32.totalorder %s138, %s139
      %p150 = scmp.eq.s32.totalorder %s29, 0
      %p151 = por %p149, %p150
      %p152 = scmp.ne.s32.totalorder %s138, %s139
      %p153 = scmp.eq.s32.totalorder %s30, 3
      %p154 = por %p152, %p153
      %p156 = scmp.ne.s32.totalorder %s139, %s155
      %p157 = scmp.eq.s32.totalorder %s30, 0
      %p158 = por %p156, %p157
      %s159 = ssub.s32 %s32, %s39
      %p160 = scmp.eq.s32.totalorder %s159, 0
      %s162 = sadd.s32 %s161, 1
      %s163 = scalar_select %p160, %s161, %s162
      %p166 = pneg %p160
      %p167 = scmp.eq.s32.totalorder %s24, 3
      %p168 = por %p166, %p167
      %p169 = scmp.ne.s32.totalorder %s161, %s164
      %p170 = scmp.eq.s32.totalorder %s24, 0
      %p171 = por %p169, %p170
      %p172 = scmp.ne.s32.totalorder %s161, %s164
      %p173 = scmp.eq.s32.totalorder %s29, 3
      %p174 = por %p172, %p173
      %p175 = scmp.ne.s32.totalorder %s164, %s165
      %p176 = scmp.eq.s32.totalorder %s29, 0
      %p177 = por %p175, %p176
      %p178 = scmp.ne.s32.totalorder %s164, %s165
      %p179 = scmp.eq.s32.totalorder %s30, 3
      %p180 = por %p178, %p179
      %p182 = scmp.ne.s32.totalorder %s165, %s181
      %p183 = scmp.eq.s32.totalorder %s30, 0
      %p184 = por %p182, %p183
      %s185 = ssub.s32 %s32, %s39
      %p186 = scmp.eq.s32.totalorder %s185, 0
      %s188 = sadd.s32 %s187, 1
      %s189 = scalar_select %p186, %s187, %s188
      %p192 = pneg %p186
      %p193 = scmp.eq.s32.totalorder %s24, 3
      %p194 = por %p192, %p193
      %p195 = scmp.ne.s32.totalorder %s187, %s190
      %p196 = scmp.eq.s32.totalorder %s24, 0
      %p197 = por %p195, %p196
      %p198 = scmp.ne.s32.totalorder %s187, %s190
      %p199 = scmp.eq.s32.totalorder %s29, 3
      %p200 = por %p198, %p199
      %p201 = scmp.ne.s32.totalorder %s190, %s191
      %p202 = scmp.eq.s32.totalorder %s29, 0
      %p203 = por %p201, %p202
      %p204 = scmp.ne.s32.totalorder %s190, %s191
      %p205 = scmp.eq.s32.totalorder %s30, 3
      %p206 = por %p204, %p205
      %p208 = scmp.ne.s32.totalorder %s191, %s207
      %p209 = scmp.eq.s32.totalorder %s30, 0
      %p210 = por %p208, %p209
      %s211 = ssub.s32 %s32, %s39
      %p212 = scmp.eq.s32.totalorder %s211, 0
      %s214 = sadd.s32 %s213, 1
      %s215 = scalar_select %p212, %s213, %s214
      %p218 = pneg %p212
      %p219 = scmp.eq.s32.totalorder %s24, 3
      %p220 = por %p218, %p219
      %p221 = scmp.ne.s32.totalorder %s213, %s216
      %p222 = scmp.eq.s32.totalorder %s24, 0
      %p223 = por %p221, %p222
      %p224 = scmp.ne.s32.totalorder %s213, %s216
      %p225 = scmp.eq.s32.totalorder %s29, 3
      %p226 = por %p224, %p225
      %p227 = scmp.ne.s32.totalorder %s216, %s217
      %p228 = scmp.eq.s32.totalorder %s29, 0
      %p229 = por %p227, %p228
      %p230 = scmp.ne.s32.totalorder %s216, %s217
      %p231 = scmp.eq.s32.totalorder %s30, 3
      %p232 = por %p230, %p231
      %p234 = scmp.ne.s32.totalorder %s217, %s233
      %p235 = scmp.eq.s32.totalorder %s30, 0
      %p236 = por %p234, %p235
      %s237 = ssub.s32 %s32, %s39
      %p238 = scmp.eq.s32.totalorder %s237, 0
      %s240 = sadd.s32 %s239, 1
      %s241 = scalar_select %p238, %s239, %s240
      %p244 = pneg %p238
      %p245 = scmp.eq.s32.totalorder %s24, 3
      %p246 = por %p244, %p245
      %p247 = scmp.ne.s32.totalorder %s239, %s242
      %p248 = scmp.eq.s32.totalorder %s24, 0
      %p249 = por %p247, %p248
      %p250 = scmp.ne.s32.totalorder %s239, %s242
      %p251 = scmp.eq.s32.totalorder %s29, 3
      %p252 = por %p250, %p251
      %p253 = scmp.ne.s32.totalorder %s242, %s243
      %p254 = scmp.eq.s32.totalorder %s29, 0
      %p255 = por %p253, %p254
      %p256 = scmp.ne.s32.totalorder %s242, %s243
      %p257 = scmp.eq.s32.totalorder %s30, 3
      %p258 = por %p256, %p257
      %p260 = scmp.ne.s32.totalorder %s243, %s259
      %p261 = scmp.eq.s32.totalorder %s30, 0
      %p262 = por %p260, %p261
      %s263 = ssub.s32 %s32, %s39
      %p264 = scmp.eq.s32.totalorder %s263, 0
      %s266 = sadd.s32 %s265, 1
      %s267 = scalar_select %p264, %s265, %s266
      %p270 = pneg %p264
      %p271 = scmp.eq.s32.totalorder %s24, 3
      %p272 = por %p270, %p271
      %p273 = scmp.ne.s32.totalorder %s265, %s268
      %p274 = scmp.eq.s32.totalorder %s24, 0
      %p275 = por %p273, %p274
      %p276 = scmp.ne.s32.totalorder %s265, %s268
      %p277 = scmp.eq.s32.totalorder %s29, 3
      %p278 = por %p276, %p277
      %p279 = scmp.ne.s32.totalorder %s268, %s269
      %p280 = scmp.eq.s32.totalorder %s29, 0
      %p281 = por %p279, %p280
      %p282 = scmp.ne.s32.totalorder %s268, %s269
      %p283 = scmp.eq.s32.totalorder %s30, 3
      %p284 = por %p282, %p283
      %p286 = scmp.ne.s32.totalorder %s269, %s285
      %p287 = scmp.eq.s32.totalorder %s30, 0
      %p288 = por %p286, %p287
      %s289 = ssub.s32 %s32, %s39
      %p290 = scmp.eq.s32.totalorder %s289, 0
      %s292 = sadd.s32 %s291, 1
      %s293 = scalar_select %p290, %s291, %s292
      %p296 = pneg %p290
      %p297 = scmp.eq.s32.totalorder %s24, 3
      %p298 = por %p296, %p297
      %p299 = scmp.ne.s32.totalorder %s291, %s294
      %p300 = scmp.eq.s32.totalorder %s24, 0
      %p301 = por %p299, %p300
      %p302 = scmp.ne.s32.totalorder %s291, %s294
      %p303 = scmp.eq.s32.totalorder %s29, 3
      %p304 = por %p302, %p303
      %p305 = scmp.ne.s32.totalorder %s294, %s295
      %p306 = scmp.eq.s32.totalorder %s29, 0
      %p307 = por %p305, %p306
      %p308 = scmp.ne.s32.totalorder %s294, %s295
      %p309 = scmp.eq.s32.totalorder %s30, 3
      %p310 = por %p308, %p309
      %p312 = scmp.ne.s32.totalorder %s295, %s311
      %p313 = scmp.eq.s32.totalorder %s30, 0
      %p314 = por %p312, %p313
      %s315 = ssub.s32 %s32, %s39
      %p316 = scmp.eq.s32.totalorder %s315, 0
      %s318 = sadd.s32 %s317, 1
      %s319 = scalar_select %p316, %s317, %s318
      %p322 = pneg %p316
      %p323 = scmp.eq.s32.totalorder %s24, 3
      %p324 = por %p322, %p323
      %p325 = scmp.ne.s32.totalorder %s317, %s320
      %p326 = scmp.eq.s32.totalorder %s24, 0
      %p327 = por %p325, %p326
      %p328 = scmp.ne.s32.totalorder %s317, %s320
      %p329 = scmp.eq.s32.totalorder %s29, 3
      %p330 = por %p328, %p329
      %p331 = scmp.ne.s32.totalorder %s320, %s321
      %p332 = scmp.eq.s32.totalorder %s29, 0
      %p333 = por %p331, %p332
      %p334 = scmp.ne.s32.totalorder %s320, %s321
      %p335 = scmp.eq.s32.totalorder %s30, 3
      %p336 = por %p334, %p335
      %p338 = scmp.ne.s32.totalorder %s321, %s337
      %p339 = scmp.eq.s32.totalorder %s30, 0
      %p340 = por %p338, %p339
      %s341 = ssub.s32 %s32, %s39
      %p342 = scmp.eq.s32.totalorder %s341, 0
      %s344 = sadd.s32 %s343, 1
      %s345 = scalar_select %p342, %s343, %s344
      %p348 = pneg %p342
      %p349 = scmp.eq.s32.totalorder %s24, 3
      %p350 = por %p348, %p349
      %p351 = scmp.ne.s32.totalorder %s343, %s346
      %p352 = scmp.eq.s32.totalorder %s24, 0
      %p353 = por %p351, %p352
      %p354 = scmp.ne.s32.totalorder %s343, %s346
      %p355 = scmp.eq.s32.totalorder %s29, 3
      %p356 = por %p354, %p355
      %p357 = scmp.ne.s32.totalorder %s346, %s347
      %p358 = scmp.eq.s32.totalorder %s29, 0
      %p359 = por %p357, %p358
      %p360 = scmp.ne.s32.totalorder %s346, %s347
      %p361 = scmp.eq.s32.totalorder %s30, 3
      %p362 = por %p360, %p361
      %p364 = scmp.ne.s32.totalorder %s347, %s363
      %p365 = scmp.eq.s32.totalorder %s30, 0
      %p366 = por %p364, %p365
      %s367 = ssub.s32 %s32, %s39
      %p368 = scmp.eq.s32.totalorder %s367, 0
      %s370 = sadd.s32 %s369, 1
      %s371 = scalar_select %p368, %s369, %s370
      %p374 = pneg %p368
      %p375 = scmp.eq.s32.totalorder %s24, 3
      %p376 = por %p374, %p375
      %p377 = scmp.ne.s32.totalorder %s369, %s372
      %p378 = scmp.eq.s32.totalorder %s24, 0
      %p379 = por %p377, %p378
      %p380 = scmp.ne.s32.totalorder %s369, %s372
      %p381 = scmp.eq.s32.totalorder %s29, 3
      %p382 = por %p380, %p381
      %p383 = scmp.ne.s32.totalorder %s372, %s373
      %p384 = scmp.eq.s32.totalorder %s29, 0
      %p385 = por %p383, %p384
      %p386 = scmp.ne.s32.totalorder %s372, %s373
      %p387 = scmp.eq.s32.totalorder %s30, 3
      %p388 = por %p386, %p387
      %p390 = scmp.ne.s32.totalorder %s373, %s389
      %p391 = scmp.eq.s32.totalorder %s30, 0
      %p392 = por %p390, %p391
      %s393 = ssub.s32 %s32, %s39
      %p394 = scmp.eq.s32.totalorder %s393, 0
      %s396 = sadd.s32 %s395, 1
      %s397 = scalar_select %p394, %s395, %s396
      %p400 = pneg %p394
      %p401 = scmp.eq.s32.totalorder %s24, 3
      %p402 = por %p400, %p401
      %p403 = scmp.ne.s32.totalorder %s395, %s398
      %p404 = scmp.eq.s32.totalorder %s24, 0
      %p405 = por %p403, %p404
      %p406 = scmp.ne.s32.totalorder %s395, %s398
      %p407 = scmp.eq.s32.totalorder %s29, 3
      %p408 = por %p406, %p407
      %p409 = scmp.ne.s32.totalorder %s398, %s399
      %p410 = scmp.eq.s32.totalorder %s29, 0
      %p411 = por %p409, %p410
      %p412 = scmp.ne.s32.totalorder %s398, %s399
      %p413 = scmp.eq.s32.totalorder %s30, 3
      %p414 = por %p412, %p413
      %p416 = scmp.ne.s32.totalorder %s399, %s415
      %p417 = scmp.eq.s32.totalorder %s30, 0
      %p418 = por %p416, %p417
      %s419 = ssub.s32 %s32, %s39
      %p420 = scmp.eq.s32.totalorder %s419, 0
      %s422 = sadd.s32 %s421, 1
      %s423 = scalar_select %p420, %s421, %s422
      %p426 = pneg %p420
      %p427 = scmp.eq.s32.totalorder %s24, 3
      %p428 = por %p426, %p427
      %p429 = scmp.ne.s32.totalorder %s421, %s424
      %p430 = scmp.eq.s32.totalorder %s24, 0
      %p431 = por %p429, %p430
      %p432 = scmp.ne.s32.totalorder %s421, %s424
      %p433 = scmp.eq.s32.totalorder %s29, 3
      %p434 = por %p432, %p433
      %p435 = scmp.ne.s32.totalorder %s424, %s425
      %p436 = scmp.eq.s32.totalorder %s29, 0
      %p437 = por %p435, %p436
      %p438 = scmp.ne.s32.totalorder %s424, %s425
      %p439 = scmp.eq.s32.totalorder %s30, 3
      %p440 = por %p438, %p439
      %p442 = scmp.ne.s32.totalorder %s425, %s441
      %p443 = scmp.eq.s32.totalorder %s30, 0
      %p444 = por %p442, %p443
      %s445 = ssub.s32 %s31, %s43
      %p446 = scmp.eq.s32.totalorder %s445, 0
      %s448 = sadd.s32 %s447, 1
      %s449 = scalar_select %p446, %s447, %s448
      %p452 = pneg %p446
      %p453 = scmp.eq.s32.totalorder %s24, 3
      %p454 = por %p452, %p453
      %p455 = scmp.ne.s32.totalorder %s447, %s450
      %p456 = scmp.eq.s32.totalorder %s24, 0
      %p457 = por %p455, %p456
      %p458 = scmp.ne.s32.totalorder %s447, %s450
      %p459 = scmp.eq.s32.totalorder %s29, 3
      %p460 = por %p458, %p459
      %p461 = scmp.ne.s32.totalorder %s450, %s451
      %p462 = scmp.eq.s32.totalorder %s29, 0
      %p463 = por %p461, %p462
      %p464 = scmp.ne.s32.totalorder %s450, %s451
      %p465 = scmp.eq.s32.totalorder %s30, 3
      %p466 = por %p464, %p465
      %p468 = scmp.ne.s32.totalorder %s451, %s467
      %p469 = scmp.eq.s32.totalorder %s30, 0
      %p470 = por %p468, %p469
      %p471 = scmp.le.s32.totalorder 1, %s24
      %p472 = scmp.lt.s32.totalorder %s24, 5
      %p473 = pnand %p471, %p472
      %p474 = pneg %p473
      // Predicated region
      $region9: #{transformer_encoder.2} parent=5 // pred_check
        _
      $region10: #{transformer_encoder.2} parent=5 // pred_check_branch
        %476 = sbr.rel (%p473) target = $region12
      $region11: #{transformer_encoder.2} parent=5 // pred_region
        %s477 = ssub.s32 %s24, 1
        // Predicated region
        $region13: #{transformer_encoder.2} parent=11 // pred_check
          %p478 = pneg %p83
        $region14: #{transformer_encoder.2} parent=11 // pred_check_branch
          %480 = sbr.rel (%p478) target = $region16
        $region15: #{transformer_encoder.2} parent=11 // pred_region
          _
        $region16: #{transformer_encoder.2} parent=11 // pred_fallthru
          _
        // Predicated region
        $region17: #{transformer_encoder.2} parent=11 // pred_check
          %p481 = pneg %p104
        $region18: #{transformer_encoder.2} parent=11 // pred_check_branch
          %483 = sbr.rel (%p481) target = $region20
        $region19: #{transformer_encoder.2} parent=11 // pred_region
          %s485 = ssub.s32 16, 16
          %486 = vsyncadd [#allocation3], %s485
          %s488 = sshll.u32 [#allocation2], 4
          %s489 = int_to_ptr.vmem [resolvable:$true] %s488
          %491 = dma.hbm_to_vmem [thread:$0]  %s2, 16, %s489, [#allocation3]
        $region20: #{transformer_encoder.2} parent=11 // pred_fallthru
          _
        // Predicated region
        $region21: #{transformer_encoder.2} parent=11 // pred_check
          %p492 = pneg %p125
        $region22: #{transformer_encoder.2} parent=11 // pred_check_branch
          %494 = sbr.rel (%p492) target = $region24
        $region23: #{transformer_encoder.2} parent=11 // pred_region
          %s496 = ssub.s32 128, 128
          %497 = vsyncadd [#allocation5], %s496
          %s499 = sshll.u32 [#allocation4], 4
          %s500 = int_to_ptr.vmem [resolvable:$true] %s499
          %502 = dma.hbm_to_vmem [thread:$0]  %s3, 128, %s500, [#allocation5]
        $region24: #{transformer_encoder.2} parent=11 // pred_fallthru
          _
      $region12: #{transformer_encoder.2} parent=5 // pred_fallthru
        _
      %p503 = scmp.lt.s32.totalorder %s24, 4
      // Predicated region
      $region25: #{transformer_encoder.2} parent=5 // pred_check
        %p504 = pneg %p503
      $region26: #{transformer_encoder.2} parent=5 // pred_check_branch
        %506 = sbr.rel (%p504) target = $region28
      $region27: #{transformer_encoder.2} parent=5 // pred_region
        // Predicated region
        $region29: #{transformer_encoder.2} parent=27 // pred_check
          %p507 = pneg %p56
        $region30: #{transformer_encoder.2} parent=27 // pred_check_branch
          %509 = sbr.rel (%p507) target = $region32
        $region31: #{transformer_encoder.2} parent=27 // pred_region
          %p510 = scmp.lt.s32.totalorder %s31, 1
          %s511 = scalar_select %p510, %s31, 1
          %s512 = smul.addr %s511, 8
          %s513 = scalar_lea.vmem %s0, %s512
        $region32: #{transformer_encoder.2} parent=27 // pred_fallthru
          _
        // Predicated region
        $region33: #{transformer_encoder.2} parent=27 // pred_check
          %p514 = pneg %p145
        $region34: #{transformer_encoder.2} parent=27 // pred_check_branch
          %516 = sbr.rel (%p514) target = $region36
        $region35: #{transformer_encoder.2} parent=27 // pred_region
          %p517 = scmp.lt.s32.totalorder %s32, 1
          %s518 = scalar_select %p517, %s32, 1
          %s519 = smul.addr %s518, 4
          %s520 = smul.addr %s519, 4
          %s521 = scalar_lea.vmem %s4, %s520
        $region36: #{transformer_encoder.2} parent=27 // pred_fallthru
          _
        // Predicated region
        $region37: #{transformer_encoder.2} parent=27 // pred_check
          %p522 = pneg %p171
        $region38: #{transformer_encoder.2} parent=27 // pred_check_branch
          %524 = sbr.rel (%p522) target = $region40
        $region39: #{transformer_encoder.2} parent=27 // pred_region
          %p525 = scmp.lt.s32.totalorder %s32, 1
          %s526 = scalar_select %p525, %s32, 1
          %s527 = scalar_lea.vmem %s5, %s526
        $region40: #{transformer_encoder.2} parent=27 // pred_fallthru
          _
        // Predicated region
        $region41: #{transformer_encoder.2} parent=27 // pred_check
          %p528 = pneg %p197
        $region42: #{transformer_encoder.2} parent=27 // pred_check_branch
          %530 = sbr.rel (%p528) target = $region44
        $region43: #{transformer_encoder.2} parent=27 // pred_region
          %p531 = scmp.lt.s32.totalorder %s32, 1
          %s532 = scalar_select %p531, %s32, 1
          %s533 = smul.addr %s532, 4
          %s534 = smul.addr %s533, 4
          %s535 = scalar_lea.vmem %s6, %s534
        $region44: #{transformer_encoder.2} parent=27 // pred_fallthru
          _
        // Predicated region
        $region45: #{transformer_encoder.2} parent=27 // pred_check
          %p536 = pneg %p223
        $region46: #{transformer_encoder.2} parent=27 // pred_check_branch
          %538 = sbr.rel (%p536) target = $region48
        $region47: #{transformer_encoder.2} parent=27 // pred_region
          %p539 = scmp.lt.s32.totalorder %s32, 1
          %s540 = scalar_select %p539, %s32, 1
          %s541 = scalar_lea.vmem %s7, %s540
        $region48: #{transformer_encoder.2} parent=27 // pred_fallthru
          _
        // Predicated region
        $region49: #{transformer_encoder.2} parent=27 // pred_check
          %p542 = pneg %p249
        $region50: #{transformer_encoder.2} parent=27 // pred_check_branch
          %544 = sbr.rel (%p542) target = $region52
        $region51: #{transformer_encoder.2} parent=27 // pred_region
          %p545 = scmp.lt.s32.totalorder %s32, 1
          %s546 = scalar_select %p545, %s32, 1
          %s547 = scalar_lea.vmem %s8, %s546
        $region52: #{transformer_encoder.2} parent=27 // pred_fallthru
          _
        // Predicated region
        $region53: #{transformer_encoder.2} parent=27 // pred_check
          %p548 = pneg %p275
        $region54: #{transformer_encoder.2} parent=27 // pred_check_branch
          %550 = sbr.rel (%p548) target = $region56
        $region55: #{transformer_encoder.2} parent=27 // pred_region
          %p551 = scmp.lt.s32.totalorder %s32, 1
          %s552 = scalar_select %p551, %s32, 1
          %s553 = scalar_lea.vmem %s9, %s552
        $region56: #{transformer_encoder.2} parent=27 // pred_fallthru
          _
        // Predicated region
        $region57: #{transformer_encoder.2} parent=27 // pred_check
          %p554 = pneg %p301
        $region58: #{transformer_encoder.2} parent=27 // pred_check_branch
          %556 = sbr.rel (%p554) target = $region60
        $region59: #{transformer_encoder.2} parent=27 // pred_region
          %p557 = scmp.lt.s32.totalorder %s32, 1
          %s558 = scalar_select %p557, %s32, 1
          %s559 = scalar_lea.vmem %s10, %s558
        $region60: #{transformer_encoder.2} parent=27 // pred_fallthru
          _
        // Predicated region
        $region61: #{transformer_encoder.2} parent=27 // pred_check
          %p560 = pneg %p327
        $region62: #{transformer_encoder.2} parent=27 // pred_check_branch
          %562 = sbr.rel (%p560) target = $region64
        $region63: #{transformer_encoder.2} parent=27 // pred_region
          %p563 = scmp.lt.s32.totalorder %s32, 1
          %s564 = scalar_select %p563, %s32, 1
          %s565 = scalar_lea.vmem %s11, %s564
        $region64: #{transformer_encoder.2} parent=27 // pred_fallthru
          _
        // Predicated region
        $region65: #{transformer_encoder.2} parent=27 // pred_check
          %p566 = pneg %p353
        $region66: #{transformer_encoder.2} parent=27 // pred_check_branch
          %568 = sbr.rel (%p566) target = $region68
        $region67: #{transformer_encoder.2} parent=27 // pred_region
          %p569 = scmp.lt.s32.totalorder %s32, 1
          %s570 = scalar_select %p569, %s32, 1
          %s571 = smul.addr %s570, 4
          %s572 = smul.addr %s571, 4
          %s573 = scalar_lea.vmem %s12, %s572
        $region68: #{transformer_encoder.2} parent=27 // pred_fallthru
          _
        // Predicated region
        $region69: #{transformer_encoder.2} parent=27 // pred_check
          %p574 = pneg %p379
        $region70: #{transformer_encoder.2} parent=27 // pred_check_branch
          %576 = sbr.rel (%p574) target = $region72
        $region71: #{transformer_encoder.2} parent=27 // pred_region
          %p577 = scmp.lt.s32.totalorder %s32, 1
          %s578 = scalar_select %p577, %s32, 1
          %s579 = scalar_lea.vmem %s13, %s578
        $region72: #{transformer_encoder.2} parent=27 // pred_fallthru
          _
        // Predicated region
        $region73: #{transformer_encoder.2} parent=27 // pred_check
          %p580 = pneg %p405
        $region74: #{transformer_encoder.2} parent=27 // pred_check_branch
          %582 = sbr.rel (%p580) target = $region76
        $region75: #{transformer_encoder.2} parent=27 // pred_region
          %p583 = scmp.lt.s32.totalorder %s32, 1
          %s584 = scalar_select %p583, %s32, 1
          %s585 = smul.addr %s584, 8
          %s586 = smul.addr %s585, 4
          %s587 = scalar_lea.vmem %s14, %s586
        $region76: #{transformer_encoder.2} parent=27 // pred_fallthru
          _
        // Predicated region
        $region77: #{transformer_encoder.2} parent=27 // pred_check
          %p588 = pneg %p431
        $region78: #{transformer_encoder.2} parent=27 // pred_check_branch
          %590 = sbr.rel (%p588) target = $region80
        $region79: #{transformer_encoder.2} parent=27 // pred_region
          %p591 = scmp.lt.s32.totalorder %s32, 1
          %s592 = scalar_select %p591, %s32, 1
          %s593 = scalar_lea.vmem %s15, %s592
        $region80: #{transformer_encoder.2} parent=27 // pred_fallthru
          _
      $region28: #{transformer_encoder.2} parent=5 // pred_fallthru
        _
      %p594 = scmp.le.s32.totalorder 1, %s24
      %p595 = scmp.lt.s32.totalorder %s24, 5
      %p596 = pnand %p594, %p595
      %p597 = pneg %p596
      // Predicated region
      $region81: #{transformer_encoder.2} parent=5 // pred_check
        _
      $region82: #{transformer_encoder.2} parent=5 // pred_check_branch
        %599 = sbr.rel (%p596) target = $region84
      $region83: #{transformer_encoder.2} parent=5 // pred_region
        %s600 = ssub.s32 %s24, 1
        // Predicated region
        $region85: #{transformer_encoder.2} parent=83 // pred_check
          %p601 = pneg %p104
        $region86: #{transformer_encoder.2} parent=83 // pred_check_branch
          %603 = sbr.rel (%p601) target = $region88
        $region87: #{transformer_encoder.2} parent=83 // pred_region
          %604 = dma.done [#allocation3], 16
        $region88: #{transformer_encoder.2} parent=83 // pred_fallthru
          _
        // Predicated region
        $region89: #{transformer_encoder.2} parent=83 // pred_check
          %p605 = pneg %p125
        $region90: #{transformer_encoder.2} parent=83 // pred_check_branch
          %607 = sbr.rel (%p605) target = $region92
        $region91: #{transformer_encoder.2} parent=83 // pred_region
          %608 = dma.done [#allocation5], 128
        $region92: #{transformer_encoder.2} parent=83 // pred_fallthru
          _
        %p609 = scmp.lt.s32.totalorder %s33, 1
        %s610 = scalar_select %p609, %s33, 1
        %s611 = smul.addr %s610, 8
        %s612 = scalar_lea.vmem %s0, %s611
        %p613 = pneg %p62
        %p614 = pneg %p59
        %p615 = pneg %p83
        %p616 = pneg %p80
        %p617 = pneg %p104
        %p618 = pneg %p101
        %p619 = pneg %p125
        %p620 = pneg %p122
        %p621 = scmp.lt.s32.totalorder %s34, 1
        %s622 = scalar_select %p621, %s34, 1
        %s623 = smul.addr %s622, 4
        %s624 = smul.addr %s623, 4
        %s625 = scalar_lea.vmem %s4, %s624
        %p626 = pneg %p151
        %p627 = pneg %p148
        %p628 = scmp.lt.s32.totalorder %s34, 1
        %s629 = scalar_select %p628, %s34, 1
        %s630 = scalar_lea.vmem %s5, %s629
        %p631 = pneg %p177
        %p632 = pneg %p174
        %p633 = scmp.lt.s32.totalorder %s34, 1
        %s634 = scalar_select %p633, %s34, 1
        %s635 = smul.addr %s634, 4
        %s636 = smul.addr %s635, 4
        %s637 = scalar_lea.vmem %s6, %s636
        %p638 = pneg %p203
        %p639 = pneg %p200
        %p640 = scmp.lt.s32.totalorder %s34, 1
        %s641 = scalar_select %p640, %s34, 1
        %s642 = scalar_lea.vmem %s7, %s641
        %p643 = pneg %p229
        %p644 = pneg %p226
        %p645 = scmp.lt.s32.totalorder %s34, 1
        %s646 = scalar_select %p645, %s34, 1
        %s647 = scalar_lea.vmem %s8, %s646
        %p648 = pneg %p255
        %p649 = pneg %p252
        %p650 = scmp.lt.s32.totalorder %s34, 1
        %s651 = scalar_select %p650, %s34, 1
        %s652 = scalar_lea.vmem %s9, %s651
        %p653 = pneg %p281
        %p654 = pneg %p278
        %p655 = scmp.lt.s32.totalorder %s34, 1
        %s656 = scalar_select %p655, %s34, 1
        %s657 = scalar_lea.vmem %s10, %s656
        %p658 = pneg %p307
        %p659 = pneg %p304
        %p660 = scmp.lt.s32.totalorder %s34, 1
        %s661 = scalar_select %p660, %s34, 1
        %s662 = scalar_lea.vmem %s11, %s661
        %p663 = pneg %p333
        %p664 = pneg %p330
        %p665 = scmp.lt.s32.totalorder %s34, 1
        %s666 = scalar_select %p665, %s34, 1
        %s667 = smul.addr %s666, 4
        %s668 = smul.addr %s667, 4
        %s669 = scalar_lea.vmem %s12, %s668
        %p670 = pneg %p359
        %p671 = pneg %p356
        %p672 = scmp.lt.s32.totalorder %s34, 1
        %s673 = scalar_select %p672, %s34, 1
        %s674 = scalar_lea.vmem %s13, %s673
        %p675 = pneg %p385
        %p676 = pneg %p382
        %p677 = scmp.lt.s32.totalorder %s34, 1
        %s678 = scalar_select %p677, %s34, 1
        %s679 = smul.addr %s678, 8
        %s680 = smul.addr %s679, 4
        %s681 = scalar_lea.vmem %s14, %s680
        %p682 = pneg %p411
        %p683 = pneg %p408
        %p684 = scmp.lt.s32.totalorder %s34, 1
        %s685 = scalar_select %p684, %s34, 1
        %s686 = scalar_lea.vmem %s15, %s685
        %p687 = pneg %p437
        %p688 = pneg %p434
        %p689 = pneg %p463
        %p690 = pneg %p460
        %p691 = scmp.lt.s32.totalorder %s33, 1
        %s692 = scalar_select %p691, %s33, 1
        %s693 = smul.addr %s692, 8
        %s694 = scalar_lea.vmem %s16, %s693
        %p695 = scmp.lt.s32.totalorder %s33, 1
        %s696 = scalar_select %p695, %s33, 1
        %s697 = smul.addr %s696, 8
        %s698 = scalar_lea.vmem %s0, %s697
        %p699 = scmp.lt.s32.totalorder %s34, 1
        %s700 = scalar_select %p699, %s34, 1
        %s701 = smul.addr %s700, 4
        %s702 = smul.addr %s701, 4
        %s703 = scalar_lea.vmem %s4, %s702
        %p704 = scmp.lt.s32.totalorder %s34, 1
        %s705 = scalar_select %p704, %s34, 1
        %s706 = scalar_lea.vmem %s5, %s705
        %p707 = scmp.lt.s32.totalorder %s34, 1
        %s708 = scalar_select %p707, %s34, 1
        %s709 = smul.addr %s708, 4
        %s710 = smul.addr %s709, 4
        %s711 = scalar_lea.vmem %s6, %s710
        %p712 = scmp.lt.s32.totalorder %s34, 1
        %s713 = scalar_select %p712, %s34, 1
        %s714 = scalar_lea.vmem %s7, %s713
        %p715 = scmp.lt.s32.totalorder %s34, 1
        %s716 = scalar_select %p715, %s34, 1
        %s717 = scalar_lea.vmem %s8, %s716
        %p718 = scmp.lt.s32.totalorder %s34, 1
        %s719 = scalar_select %p718, %s34, 1
        %s720 = scalar_lea.vmem %s9, %s719
        %p721 = scmp.lt.s32.totalorder %s34, 1
        %s722 = scalar_select %p721, %s34, 1
        %s723 = scalar_lea.vmem %s10, %s722
        %p724 = scmp.lt.s32.totalorder %s34, 1
        %s725 = scalar_select %p724, %s34, 1
        %s726 = scalar_lea.vmem %s11, %s725
        %p727 = scmp.lt.s32.totalorder %s34, 1
        %s728 = scalar_select %p727, %s34, 1
        %s729 = smul.addr %s728, 4
        %s730 = smul.addr %s729, 4
        %s731 = scalar_lea.vmem %s12, %s730
        %p732 = scmp.lt.s32.totalorder %s34, 1
        %s733 = scalar_select %p732, %s34, 1
        %s734 = scalar_lea.vmem %s13, %s733
        %p735 = scmp.lt.s32.totalorder %s34, 1
        %s736 = scalar_select %p735, %s34, 1
        %s737 = smul.addr %s736, 8
        %s738 = smul.addr %s737, 4
        %s739 = scalar_lea.vmem %s14, %s738
        %p740 = scmp.lt.s32.totalorder %s34, 1
        %s741 = scalar_select %p740, %s34, 1
        %s742 = scalar_lea.vmem %s15, %s741
        %p743 = scmp.lt.s32.totalorder %s33, 1
        %s744 = scalar_select %p743, %s33, 1
        %s745 = smul.addr %s744, 8
        %s746 = scalar_lea.vmem %s16, %s745
        %p748 = scmp.eq.s32.totalorder %s34, 0
        // Predicated region
        $region93: #{transformer_encoder.2} parent=83 // pred_check
          %p749 = pneg %p748
        $region94: #{transformer_encoder.2} parent=83 // pred_check_branch
          %751 = sbr.rel (%p749) target = $region96
        $region95: #{transformer_encoder.2} parent=83 // pred_region
          %v752 = vld [vmem:[%s698] sm:$0xff]
          %v753 = vpack.c.bf16 %v752, %v752
          %v754 = vld [vmem:[%s1] sm:$0xf]
          %v755 = vld [vmem:[%s1 + $0x4] sm:$0xf]
          %v756 = vld [vmem:[%s1 + $0x8] sm:$0xf]
          %v757 = vld [vmem:[%s1 + $0xc] sm:$0xf]
          %v758 = vld [vmem:[%s1 + $0x10] sm:$0xf]
          %v759 = vld [vmem:[%s1 + $0x14] sm:$0xf]
          %v760 = vld [vmem:[%s1 + $0x18] sm:$0x1]
          %v761 = vld [vmem:[#allocation2] sm:$0x1]
          %v763 = vlaneseq
          %v764 = vshrl.u32 %v763, 7
          %v765 = vsub.s32 0, %v764
          %v766 = vrot.slane %v761, %v765
          %v775 = vunpack.c.l.b16 %v754
          %v776 = vunpack.c.l.b16 %v755
          %v777 = vunpack.c.l.b16 %v756
          %v778 = vunpack.c.l.b16 %v757
          %v779 = vunpack.c.l.b16 %v758
          %v780 = vunpack.c.l.b16 %v759
          %v781 = vunpack.c.l.b16 %v760
          %v782 = vpack.c.b16 %v776, %v775
          %v783 = vpack.c.b16 %v778, %v777
          %v784 = vpack.c.b16 %v780, %v779
          %v785 = vpack.c.b16 %v781, %v781
          %vm789 = vcmask 408576
          %v791 = vsel %vm789, %v753, 0
          %vm793 = vcmask 1040384
          %v795 = vsel %vm793, %v785, 0
          %797 = vmatprep.subr.bf16.mxu0 0
          %798 = vmatpush1.bf16.msra.mxu0 0
          %799 = vmatprep.subr.bf16.mxu0 0
          %800 = vmatpush1.bf16.msra.mxu0 0
          %801 = vmatprep.subr.bf16.mxu0 0
          %802 = vmatpush1.bf16.msra.mxu0 0
          %803 = vmatprep.subr.bf16.mxu0 0
          %804 = vmatpush1.bf16.msra.mxu0 0
          %805 = vmatprep.subr.bf16.mxu0 0
          %806 = vmatpush1.bf16.msra.mxu0 %v795
          %807 = vmatprep.subr.bf16.mxu0 0
          %808 = vmatpush1.bf16.msra.mxu0 %v784
          %809 = vmatprep.subr.bf16.mxu0 0
          %810 = vmatpush1.bf16.msra.mxu0 %v783
          %811 = vmatprep.subr.bf16.mxu0 0
          %812 = vmatpush1.bf16.msra.mxu0 %v782
          %813 = vmatprep.subr.bf16.mxu0 0
          %814 = vmatpush2.bf16.msra.mxu0 0
          %815 = vmatprep.subr.bf16.mxu0 0
          %816 = vmatpush2.bf16.msra.mxu0 0
          %817 = vmatprep.subr.bf16.mxu0 0
          %818 = vmatpush2.bf16.msra.mxu0 0
          %819 = vmatprep.subr.bf16.mxu0 0
          %820 = vmatpush2.bf16.msra.mxu0 0
          %821 = vmatprep.subr.bf16.mxu0 0
          %822 = vmatpush2.bf16.msra.mxu0 0
          %823 = vmatprep.subr.bf16.mxu0 0
          %824 = vmatpush2.bf16.msra.mxu0 0
          %825 = vmatprep.subr.bf16.mxu0 0
          %826 = vmatpush2.bf16.msra.mxu0 0
          %827 = vmatprep.subr.bf16.mxu0 0
          %828 = vmatpush2.bf16.msra.mxu0 0
          %829 = vmatprep.mubr.bf16.mxu0 0
          %830 = vmatmul.mubr.bf16.gmra.mxu0 %v791
          %v831 = vpop.f32.mrf.mxu0
          %v832 = vadd.f32 %v766, %v831
          %v833 = vpop.f32.mrf.mxu0
          %v834 = vpop.f32.mrf.mxu0
          %v835 = vpop.f32.mrf.mxu0
          %836 = vdwg.mxu0
          %v837 = vld [vmem:[#allocation4] sm:$0xff]
          %v838 = vadd.f32 %v832, %v837
          %vm839 = vcmask 261120
          %840 = vst.msk [vmem:[%s746] sm:$0xff] %vm839, %v838
        $region96: #{transformer_encoder.2} parent=83 // pred_fallthru
          _
        %v841 = vld [vmem:[%s746] sm:$0xff]
        %v842 = vpack.c.bf16 %v841, %v841
        %v843 = vld [vmem:[%s703] sm:$0xf]
        %v844 = vld [vmem:[%s703 + $0x4] sm:$0xf]
        %v845 = vld [vmem:[%s703 + $0x8] sm:$0xf]
        %v846 = vld [vmem:[%s703 + $0xc] sm:$0xf]
        %v847 = vld [vmem:[%s706] sm:$0x1]
        %v849 = vlaneseq
        %v850 = vshrl.u32 %v849, 7
        %v851 = vsub.s32 0, %v850
        %v852 = vrot.slane %v847, %v851
        %v858 = vunpack.c.l.b16 %v843
        %v859 = vunpack.c.l.b16 %v844
        %v860 = vunpack.c.l.b16 %v845
        %v861 = vunpack.c.l.b16 %v846
        %v862 = vpack.c.b16 %v859, %v858
        %v863 = vpack.c.b16 %v861, %v860
        %vm866 = vcmask 261120
        %v868 = vsel %vm866, %v842, 0
        %870 = vmatprep.subr.bf16.mxu0 0
        %871 = vmatpush1.bf16.msra.mxu0 0
        %872 = vmatprep.subr.bf16.mxu0 0
        %873 = vmatpush1.bf16.msra.mxu0 0
        %874 = vmatprep.subr.bf16.mxu0 0
        %875 = vmatpush1.bf16.msra.mxu0 0
        %876 = vmatprep.subr.bf16.mxu0 0
        %877 = vmatpush1.bf16.msra.mxu0 0
        %878 = vmatprep.subr.bf16.mxu0 0
        %879 = vmatpush1.bf16.msra.mxu0 0
        %880 = vmatprep.subr.bf16.mxu0 0
        %881 = vmatpush1.bf16.msra.mxu0 0
        %882 = vmatprep.subr.bf16.mxu0 0
        %883 = vmatpush1.bf16.msra.mxu0 %v863
        %884 = vmatprep.subr.bf16.mxu0 0
        %885 = vmatpush1.bf16.msra.mxu0 %v862
        %886 = vmatprep.subr.bf16.mxu0 0
        %887 = vmatpush2.bf16.msra.mxu0 0
        %888 = vmatprep.subr.bf16.mxu0 0
        %889 = vmatpush2.bf16.msra.mxu0 0
        %890 = vmatprep.subr.bf16.mxu0 0
        %891 = vmatpush2.bf16.msra.mxu0 0
        %892 = vmatprep.subr.bf16.mxu0 0
        %893 = vmatpush2.bf16.msra.mxu0 0
        %894 = vmatprep.subr.bf16.mxu0 0
        %895 = vmatpush2.bf16.msra.mxu0 0
        %896 = vmatprep.subr.bf16.mxu0 0
        %897 = vmatpush2.bf16.msra.mxu0 0
        %898 = vmatprep.subr.bf16.mxu0 0
        %899 = vmatpush2.bf16.msra.mxu0 0
        %900 = vmatprep.subr.bf16.mxu0 0
        %901 = vmatpush2.bf16.msra.mxu0 0
        %902 = vmatprep.mubr.bf16.mxu0 0
        %903 = vmatmul.mubr.bf16.gmra.mxu0 %v868
        %v904 = vpop.f32.mrf.mxu0
        %v905 = vadd.f32 %v852, %v904
        %v906 = vpop.f32.mrf.mxu0
        %v907 = vpop.f32.mrf.mxu0
        %v908 = vpop.f32.mrf.mxu0
        %909 = vdwg.mxu0
        %v910 = vmul.f32 %v905, 0.35355338
        %v911 = vpack.c.bf16 %v910, %v910
        %v912 = vpack.c.bf16 %v905, %v905
        %914 = vrot.lane.b32.xlu0 %v912, 96
        %v915 = vpop.permute.xlu0 %914
        %vm916 = vcmask 64512
        %v918 = vsel %vm916, %v911, 0
        %v921 = vsel %vm916, %v915, 0
        %923 = vmatprep.subr.bf16.mxu0 0
        %924 = vmatpush1.bf16.xpose.msra.mxu0 0
        %925 = vmatprep.subr.bf16.mxu0 0
        %926 = vmatpush1.bf16.xpose.msra.mxu0 0
        %927 = vmatprep.subr.bf16.mxu0 0
        %928 = vmatpush1.bf16.xpose.msra.mxu0 0
        %929 = vmatprep.subr.bf16.mxu0 0
        %930 = vmatpush1.bf16.xpose.msra.mxu0 0
        %931 = vmatprep.subr.bf16.mxu0 0
        %932 = vmatpush1.bf16.xpose.msra.mxu0 0
        %933 = vmatprep.subr.bf16.mxu0 0
        %934 = vmatpush1.bf16.xpose.msra.mxu0 0
        %935 = vmatprep.subr.bf16.mxu0 0
        %936 = vmatpush1.bf16.xpose.msra.mxu0 0
        %937 = vmatprep.subr.bf16.mxu0 0
        %938 = vmatpush1.bf16.xpose.msra.mxu0 %v921
        %939 = vmatprep.subr.bf16.mxu0 0
        %940 = vmatpush2.bf16.xpose.msra.mxu0 0
        %941 = vmatprep.subr.bf16.mxu0 0
        %942 = vmatpush2.bf16.xpose.msra.mxu0 0
        %943 = vmatprep.subr.bf16.mxu0 0
        %944 = vmatpush2.bf16.xpose.msra.mxu0 0
        %945 = vmatprep.subr.bf16.mxu0 0
        %946 = vmatpush2.bf16.xpose.msra.mxu0 0
        %947 = vmatprep.subr.bf16.mxu0 0
        %948 = vmatpush2.bf16.xpose.msra.mxu0 0
        %949 = vmatprep.subr.bf16.mxu0 0
        %950 = vmatpush2.bf16.xpose.msra.mxu0 0
        %951 = vmatprep.subr.bf16.mxu0 0
        %952 = vmatpush2.bf16.xpose.msra.mxu0 0
        %953 = vmatprep.subr.bf16.mxu0 0
        %954 = vmatpush2.bf16.xpose.msra.mxu0 0
        %955 = vmatprep.mubr.bf16.mxu0 0
        %956 = vmatmul.mubr.bf16.gmra.mxu0 %v918
        %v957 = vpop.f32.mrf.mxu0
        %v958 = vadd.f32 0.0, %v957
        %v959 = vpop.f32.mrf.mxu0
        %v960 = vpop.f32.mrf.mxu0
        %v961 = vpop.f32.mrf.mxu0
        %962 = vdwg.mxu0
        %v963 = vsel %vm916, %v958, -inf
        %964 = vmax.xlane.f32.xlu0 %v963
        %v965 = vpop.xlane.xlu0 %964
        %v966 = vsub.f32 %v958, %v965
        %v967 = vmul.f32 %v966, 1.442695
        %v968 = vpow.pop %v967
        %v969 = vsel %vm916, %v968, 0.0
        %970 = vadd.xlane.f32.xlu0 %v969
        %v971 = vpop.xlane.xlu0 %970
        %v972 = vrcp.pop %v971
        %v973 = vmul.f32 %v968, %v972
        %v974 = vpack.c.bf16 %v973, %v973
        %975 = vrot.lane.b32.xlu0 %v912, 64
        %v976 = vpop.permute.xlu0 %975
        %v978 = vsel %vm916, %v974, 0
        %vm980 = vcmask 1043456
        %v982 = vsel %vm980, %v976, 0
        %984 = vmatprep.subr.bf16.mxu0 0
        %985 = vmatpush1.bf16.msra.mxu0 0
        %986 = vmatprep.subr.bf16.mxu0 0
        %987 = vmatpush1.bf16.msra.mxu0 0
        %988 = vmatprep.subr.bf16.mxu0 0
        %989 = vmatpush1.bf16.msra.mxu0 0
        %990 = vmatprep.subr.bf16.mxu0 0
        %991 = vmatpush1.bf16.msra.mxu0 0
        %992 = vmatprep.subr.bf16.mxu0 0
        %993 = vmatpush1.bf16.msra.mxu0 0
        %994 = vmatprep.subr.bf16.mxu0 0
        %995 = vmatpush1.bf16.msra.mxu0 0
        %996 = vmatprep.subr.bf16.mxu0 0
        %997 = vmatpush1.bf16.msra.mxu0 0
        %998 = vmatprep.subr.bf16.mxu0 0
        %999 = vmatpush1.bf16.msra.mxu0 %v982
        %1000 = vmatprep.subr.bf16.mxu0 0
        %1001 = vmatpush2.bf16.msra.mxu0 0
        %1002 = vmatprep.subr.bf16.mxu0 0
        %1003 = vmatpush2.bf16.msra.mxu0 0
        %1004 = vmatprep.subr.bf16.mxu0 0
        %1005 = vmatpush2.bf16.msra.mxu0 0
        %1006 = vmatprep.subr.bf16.mxu0 0
        %1007 = vmatpush2.bf16.msra.mxu0 0
        %1008 = vmatprep.subr.bf16.mxu0 0
        %1009 = vmatpush2.bf16.msra.mxu0 0
        %1010 = vmatprep.subr.bf16.mxu0 0
        %1011 = vmatpush2.bf16.msra.mxu0 0
        %1012 = vmatprep.subr.bf16.mxu0 0
        %1013 = vmatpush2.bf16.msra.mxu0 0
        %1014 = vmatprep.subr.bf16.mxu0 0
        %1015 = vmatpush2.bf16.msra.mxu0 0
        %1016 = vmatprep.mubr.bf16.mxu0 0
        %1017 = vmatmul.mubr.bf16.gmra.mxu0 %v978
        %v1018 = vpop.f32.mrf.mxu0
        %v1019 = vadd.f32 0.0, %v1018
        %v1020 = vpop.f32.mrf.mxu0
        %v1021 = vpop.f32.mrf.mxu0
        %v1022 = vpop.f32.mrf.mxu0
        %1023 = vdwg.mxu0
        %1025 = vrot.lane.b32.xlu0 %v911, 120
        %v1026 = vpop.permute.xlu0 %1025
        %1027 = vrot.lane.b32.xlu0 %v912, 88
        %v1028 = vpop.permute.xlu0 %1027
        %v1030 = vsel %vm916, %v1026, 0
        %v1033 = vsel %vm916, %v1028, 0
        %1035 = vmatprep.subr.bf16.mxu0 0
        %1036 = vmatpush1.bf16.xpose.msra.mxu0 0
        %1037 = vmatprep.subr.bf16.mxu0 0
        %1038 = vmatpush1.bf16.xpose.msra.mxu0 0
        %1039 = vmatprep.subr.bf16.mxu0 0
        %1040 = vmatpush1.bf16.xpose.msra.mxu0 0
        %1041 = vmatprep.subr.bf16.mxu0 0
        %1042 = vmatpush1.bf16.xpose.msra.mxu0 0
        %1043 = vmatprep.subr.bf16.mxu0 0
        %1044 = vmatpush1.bf16.xpose.msra.mxu0 0
        %1045 = vmatprep.subr.bf16.mxu0 0
        %1046 = vmatpush1.bf16.xpose.msra.mxu0 0
        %1047 = vmatprep.subr.bf16.mxu0 0
        %1048 = vmatpush1.bf16.xpose.msra.mxu0 0
        %1049 = vmatprep.subr.bf16.mxu0 0
        %1050 = vmatpush1.bf16.xpose.msra.mxu0 %v1033
        %1051 = vmatprep.subr.bf16.mxu0 0
        %1052 = vmatpush2.bf16.xpose.msra.mxu0 0
        %1053 = vmatprep.subr.bf16.mxu0 0
        %1054 = vmatpush2.bf16.xpose.msra.mxu0 0
        %1055 = vmatprep.subr.bf16.mxu0 0
        %1056 = vmatpush2.bf16.xpose.msra.mxu0 0
        %1057 = vmatprep.subr.bf16.mxu0 0
        %1058 = vmatpush2.bf16.xpose.msra.mxu0 0
        %1059 = vmatprep.subr.bf16.mxu0 0
        %1060 = vmatpush2.bf16.xpose.msra.mxu0 0
        %1061 = vmatprep.subr.bf16.mxu0 0
        %1062 = vmatpush2.bf16.xpose.msra.mxu0 0
        %1063 = vmatprep.subr.bf16.mxu0 0
        %1064 = vmatpush2.bf16.xpose.msra.mxu0 0
        %1065 = vmatprep.subr.bf16.mxu0 0
        %1066 = vmatpush2.bf16.xpose.msra.mxu0 0
        %1067 = vmatprep.mubr.bf16.mxu0 0
        %1068 = vmatmul.mubr.bf16.gmra.mxu0 %v1030
        %v1069 = vpop.f32.mrf.mxu0
        %v1070 = vadd.f32 0.0, %v1069
        %v1071 = vpop.f32.mrf.mxu0
        %v1072 = vpop.f32.mrf.mxu0
        %v1073 = vpop.f32.mrf.mxu0
        %1074 = vdwg.mxu0
        %v1075 = vsel %vm916, %v1070, -inf
        %1076 = vmax.xlane.f32.xlu0 %v1075
        %v1077 = vpop.xlane.xlu0 %1076
        %v1078 = vsub.f32 %v1070, %v1077
        %v1079 = vmul.f32 %v1078, 1.442695
        %v1080 = vpow.pop %v1079
        %v1081 = vsel %vm916, %v1080, 0.0
        %1082 = vadd.xlane.f32.xlu0 %v1081
        %v1083 = vpop.xlane.xlu0 %1082
        %v1084 = vrcp.pop %v1083
        %v1085 = vmul.f32 %v1080, %v1084
        %v1086 = vpack.c.bf16 %v1085, %v1085
        %1087 = vrot.lane.b32.xlu0 %v912, 56
        %v1088 = vpop.permute.xlu0 %1087
        %v1090 = vsel %vm916, %v1086, 0
        %v1093 = vsel %vm980, %v1088, 0
        %1095 = vmatprep.subr.bf16.mxu0 0
        %1096 = vmatpush1.bf16.msra.mxu0 0
        %1097 = vmatprep.subr.bf16.mxu0 0
        %1098 = vmatpush1.bf16.msra.mxu0 0
        %1099 = vmatprep.subr.bf16.mxu0 0
        %1100 = vmatpush1.bf16.msra.mxu0 0
        %1101 = vmatprep.subr.bf16.mxu0 0
        %1102 = vmatpush1.bf16.msra.mxu0 0
        %1103 = vmatprep.subr.bf16.mxu0 0
        %1104 = vmatpush1.bf16.msra.mxu0 0
        %1105 = vmatprep.subr.bf16.mxu0 0
        %1106 = vmatpush1.bf16.msra.mxu0 0
        %1107 = vmatprep.subr.bf16.mxu0 0
        %1108 = vmatpush1.bf16.msra.mxu0 0
        %1109 = vmatprep.subr.bf16.mxu0 0
        %1110 = vmatpush1.bf16.msra.mxu0 %v1093
        %1111 = vmatprep.subr.bf16.mxu0 0
        %1112 = vmatpush2.bf16.msra.mxu0 0
        %1113 = vmatprep.subr.bf16.mxu0 0
        %1114 = vmatpush2.bf16.msra.mxu0 0
        %1115 = vmatprep.subr.bf16.mxu0 0
        %1116 = vmatpush2.bf16.msra.mxu0 0
        %1117 = vmatprep.subr.bf16.mxu0 0
        %1118 = vmatpush2.bf16.msra.mxu0 0
        %1119 = vmatprep.subr.bf16.mxu0 0
        %1120 = vmatpush2.bf16.msra.mxu0 0
        %1121 = vmatprep.subr.bf16.mxu0 0
        %1122 = vmatpush2.bf16.msra.mxu0 0
        %1123 = vmatprep.subr.bf16.mxu0 0
        %1124 = vmatpush2.bf16.msra.mxu0 0
        %1125 = vmatprep.subr.bf16.mxu0 0
        %1126 = vmatpush2.bf16.msra.mxu0 0
        %1127 = vmatprep.mubr.bf16.mxu0 0
        %1128 = vmatmul.mubr.bf16.gmra.mxu0 %v1090
        %v1129 = vpop.f32.mrf.mxu0
        %v1130 = vadd.f32 0.0, %v1129
        %v1131 = vpop.f32.mrf.mxu0
        %v1132 = vpop.f32.mrf.mxu0
        %v1133 = vpop.f32.mrf.mxu0
        %1134 = vdwg.mxu0
        %1135 = vrot.lane.b32.xlu0 %v911, 112
        %v1136 = vpop.permute.xlu0 %1135
        %1137 = vrot.lane.b32.xlu0 %v912, 80
        %v1138 = vpop.permute.xlu0 %1137
        %v1140 = vsel %vm916, %v1136, 0
        %v1143 = vsel %vm916, %v1138, 0
        %1145 = vmatprep.subr.bf16.mxu0 0
        %1146 = vmatpush1.bf16.xpose.msra.mxu0 0
        %1147 = vmatprep.subr.bf16.mxu0 0
        %1148 = vmatpush1.bf16.xpose.msra.mxu0 0
        %1149 = vmatprep.subr.bf16.mxu0 0
        %1150 = vmatpush1.bf16.xpose.msra.mxu0 0
        %1151 = vmatprep.subr.bf16.mxu0 0
        %1152 = vmatpush1.bf16.xpose.msra.mxu0 0
        %1153 = vmatprep.subr.bf16.mxu0 0
        %1154 = vmatpush1.bf16.xpose.msra.mxu0 0
        %1155 = vmatprep.subr.bf16.mxu0 0
        %1156 = vmatpush1.bf16.xpose.msra.mxu0 0
        %1157 = vmatprep.subr.bf16.mxu0 0
        %1158 = vmatpush1.bf16.xpose.msra.mxu0 0
        %1159 = vmatprep.subr.bf16.mxu0 0
        %1160 = vmatpush1.bf16.xpose.msra.mxu0 %v1143
        %1161 = vmatprep.subr.bf16.mxu0 0
        %1162 = vmatpush2.bf16.xpose.msra.mxu0 0
        %1163 = vmatprep.subr.bf16.mxu0 0
        %1164 = vmatpush2.bf16.xpose.msra.mxu0 0
        %1165 = vmatprep.subr.bf16.mxu0 0
        %1166 = vmatpush2.bf16.xpose.msra.mxu0 0
        %1167 = vmatprep.subr.bf16.mxu0 0
        %1168 = vmatpush2.bf16.xpose.msra.mxu0 0
        %1169 = vmatprep.subr.bf16.mxu0 0
        %1170 = vmatpush2.bf16.xpose.msra.mxu0 0
        %1171 = vmatprep.subr.bf16.mxu0 0
        %1172 = vmatpush2.bf16.xpose.msra.mxu0 0
        %1173 = vmatprep.subr.bf16.mxu0 0
        %1174 = vmatpush2.bf16.xpose.msra.mxu0 0
        %1175 = vmatprep.subr.bf16.mxu0 0
        %1176 = vmatpush2.bf16.xpose.msra.mxu0 0
        %1177 = vmatprep.mubr.bf16.mxu0 0
        %1178 = vmatmul.mubr.bf16.gmra.mxu0 %v1140
        %v1179 = vpop.f32.mrf.mxu0
        %v1180 = vadd.f32 0.0, %v1179
        %v1181 = vpop.f32.mrf.mxu0
        %v1182 = vpop.f32.mrf.mxu0
        %v1183 = vpop.f32.mrf.mxu0
        %1184 = vdwg.mxu0
        %v1185 = vsel %vm916, %v1180, -inf
        %1186 = vmax.xlane.f32.xlu0 %v1185
        %v1187 = vpop.xlane.xlu0 %1186
        %v1188 = vsub.f32 %v1180, %v1187
        %v1189 = vmul.f32 %v1188, 1.442695
        %v1190 = vpow.pop %v1189
        %v1191 = vsel %vm916, %v1190, 0.0
        %1192 = vadd.xlane.f32.xlu0 %v1191
        %v1193 = vpop.xlane.xlu0 %1192
        %v1194 = vrcp.pop %v1193
        %v1195 = vmul.f32 %v1190, %v1194
        %v1196 = vpack.c.bf16 %v1195, %v1195
        %1197 = vrot.lane.b32.xlu0 %v912, 48
        %v1198 = vpop.permute.xlu0 %1197
        %v1200 = vsel %vm916, %v1196, 0
        %v1203 = vsel %vm980, %v1198, 0
        %1205 = vmatprep.subr.bf16.mxu0 0
        %1206 = vmatpush1.bf16.msra.mxu0 0
        %1207 = vmatprep.subr.bf16.mxu0 0
        %1208 = vmatpush1.bf16.msra.mxu0 0
        %1209 = vmatprep.subr.bf16.mxu0 0
        %1210 = vmatpush1.bf16.msra.mxu0 0
        %1211 = vmatprep.subr.bf16.mxu0 0
        %1212 = vmatpush1.bf16.msra.mxu0 0
        %1213 = vmatprep.subr.bf16.mxu0 0
        %1214 = vmatpush1.bf16.msra.mxu0 0
        %1215 = vmatprep.subr.bf16.mxu0 0
        %1216 = vmatpush1.bf16.msra.mxu0 0
        %1217 = vmatprep.subr.bf16.mxu0 0
        %1218 = vmatpush1.bf16.msra.mxu0 0
        %1219 = vmatprep.subr.bf16.mxu0 0
        %1220 = vmatpush1.bf16.msra.mxu0 %v1203
        %1221 = vmatprep.subr.bf16.mxu0 0
        %1222 = vmatpush2.bf16.msra.mxu0 0
        %1223 = vmatprep.subr.bf16.mxu0 0
        %1224 = vmatpush2.bf16.msra.mxu0 0
        %1225 = vmatprep.subr.bf16.mxu0 0
        %1226 = vmatpush2.bf16.msra.mxu0 0
        %1227 = vmatprep.subr.bf16.mxu0 0
        %1228 = vmatpush2.bf16.msra.mxu0 0
        %1229 = vmatprep.subr.bf16.mxu0 0
        %1230 = vmatpush2.bf16.msra.mxu0 0
        %1231 = vmatprep.subr.bf16.mxu0 0
        %1232 = vmatpush2.bf16.msra.mxu0 0
        %1233 = vmatprep.subr.bf16.mxu0 0
        %1234 = vmatpush2.bf16.msra.mxu0 0
        %1235 = vmatprep.subr.bf16.mxu0 0
        %1236 = vmatpush2.bf16.msra.mxu0 0
        %1237 = vmatprep.mubr.bf16.mxu0 0
        %1238 = vmatmul.mubr.bf16.gmra.mxu0 %v1200
        %v1239 = vpop.f32.mrf.mxu0
        %v1240 = vadd.f32 0.0, %v1239
        %v1241 = vpop.f32.mrf.mxu0
        %v1242 = vpop.f32.mrf.mxu0
        %v1243 = vpop.f32.mrf.mxu0
        %1244 = vdwg.mxu0
        %1245 = vrot.lane.b32.xlu0 %v911, 104
        %v1246 = vpop.permute.xlu0 %1245
        %1247 = vrot.lane.b32.xlu0 %v912, 72
        %v1248 = vpop.permute.xlu0 %1247
        %v1250 = vsel %vm916, %v1246, 0
        %v1253 = vsel %vm916, %v1248, 0
        %1255 = vmatprep.subr.bf16.mxu0 0
        %1256 = vmatpush1.bf16.xpose.msra.mxu0 0
        %1257 = vmatprep.subr.bf16.mxu0 0
        %1258 = vmatpush1.bf16.xpose.msra.mxu0 0
        %1259 = vmatprep.subr.bf16.mxu0 0
        %1260 = vmatpush1.bf16.xpose.msra.mxu0 0
        %1261 = vmatprep.subr.bf16.mxu0 0
        %1262 = vmatpush1.bf16.xpose.msra.mxu0 0
        %1263 = vmatprep.subr.bf16.mxu0 0
        %1264 = vmatpush1.bf16.xpose.msra.mxu0 0
        %1265 = vmatprep.subr.bf16.mxu0 0
        %1266 = vmatpush1.bf16.xpose.msra.mxu0 0
        %1267 = vmatprep.subr.bf16.mxu0 0
        %1268 = vmatpush1.bf16.xpose.msra.mxu0 0
        %1269 = vmatprep.subr.bf16.mxu0 0
        %1270 = vmatpush1.bf16.xpose.msra.mxu0 %v1253
        %1271 = vmatprep.subr.bf16.mxu0 0
        %1272 = vmatpush2.bf16.xpose.msra.mxu0 0
        %1273 = vmatprep.subr.bf16.mxu0 0
        %1274 = vmatpush2.bf16.xpose.msra.mxu0 0
        %1275 = vmatprep.subr.bf16.mxu0 0
        %1276 = vmatpush2.bf16.xpose.msra.mxu0 0
        %1277 = vmatprep.subr.bf16.mxu0 0
        %1278 = vmatpush2.bf16.xpose.msra.mxu0 0
        %1279 = vmatprep.subr.bf16.mxu0 0
        %1280 = vmatpush2.bf16.xpose.msra.mxu0 0
        %1281 = vmatprep.subr.bf16.mxu0 0
        %1282 = vmatpush2.bf16.xpose.msra.mxu0 0
        %1283 = vmatprep.subr.bf16.mxu0 0
        %1284 = vmatpush2.bf16.xpose.msra.mxu0 0
        %1285 = vmatprep.subr.bf16.mxu0 0
        %1286 = vmatpush2.bf16.xpose.msra.mxu0 0
        %1287 = vmatprep.mubr.bf16.mxu0 0
        %1288 = vmatmul.mubr.bf16.gmra.mxu0 %v1250
        %v1289 = vpop.f32.mrf.mxu0
        %v1290 = vadd.f32 0.0, %v1289
        %v1291 = vpop.f32.mrf.mxu0
        %v1292 = vpop.f32.mrf.mxu0
        %v1293 = vpop.f32.mrf.mxu0
        %1294 = vdwg.mxu0
        %v1295 = vsel %vm916, %v1290, -inf
        %1296 = vmax.xlane.f32.xlu0 %v1295
        %v1297 = vpop.xlane.xlu0 %1296
        %v1298 = vsub.f32 %v1290, %v1297
        %v1299 = vmul.f32 %v1298, 1.442695
        %v1300 = vpow.pop %v1299
        %v1301 = vsel %vm916, %v1300, 0.0
        %1302 = vadd.xlane.f32.xlu0 %v1301
        %v1303 = vpop.xlane.xlu0 %1302
        %v1304 = vrcp.pop %v1303
        %v1305 = vmul.f32 %v1300, %v1304
        %v1306 = vpack.c.bf16 %v1305, %v1305
        %1307 = vrot.lane.b32.xlu0 %v912, 40
        %v1308 = vpop.permute.xlu0 %1307
        %v1310 = vsel %vm916, %v1306, 0
        %v1313 = vsel %vm980, %v1308, 0
        %1315 = vmatprep.subr.bf16.mxu0 0
        %1316 = vmatpush1.bf16.msra.mxu0 0
        %1317 = vmatprep.subr.bf16.mxu0 0
        %1318 = vmatpush1.bf16.msra.mxu0 0
        %1319 = vmatprep.subr.bf16.mxu0 0
        %1320 = vmatpush1.bf16.msra.mxu0 0
        %1321 = vmatprep.subr.bf16.mxu0 0
        %1322 = vmatpush1.bf16.msra.mxu0 0
        %1323 = vmatprep.subr.bf16.mxu0 0
        %1324 = vmatpush1.bf16.msra.mxu0 0
        %1325 = vmatprep.subr.bf16.mxu0 0
        %1326 = vmatpush1.bf16.msra.mxu0 0
        %1327 = vmatprep.subr.bf16.mxu0 0
        %1328 = vmatpush1.bf16.msra.mxu0 0
        %1329 = vmatprep.subr.bf16.mxu0 0
        %1330 = vmatpush1.bf16.msra.mxu0 %v1313
        %1331 = vmatprep.subr.bf16.mxu0 0
        %1332 = vmatpush2.bf16.msra.mxu0 0
        %1333 = vmatprep.subr.bf16.mxu0 0
        %1334 = vmatpush2.bf16.msra.mxu0 0
        %1335 = vmatprep.subr.bf16.mxu0 0
        %1336 = vmatpush2.bf16.msra.mxu0 0
        %1337 = vmatprep.subr.bf16.mxu0 0
        %1338 = vmatpush2.bf16.msra.mxu0 0
        %1339 = vmatprep.subr.bf16.mxu0 0
        %1340 = vmatpush2.bf16.msra.mxu0 0
        %1341 = vmatprep.subr.bf16.mxu0 0
        %1342 = vmatpush2.bf16.msra.mxu0 0
        %1343 = vmatprep.subr.bf16.mxu0 0
        %1344 = vmatpush2.bf16.msra.mxu0 0
        %1345 = vmatprep.subr.bf16.mxu0 0
        %1346 = vmatpush2.bf16.msra.mxu0 0
        %1347 = vmatprep.mubr.bf16.mxu0 0
        %1348 = vmatmul.mubr.bf16.gmra.mxu0 %v1310
        %v1349 = vpop.f32.mrf.mxu0
        %v1350 = vadd.f32 0.0, %v1349
        %v1351 = vpop.f32.mrf.mxu0
        %v1352 = vpop.f32.mrf.mxu0
        %v1353 = vpop.f32.mrf.mxu0
        %1354 = vdwg.mxu0
        %1356 = vrot.lane.b32.xlu0 %v1130, 8
        %v1357 = vpop.permute.xlu0 %1356
        %1360 = vrot.lane.b32.xlu0 %v1240, 16
        %v1361 = vpop.permute.xlu0 %1360
        %1364 = vrot.lane.b32.xlu0 %v1350, 24
        %v1365 = vpop.permute.xlu0 %1364
        %v1367 = vsel %vm916, %v1019, %v1357
        %vm1368 = vcmask 130048
        %v1369 = vsel %vm1368, %v1367, %v1361
        %vm1370 = vcmask 195584
        %v1371 = vsel %vm1370, %v1369, %v1365
        %v1372 = vpack.c.bf16 %v1371, %v1371
        %v1373 = vld [vmem:[%s711] sm:$0xf]
        %v1374 = vld [vmem:[%s711 + $0x4] sm:$0xf]
        %v1375 = vld [vmem:[%s711 + $0x8] sm:$0xf]
        %v1376 = vld [vmem:[%s711 + $0xc] sm:$0xf]
        %v1377 = vld [vmem:[%s714] sm:$0x1]
        %v1379 = vlaneseq
        %v1380 = vshrl.u32 %v1379, 7
        %v1381 = vsub.s32 0, %v1380
        %v1382 = vrot.slane %v1377, %v1381
        %v1388 = vunpack.c.l.b16 %v1373
        %v1389 = vunpack.c.l.b16 %v1374
        %v1390 = vunpack.c.l.b16 %v1375
        %v1391 = vunpack.c.l.b16 %v1376
        %v1392 = vpack.c.b16 %v1389, %v1388
        %v1393 = vpack.c.b16 %v1391, %v1390
        %v1397 = vsel %vm866, %v1372, 0
        %1399 = vmatprep.subr.bf16.mxu0 0
        %1400 = vmatpush1.bf16.msra.mxu0 0
        %1401 = vmatprep.subr.bf16.mxu0 0
        %1402 = vmatpush1.bf16.msra.mxu0 0
        %1403 = vmatprep.subr.bf16.mxu0 0
        %1404 = vmatpush1.bf16.msra.mxu0 0
        %1405 = vmatprep.subr.bf16.mxu0 0
        %1406 = vmatpush1.bf16.msra.mxu0 0
        %1407 = vmatprep.subr.bf16.mxu0 0
        %1408 = vmatpush1.bf16.msra.mxu0 0
        %1409 = vmatprep.subr.bf16.mxu0 0
        %1410 = vmatpush1.bf16.msra.mxu0 0
        %1411 = vmatprep.subr.bf16.mxu0 0
        %1412 = vmatpush1.bf16.msra.mxu0 %v1393
        %1413 = vmatprep.subr.bf16.mxu0 0
        %1414 = vmatpush1.bf16.msra.mxu0 %v1392
        %1415 = vmatprep.subr.bf16.mxu0 0
        %1416 = vmatpush2.bf16.msra.mxu0 0
        %1417 = vmatprep.subr.bf16.mxu0 0
        %1418 = vmatpush2.bf16.msra.mxu0 0
        %1419 = vmatprep.subr.bf16.mxu0 0
        %1420 = vmatpush2.bf16.msra.mxu0 0
        %1421 = vmatprep.subr.bf16.mxu0 0
        %1422 = vmatpush2.bf16.msra.mxu0 0
        %1423 = vmatprep.subr.bf16.mxu0 0
        %1424 = vmatpush2.bf16.msra.mxu0 0
        %1425 = vmatprep.subr.bf16.mxu0 0
        %1426 = vmatpush2.bf16.msra.mxu0 0
        %1427 = vmatprep.subr.bf16.mxu0 0
        %1428 = vmatpush2.bf16.msra.mxu0 0
        %1429 = vmatprep.subr.bf16.mxu0 0
        %1430 = vmatpush2.bf16.msra.mxu0 0
        %1431 = vmatprep.mubr.bf16.mxu0 0
        %1432 = vmatmul.mubr.bf16.gmra.mxu0 %v1397
        %v1433 = vpop.f32.mrf.mxu0
        %v1434 = vadd.f32 %v1382, %v1433
        %v1435 = vpop.f32.mrf.mxu0
        %v1436 = vpop.f32.mrf.mxu0
        %v1437 = vpop.f32.mrf.mxu0
        %1438 = vdwg.mxu0
        %v1439 = vadd.f32 %v841, %v1434
        %v1440 = vld [vmem:[%s717] sm:$0x1]
        %v1441 = vld [vmem:[%s720] sm:$0x1]
        %v1442 = vsel %vm866, %v1439, 0.0
        %1443 = vadd.xlane.f32.xlu0 %v1442
        %v1444 = vpop.xlane.xlu0 %1443
        %v1445 = vrcp.pop 32.0
        %v1446 = vmul.f32 %v1444, %v1445
        %v1447 = vsub.f32 %v1439, %v1446
        %v1448 = vmul.f32 %v1447, %v1447
        %v1449 = vsel %vm866, %v1448, 0.0
        %1450 = vadd.xlane.f32.xlu0 %v1449
        %v1451 = vpop.xlane.xlu0 %1450
        %v1452 = vmul.f32 %v1451, %v1445
        %v1453 = vadd.f32 %v1452, 1e-05
        %v1454 = vrsqrt.pop %v1453
        %v1455 = vmul.f32 %v1447, %v1454
        %v1457 = vlaneseq
        %v1458 = vshrl.u32 %v1457, 7
        %v1459 = vsub.s32 0, %v1458
        %v1460 = vrot.slane %v1440, %v1459
        %v1462 = vmul.f32 %v1455, %v1460
        %v1464 = vlaneseq
        %v1465 = vshrl.u32 %v1464, 7
        %v1466 = vsub.s32 0, %v1465
        %v1467 = vrot.slane %v1441, %v1466
        %v1469 = vadd.f32 %v1462, %v1467
        %v1470 = vpack.c.bf16 %v1469, %v1469
        %v1471 = vld [vmem:[%s731] sm:$0xf]
        %v1472 = vld [vmem:[%s731 + $0x4] sm:$0xf]
        %v1473 = vld [vmem:[%s731 + $0x8] sm:$0xf]
        %v1474 = vld [vmem:[%s731 + $0xc] sm:$0xf]
        %v1475 = vld [vmem:[%s734] sm:$0x1]
        %v1477 = vlaneseq
        %v1478 = vshrl.u32 %v1477, 7
        %v1479 = vsub.s32 0, %v1478
        %v1480 = vrot.slane %v1475, %v1479
        %v1486 = vunpack.c.l.b16 %v1471
        %v1487 = vunpack.c.l.b16 %v1472
        %v1488 = vunpack.c.l.b16 %v1473
        %v1489 = vunpack.c.l.b16 %v1474
        %v1490 = vpack.c.b16 %v1487, %v1486
        %v1491 = vpack.c.b16 %v1489, %v1488
        %v1495 = vsel %vm866, %v1470, 0
        %1497 = vmatprep.subr.bf16.mxu0 0
        %1498 = vmatpush1.bf16.msra.mxu0 0
        %1499 = vmatprep.subr.bf16.mxu0 0
        %1500 = vmatpush1.bf16.msra.mxu0 0
        %1501 = vmatprep.subr.bf16.mxu0 0
        %1502 = vmatpush1.bf16.msra.mxu0 0
        %1503 = vmatprep.subr.bf16.mxu0 0
        %1504 = vmatpush1.bf16.msra.mxu0 0
        %1505 = vmatprep.subr.bf16.mxu0 0
        %1506 = vmatpush1.bf16.msra.mxu0 0
        %1507 = vmatprep.subr.bf16.mxu0 0
        %1508 = vmatpush1.bf16.msra.mxu0 0
        %1509 = vmatprep.subr.bf16.mxu0 0
        %1510 = vmatpush1.bf16.msra.mxu0 %v1491
        %1511 = vmatprep.subr.bf16.mxu0 0
        %1512 = vmatpush1.bf16.msra.mxu0 %v1490
        %1513 = vmatprep.subr.bf16.mxu0 0
        %1514 = vmatpush2.bf16.msra.mxu0 0
        %1515 = vmatprep.subr.bf16.mxu0 0
        %1516 = vmatpush2.bf16.msra.mxu0 0
        %1517 = vmatprep.subr.bf16.mxu0 0
        %1518 = vmatpush2.bf16.msra.mxu0 0
        %1519 = vmatprep.subr.bf16.mxu0 0
        %1520 = vmatpush2.bf16.msra.mxu0 0
        %1521 = vmatprep.subr.bf16.mxu0 0
        %1522 = vmatpush2.bf16.msra.mxu0 0
        %1523 = vmatprep.subr.bf16.mxu0 0
        %1524 = vmatpush2.bf16.msra.mxu0 0
        %1525 = vmatprep.subr.bf16.mxu0 0
        %1526 = vmatpush2.bf16.msra.mxu0 0
        %1527 = vmatprep.subr.bf16.mxu0 0
        %1528 = vmatpush2.bf16.msra.mxu0 0
        %1529 = vmatprep.mubr.bf16.mxu0 0
        %1530 = vmatmul.mubr.bf16.gmra.mxu0 %v1495
        %v1531 = vpop.f32.mrf.mxu0
        %v1532 = vadd.f32 %v1480, %v1531
        %v1533 = vpop.f32.mrf.mxu0
        %v1534 = vpop.f32.mrf.mxu0
        %v1535 = vpop.f32.mrf.mxu0
        %1536 = vdwg.mxu0
        %v1537 = vmax.f32 %v1532, 0.0
        %v1538 = vpack.c.bf16 %v1537, %v1537
        %v1539 = vld [vmem:[%s739] sm:$0xf]
        %v1540 = vld [vmem:[%s739 + $0x4] sm:$0xf]
        %v1541 = vld [vmem:[%s739 + $0x8] sm:$0xf]
        %v1542 = vld [vmem:[%s739 + $0xc] sm:$0xf]
        %v1543 = vld [vmem:[%s739 + $0x10] sm:$0xf]
        %v1544 = vld [vmem:[%s739 + $0x14] sm:$0xf]
        %v1545 = vld [vmem:[%s739 + $0x18] sm:$0xf]
        %v1546 = vld [vmem:[%s739 + $0x1c] sm:$0xf]
        %v1547 = vld [vmem:[%s742] sm:$0x1]
        %v1549 = vlaneseq
        %v1550 = vshrl.u32 %v1549, 7
        %v1551 = vsub.s32 0, %v1550
        %v1552 = vrot.slane %v1547, %v1551
        %v1562 = vunpack.c.l.b16 %v1539
        %v1563 = vunpack.c.l.b16 %v1540
        %v1564 = vunpack.c.l.b16 %v1541
        %v1565 = vunpack.c.l.b16 %v1542
        %v1566 = vunpack.c.l.b16 %v1543
        %v1567 = vunpack.c.l.b16 %v1544
        %v1568 = vunpack.c.l.b16 %v1545
        %v1569 = vunpack.c.l.b16 %v1546
        %v1570 = vpack.c.b16 %v1563, %v1562
        %v1571 = vpack.c.b16 %v1565, %v1564
        %v1572 = vpack.c.b16 %v1567, %v1566
        %v1573 = vpack.c.b16 %v1569, %v1568
        %vm1578 = vcmask 523264
        %v1580 = vsel %vm1578, %v1538, 0
        %1582 = vmatprep.subr.bf16.mxu0 0
        %1583 = vmatpush1.bf16.msra.mxu0 0
        %1584 = vmatprep.subr.bf16.mxu0 0
        %1585 = vmatpush1.bf16.msra.mxu0 0
        %1586 = vmatprep.subr.bf16.mxu0 0
        %1587 = vmatpush1.bf16.msra.mxu0 0
        %1588 = vmatprep.subr.bf16.mxu0 0
        %1589 = vmatpush1.bf16.msra.mxu0 0
        %1590 = vmatprep.subr.bf16.mxu0 0
        %1591 = vmatpush1.bf16.msra.mxu0 %v1573
        %1592 = vmatprep.subr.bf16.mxu0 0
        %1593 = vmatpush1.bf16.msra.mxu0 %v1572
        %1594 = vmatprep.subr.bf16.mxu0 0
        %1595 = vmatpush1.bf16.msra.mxu0 %v1571
        %1596 = vmatprep.subr.bf16.mxu0 0
        %1597 = vmatpush1.bf16.msra.mxu0 %v1570
        %1598 = vmatprep.subr.bf16.mxu0 0
        %1599 = vmatpush2.bf16.msra.mxu0 0
        %1600 = vmatprep.subr.bf16.mxu0 0
        %1601 = vmatpush2.bf16.msra.mxu0 0
        %1602 = vmatprep.subr.bf16.mxu0 0
        %1603 = vmatpush2.bf16.msra.mxu0 0
        %1604 = vmatprep.subr.bf16.mxu0 0
        %1605 = vmatpush2.bf16.msra.mxu0 0
        %1606 = vmatprep.subr.bf16.mxu0 0
        %1607 = vmatpush2.bf16.msra.mxu0 0
        %1608 = vmatprep.subr.bf16.mxu0 0
        %1609 = vmatpush2.bf16.msra.mxu0 0
        %1610 = vmatprep.subr.bf16.mxu0 0
        %1611 = vmatpush2.bf16.msra.mxu0 0
        %1612 = vmatprep.subr.bf16.mxu0 0
        %1613 = vmatpush2.bf16.msra.mxu0 0
        %1614 = vmatprep.mubr.bf16.mxu0 0
        %1615 = vmatmul.mubr.bf16.gmra.mxu0 %v1580
        %v1616 = vpop.f32.mrf.mxu0
        %v1617 = vadd.f32 %v1552, %v1616
        %v1618 = vpop.f32.mrf.mxu0
        %v1619 = vpop.f32.mrf.mxu0
        %v1620 = vpop.f32.mrf.mxu0
        %1621 = vdwg.mxu0
        %v1622 = vadd.f32 %v1469, %v1617
        %v1623 = vld [vmem:[%s723] sm:$0x1]
        %v1624 = vld [vmem:[%s726] sm:$0x1]
        %v1625 = vsel %vm866, %v1622, 0.0
        %1626 = vadd.xlane.f32.xlu0 %v1625
        %v1627 = vpop.xlane.xlu0 %1626
        %v1628 = vmul.f32 %v1627, %v1445
        %v1629 = vsub.f32 %v1622, %v1628
        %v1630 = vmul.f32 %v1629, %v1629
        %v1631 = vsel %vm866, %v1630, 0.0
        %1632 = vadd.xlane.f32.xlu0 %v1631
        %v1633 = vpop.xlane.xlu0 %1632
        %v1634 = vmul.f32 %v1633, %v1445
        %v1635 = vadd.f32 %v1634, 1e-05
        %v1636 = vrsqrt.pop %v1635
        %v1637 = vmul.f32 %v1629, %v1636
        %v1639 = vlaneseq
        %v1640 = vshrl.u32 %v1639, 7
        %v1641 = vsub.s32 0, %v1640
        %v1642 = vrot.slane %v1623, %v1641
        %v1644 = vmul.f32 %v1637, %v1642
        %v1646 = vlaneseq
        %v1647 = vshrl.u32 %v1646, 7
        %v1648 = vsub.s32 0, %v1647
        %v1649 = vrot.slane %v1624, %v1648
        %v1651 = vadd.f32 %v1644, %v1649
        %1652 = vst.msk [vmem:[%s746] sm:$0xff] %vm866, %v1651
        %p1653 = scmp.lt.s32.totalorder %s33, 1
        %s1654 = scalar_select %p1653, %s33, 1
        %s1655 = smul.addr %s1654, 8
        %s1656 = scalar_lea.vmem %s16, %s1655
        // Predicated region
        $region97: #{transformer_encoder.2} parent=83 // pred_check
          %p1657 = pneg %p460
        $region98: #{transformer_encoder.2} parent=83 // pred_check_branch
          %1659 = sbr.rel (%p1657) target = $region100
        $region99: #{transformer_encoder.2} parent=83 // pred_region
          _
        $region100: #{transformer_encoder.2} parent=83 // pred_fallthru
          _
      $region84: #{transformer_encoder.2} parent=5 // pred_fallthru
        _
      %p1660 = scmp.le.s32.totalorder 2, %s24
      // Predicated region
      $region101: #{transformer_encoder.2} parent=5 // pred_check
        %p1661 = pneg %p1660
      $region102: #{transformer_encoder.2} parent=5 // pred_check_branch
        %1663 = sbr.rel (%p1661) target = $region104
      $region103: #{transformer_encoder.2} parent=5 // pred_region
        %s1664 = ssub.s32 %s24, 2
        // Predicated region
        $region105: #{transformer_encoder.2} parent=103 // pred_check
          %p1665 = pneg %p466
        $region106: #{transformer_encoder.2} parent=103 // pred_check_branch
          %1667 = sbr.rel (%p1665) target = $region108
        $region107: #{transformer_encoder.2} parent=103 // pred_region
          %p1668 = scmp.lt.s32.totalorder %s35, 1
          %s1669 = scalar_select %p1668, %s35, 1
          %s1670 = smul.addr %s1669, 8
          %s1671 = scalar_lea.vmem %s16, %s1670
        $region108: #{transformer_encoder.2} parent=103 // pred_fallthru
          _
      $region104: #{transformer_encoder.2} parent=5 // pred_fallthru
        _
    $region6: #{transformer_encoder.2} parent=1 // loop_footer
      %s28 = sadd.s32 1, %s24
    $region7: #{transformer_encoder.2} parent=1 // loop_footer_branch
      %23 = sbr.rel target = $region3
    $region8: #{transformer_encoder.2} parent=1 // loop_exit
      _
    %1672 = vsyncpa [#allocation3], 1
    %s1673 = scalar_lea.sflag [#allocation3], 1
    %1674 = vsyncpa %s1673, 1
    %1675 = vsyncpa [#allocation5], 1

// kernel: transformer_encoder.3
$region0: #{transformer_encoder.3}
  #allocation0 [shape = 'u32[]', space=smem, size = 0x4, offset = 0x4, fixed_abs, tag = 'smem constant byte address 0x4 - core index']
  #allocation1 [shape = 'u32[144,128]{1,0:T(1,128)}', space=vmem, size = 0x12000, scoped, tag = 'internal scratch']
  %s0 = inlined_call_operand.vmem [shape: f32[16,32], index: 0, kind: input, shape index: {}]
  %s1 = inlined_call_operand.vmem [shape: bf16[32,256], index: 1, kind: input, shape index: {}]
  %s2 = inlined_call_operand.vmem [shape: f32[256,1], index: 2, kind: input, shape index: {}]
  %s3 = inlined_call_operand.vmem [shape: f32[8,2500], index: 3, kind: input, shape index: {}]
  %s4 = inlined_call_operand.vmem [shape: f32[2,256,2500], index: 4, kind: output, shape index: {}]
  %s5 = sld [smem:[#allocation0]]
  $region49: #{transformer_encoder.3} parent=0
    _
  %s7 = ssub.s32 1, %s5
  %s8 = scalar_select 0, %s7, %s5
  loop: start=0, step=1, limit=4
  $region2: #{transformer_encoder.3} parent=0 // loop_pre_header
    _
  $region3: #{transformer_encoder.3} parent=0 // loop_header
    %s10 = sphi 0, %s14
    %p11 = scmp.ge.s32.totalorder %s10, 4
    %s20 = sphi 0, %s22
    %s23 = sphi 0, %s20
    %s24 = sphi 0, %s23
    %s40 = sphi 0, %s24
    %s44 = sphi 0, %s44
    %s46 = sphi 0, %s44
    %s47 = sphi 0, %s46
    %s61 = sphi 0, %s47
    %s65 = sphi 0, %s65
    %s67 = sphi 0, %s65
    %s68 = sphi 0, %s67
    %s82 = sphi 0, %s68
    %s86 = sphi 0, %s86
    %s88 = sphi 0, %s86
    %s89 = sphi 0, %s88
    %s103 = sphi 0, %s89
    %s109 = sphi 0, %s111
    %s112 = sphi 0, %s109
    %s113 = sphi 0, %s112
    %s129 = sphi 0, %s113
  $region4: #{transformer_encoder.3} parent=0 // loop_header_branch
    %13 = sbr.rel (%p11) target = $region8
  $region5: #{transformer_encoder.3} parent=0 // loop_body
    %s15 = ssub.s32 %s10, 1
    %s16 = ssub.s32 %s10, 2
    %s17 = sadd.s32 %s10, 1
    %s18 = ssub.s32 %s10, %s17
    %p19 = scmp.eq.s32.totalorder %s18, 0
    %s21 = sadd.s32 %s20, 1
    %s22 = scalar_select %p19, %s20, %s21
    %p25 = pneg %p19
    %p26 = scmp.eq.s32.totalorder %s10, 1
    %p27 = por %p25, %p26
    %p28 = scmp.ne.s32.totalorder %s20, %s23
    %p29 = scmp.eq.s32.totalorder %s10, 0
    %p30 = por %p28, %p29
    %p31 = scmp.ne.s32.totalorder %s20, %s23
    %p32 = scmp.eq.s32.totalorder %s15, 1
    %p33 = por %p31, %p32
    %p34 = scmp.ne.s32.totalorder %s23, %s24
    %p35 = scmp.eq.s32.totalorder %s15, 0
    %p36 = por %p34, %p35
    %p37 = scmp.ne.s32.totalorder %s23, %s24
    %p38 = scmp.eq.s32.totalorder %s16, 1
    %p39 = por %p37, %p38
    %p41 = scmp.ne.s32.totalorder %s24, %s40
    %p42 = scmp.eq.s32.totalorder %s16, 0
    %p43 = por %p41, %p42
    %s45 = sadd.s32 %s44, 1
    %p48 = scmp.eq.s32.totalorder %s10, 1
    %p49 = scmp.ne.s32.totalorder %s44, %s46
    %p50 = scmp.eq.s32.totalorder %s10, 0
    %p51 = por %p49, %p50
    %p52 = scmp.ne.s32.totalorder %s44, %s46
    %p53 = scmp.eq.s32.totalorder %s15, 1
    %p54 = por %p52, %p53
    %p55 = scmp.ne.s32.totalorder %s46, %s47
    %p56 = scmp.eq.s32.totalorder %s15, 0
    %p57 = por %p55, %p56
    %p58 = scmp.ne.s32.totalorder %s46, %s47
    %p59 = scmp.eq.s32.totalorder %s16, 1
    %p60 = por %p58, %p59
    %p62 = scmp.ne.s32.totalorder %s47, %s61
    %p63 = scmp.eq.s32.totalorder %s16, 0
    %p64 = por %p62, %p63
    %s66 = sadd.s32 %s65, 1
    %p69 = scmp.eq.s32.totalorder %s10, 1
    %p70 = scmp.ne.s32.totalorder %s65, %s67
    %p71 = scmp.eq.s32.totalorder %s10, 0
    %p72 = por %p70, %p71
    %p73 = scmp.ne.s32.totalorder %s65, %s67
    %p74 = scmp.eq.s32.totalorder %s15, 1
    %p75 = por %p73, %p74
    %p76 = scmp.ne.s32.totalorder %s67, %s68
    %p77 = scmp.eq.s32.totalorder %s15, 0
    %p78 = por %p76, %p77
    %p79 = scmp.ne.s32.totalorder %s67, %s68
    %p80 = scmp.eq.s32.totalorder %s16, 1
    %p81 = por %p79, %p80
    %p83 = scmp.ne.s32.totalorder %s68, %s82
    %p84 = scmp.eq.s32.totalorder %s16, 0
    %p85 = por %p83, %p84
    %s87 = sadd.s32 %s86, 1
    %p90 = scmp.eq.s32.totalorder %s10, 1
    %p91 = scmp.ne.s32.totalorder %s86, %s88
    %p92 = scmp.eq.s32.totalorder %s10, 0
    %p93 = por %p91, %p92
    %p94 = scmp.ne.s32.totalorder %s86, %s88
    %p95 = scmp.eq.s32.totalorder %s15, 1
    %p96 = por %p94, %p95
    %p97 = scmp.ne.s32.totalorder %s88, %s89
    %p98 = scmp.eq.s32.totalorder %s15, 0
    %p99 = por %p97, %p98
    %p100 = scmp.ne.s32.totalorder %s88, %s89
    %p101 = scmp.eq.s32.totalorder %s16, 1
    %p102 = por %p100, %p101
    %p104 = scmp.ne.s32.totalorder %s89, %s103
    %p105 = scmp.eq.s32.totalorder %s16, 0
    %p106 = por %p104, %p105
    %s107 = ssub.s32 %s10, %s17
    %p108 = scmp.eq.s32.totalorder %s107, 0
    %s110 = sadd.s32 %s109, 1
    %s111 = scalar_select %p108, %s109, %s110
    %p114 = pneg %p108
    %p115 = scmp.eq.s32.totalorder %s10, 1
    %p116 = por %p114, %p115
    %p117 = scmp.ne.s32.totalorder %s109, %s112
    %p118 = scmp.eq.s32.totalorder %s10, 0
    %p119 = por %p117, %p118
    %p120 = scmp.ne.s32.totalorder %s109, %s112
    %p121 = scmp.eq.s32.totalorder %s15, 1
    %p122 = por %p120, %p121
    %p123 = scmp.ne.s32.totalorder %s112, %s113
    %p124 = scmp.eq.s32.totalorder %s15, 0
    %p125 = por %p123, %p124
    %p126 = scmp.ne.s32.totalorder %s112, %s113
    %p127 = scmp.eq.s32.totalorder %s16, 1
    %p128 = por %p126, %p127
    %p130 = scmp.ne.s32.totalorder %s113, %s129
    %p131 = scmp.eq.s32.totalorder %s16, 0
    %p132 = por %p130, %p131
    %p133 = scmp.le.s32.totalorder 1, %s10
    %p134 = scmp.lt.s32.totalorder %s10, 3
    %p135 = pnand %p133, %p134
    %p136 = pneg %p135
    // Predicated region
    $region9: #{transformer_encoder.3} parent=5 // pred_check
      _
    $region10: #{transformer_encoder.3} parent=5 // pred_check_branch
      %138 = sbr.rel (%p135) target = $region12
    $region11: #{transformer_encoder.3} parent=5 // pred_region
      %s139 = ssub.s32 %s10, 1
      // Predicated region
      $region13: #{transformer_encoder.3} parent=11 // pred_check
        %p140 = pneg %p57
      $region14: #{transformer_encoder.3} parent=11 // pred_check_branch
        %142 = sbr.rel (%p140) target = $region16
      $region15: #{transformer_encoder.3} parent=11 // pred_region
        _
      $region16: #{transformer_encoder.3} parent=11 // pred_fallthru
        _
      // Predicated region
      $region17: #{transformer_encoder.3} parent=11 // pred_check
        %p143 = pneg %p78
      $region18: #{transformer_encoder.3} parent=11 // pred_check_branch
        %145 = sbr.rel (%p143) target = $region20
      $region19: #{transformer_encoder.3} parent=11 // pred_region
        _
      $region20: #{transformer_encoder.3} parent=11 // pred_fallthru
        _
      // Predicated region
      $region21: #{transformer_encoder.3} parent=11 // pred_check
        %p146 = pneg %p99
      $region22: #{transformer_encoder.3} parent=11 // pred_check_branch
        %148 = sbr.rel (%p146) target = $region24
      $region23: #{transformer_encoder.3} parent=11 // pred_region
        _
      $region24: #{transformer_encoder.3} parent=11 // pred_fallthru
        _
    $region12: #{transformer_encoder.3} parent=5 // pred_fallthru
      _
    %p149 = scmp.lt.s32.totalorder %s10, 2
    // Predicated region
    $region25: #{transformer_encoder.3} parent=5 // pred_check
      %p150 = pneg %p149
    $region26: #{transformer_encoder.3} parent=5 // pred_check_branch
      %152 = sbr.rel (%p150) target = $region28
    $region27: #{transformer_encoder.3} parent=5 // pred_region
      // Predicated region
      $region29: #{transformer_encoder.3} parent=27 // pred_check
        %p153 = pneg %p30
      $region30: #{transformer_encoder.3} parent=27 // pred_check_branch
        %155 = sbr.rel (%p153) target = $region32
      $region31: #{transformer_encoder.3} parent=27 // pred_region
        %p156 = scmp.lt.s32.totalorder %s10, 1
        %s157 = scalar_select %p156, %s10, 1
        %s158 = smul.addr %s157, 8
        %s159 = scalar_lea.vmem %s0, %s158
      $region32: #{transformer_encoder.3} parent=27 // pred_fallthru
        _
    $region28: #{transformer_encoder.3} parent=5 // pred_fallthru
      _
    %p160 = scmp.le.s32.totalorder 1, %s10
    %p161 = scmp.lt.s32.totalorder %s10, 3
    %p162 = pnand %p160, %p161
    %p163 = pneg %p162
    // Predicated region
    $region33: #{transformer_encoder.3} parent=5 // pred_check
      _
    $region34: #{transformer_encoder.3} parent=5 // pred_check_branch
      %165 = sbr.rel (%p162) target = $region36
    $region35: #{transformer_encoder.3} parent=5 // pred_region
      %s166 = ssub.s32 %s10, 1
      %p167 = scmp.lt.s32.totalorder %s15, 1
      %s168 = scalar_select %p167, %s15, 1
      %s169 = smul.addr %s168, 8
      %s170 = scalar_lea.vmem %s0, %s169
      %p171 = pneg %p36
      %p172 = pneg %p33
      %p173 = pneg %p57
      %p174 = pneg %p54
      %p175 = pneg %p78
      %p176 = pneg %p75
      %p177 = pneg %p99
      %p178 = pneg %p96
      %p179 = pneg %p125
      %p180 = pneg %p122
      %p181 = scmp.lt.s32.totalorder %s15, 1
      %s182 = scalar_select %p181, %s15, 1
      %s183 = smul.addr %s182, 640
      %s184 = smul.addr %s183, 8
      %s185 = scalar_lea.vmem %s4, %s184
      %p186 = scmp.lt.s32.totalorder %s15, 1
      %s187 = scalar_select %p186, %s15, 1
      %s188 = smul.addr %s187, 8
      %s189 = scalar_lea.vmem %s0, %s188
      %p190 = scmp.lt.s32.totalorder %s15, 1
      %s191 = scalar_select %p190, %s15, 1
      %s192 = smul.addr %s191, 640
      %s193 = smul.addr %s192, 8
      %s194 = scalar_lea.vmem %s4, %s193
      %v196 = vld [vmem:[%s1] sm:$0xff]
      %v197 = vld [vmem:[%s1 + $0x8] sm:$0xff]
      %v198 = vld [vmem:[%s1 + $0x10] sm:$0xff]
      %v199 = vld [vmem:[%s1 + $0x18] sm:$0xff]
      %v200 = vld [vmem:[%s189] sm:$0xff]
      %v201 = vpack.c.bf16 %v200, %v200
      %v202 = vld [vmem:[%s2] sm:$0xff]
      %v203 = vld [vmem:[%s2 + $0x8] sm:$0xff]
      %v204 = vld [vmem:[%s2 + $0x10] sm:$0xff]
      %v205 = vld [vmem:[%s2 + $0x18] sm:$0xff]
      %v206 = vld [vmem:[%s2 + $0x20] sm:$0xff]
      %v207 = vld [vmem:[%s2 + $0x28] sm:$0xff]
      %v208 = vld [vmem:[%s2 + $0x30] sm:$0xff]
      %v209 = vld [vmem:[%s2 + $0x38] sm:$0xff]
      %v210 = vld [vmem:[%s2 + $0x40] sm:$0xff]
      %v211 = vld [vmem:[%s2 + $0x48] sm:$0xff]
      %v212 = vld [vmem:[%s2 + $0x50] sm:$0xff]
      %v213 = vld [vmem:[%s2 + $0x58] sm:$0xff]
      %v214 = vld [vmem:[%s2 + $0x60] sm:$0xff]
      %v215 = vld [vmem:[%s2 + $0x68] sm:$0xff]
      %v216 = vld [vmem:[%s2 + $0x70] sm:$0xff]
      %v217 = vld [vmem:[%s2 + $0x78] sm:$0xff]
      %v218 = vld [vmem:[%s2 + $0x80] sm:$0xff]
      %v219 = vld [vmem:[%s2 + $0x88] sm:$0xff]
      %v220 = vld [vmem:[%s2 + $0x90] sm:$0xff]
      %v221 = vld [vmem:[%s2 + $0x98] sm:$0xff]
      %v222 = vld [vmem:[%s2 + $0xa0] sm:$0xff]
      %v223 = vld [vmem:[%s2 + $0xa8] sm:$0xff]
      %v224 = vld [vmem:[%s2 + $0xb0] sm:$0xff]
      %v225 = vld [vmem:[%s2 + $0xb8] sm:$0xff]
      %v226 = vld [vmem:[%s2 + $0xc0] sm:$0xff]
      %v227 = vld [vmem:[%s2 + $0xc8] sm:$0xff]
      %v228 = vld [vmem:[%s2 + $0xd0] sm:$0xff]
      %v229 = vld [vmem:[%s2 + $0xd8] sm:$0xff]
      %v230 = vld [vmem:[%s2 + $0xe0] sm:$0xff]
      %v231 = vld [vmem:[%s2 + $0xe8] sm:$0xff]
      %v232 = vld [vmem:[%s2 + $0xf0] sm:$0xff]
      %v233 = vld [vmem:[%s2 + $0xf8] sm:$0xff]
      %235 = vset.pattern.permute.xlu0 0
      %236 = vperm.xlu0 %235, %v202
      %v237 = vpop.permute.xlu0 %236
      %240 = vset.pattern.permute.xlu0 0
      %241 = vperm.xlu0 %240, %v203
      %v242 = vpop.permute.xlu0 %241
      %245 = vset.pattern.permute.xlu0 0
      %246 = vperm.xlu0 %245, %v204
      %v247 = vpop.permute.xlu0 %246
      %250 = vset.pattern.permute.xlu0 0
      %251 = vperm.xlu0 %250, %v205
      %v252 = vpop.permute.xlu0 %251
      %255 = vset.pattern.permute.xlu0 0
      %256 = vperm.xlu0 %255, %v206
      %v257 = vpop.permute.xlu0 %256
      %260 = vset.pattern.permute.xlu0 0
      %261 = vperm.xlu0 %260, %v207
      %v262 = vpop.permute.xlu0 %261
      %265 = vset.pattern.permute.xlu0 0
      %266 = vperm.xlu0 %265, %v208
      %v267 = vpop.permute.xlu0 %266
      %270 = vset.pattern.permute.xlu0 0
      %271 = vperm.xlu0 %270, %v209
      %v272 = vpop.permute.xlu0 %271
      %275 = vset.pattern.permute.xlu0 0
      %276 = vperm.xlu0 %275, %v210
      %v277 = vpop.permute.xlu0 %276
      %280 = vset.pattern.permute.xlu0 0
      %281 = vperm.xlu0 %280, %v211
      %v282 = vpop.permute.xlu0 %281
      %285 = vset.pattern.permute.xlu0 0
      %286 = vperm.xlu0 %285, %v212
      %v287 = vpop.permute.xlu0 %286
      %290 = vset.pattern.permute.xlu0 0
      %291 = vperm.xlu0 %290, %v213
      %v292 = vpop.permute.xlu0 %291
      %295 = vset.pattern.permute.xlu0 0
      %296 = vperm.xlu0 %295, %v214
      %v297 = vpop.permute.xlu0 %296
      %300 = vset.pattern.permute.xlu0 0
      %301 = vperm.xlu0 %300, %v215
      %v302 = vpop.permute.xlu0 %301
      %305 = vset.pattern.permute.xlu0 0
      %306 = vperm.xlu0 %305, %v216
      %v307 = vpop.permute.xlu0 %306
      %310 = vset.pattern.permute.xlu0 0
      %311 = vperm.xlu0 %310, %v217
      %v312 = vpop.permute.xlu0 %311
      %315 = vset.pattern.permute.xlu0 0
      %316 = vperm.xlu0 %315, %v218
      %v317 = vpop.permute.xlu0 %316
      %320 = vset.pattern.permute.xlu0 0
      %321 = vperm.xlu0 %320, %v219
      %v322 = vpop.permute.xlu0 %321
      %325 = vset.pattern.permute.xlu0 0
      %326 = vperm.xlu0 %325, %v220
      %v327 = vpop.permute.xlu0 %326
      %330 = vset.pattern.permute.xlu0 0
      %331 = vperm.xlu0 %330, %v221
      %v332 = vpop.permute.xlu0 %331
      %335 = vset.pattern.permute.xlu0 0
      %336 = vperm.xlu0 %335, %v222
      %v337 = vpop.permute.xlu0 %336
      %340 = vset.pattern.permute.xlu0 0
      %341 = vperm.xlu0 %340, %v223
      %v342 = vpop.permute.xlu0 %341
      %345 = vset.pattern.permute.xlu0 0
      %346 = vperm.xlu0 %345, %v224
      %v347 = vpop.permute.xlu0 %346
      %350 = vset.pattern.permute.xlu0 0
      %351 = vperm.xlu0 %350, %v225
      %v352 = vpop.permute.xlu0 %351
      %355 = vset.pattern.permute.xlu0 0
      %356 = vperm.xlu0 %355, %v226
      %v357 = vpop.permute.xlu0 %356
      %360 = vset.pattern.permute.xlu0 0
      %361 = vperm.xlu0 %360, %v227
      %v362 = vpop.permute.xlu0 %361
      %365 = vset.pattern.permute.xlu0 0
      %366 = vperm.xlu0 %365, %v228
      %v367 = vpop.permute.xlu0 %366
      %370 = vset.pattern.permute.xlu0 0
      %371 = vperm.xlu0 %370, %v229
      %v372 = vpop.permute.xlu0 %371
      %375 = vset.pattern.permute.xlu0 0
      %376 = vperm.xlu0 %375, %v230
      %v377 = vpop.permute.xlu0 %376
      %380 = vset.pattern.permute.xlu0 0
      %381 = vperm.xlu0 %380, %v231
      %v382 = vpop.permute.xlu0 %381
      %385 = vset.pattern.permute.xlu0 0
      %386 = vperm.xlu0 %385, %v232
      %v387 = vpop.permute.xlu0 %386
      %390 = vset.pattern.permute.xlu0 0
      %391 = vperm.xlu0 %390, %v233
      %v392 = vpop.permute.xlu0 %391
      %v398 = vunpack.c.l.b16 %v196
      %v399 = vunpack.c.h.b16 %v196
      %v400 = vunpack.c.l.b16 %v197
      %v401 = vunpack.c.h.b16 %v197
      %v402 = vunpack.c.l.b16 %v198
      %v403 = vunpack.c.h.b16 %v198
      %v404 = vunpack.c.l.b16 %v199
      %v405 = vunpack.c.h.b16 %v199
      %v406 = vpack.c.b16 %v400, %v398
      %v407 = vpack.c.b16 %v401, %v399
      %v408 = vpack.c.b16 %v404, %v402
      %v409 = vpack.c.b16 %v405, %v403
      %414 = vxpose.xlu0.c.b16.start [1/8] %v406, 128
      %415 = vxpose.xlu0.c.b16.cont [2/8] %v408, 128
      %416 = vxpose.xlu0.c.b16.cont [3/8] 0, 128
      %417 = vxpose.xlu0.c.b16.cont [4/8] 0, 128
      %418 = vxpose.xlu0.c.b16.cont [5/8] 0, 128
      %419 = vxpose.xlu0.c.b16.cont [6/8] 0, 128
      %420 = vxpose.xlu0.c.b16.cont [7/8] 0, 128
      %421 = vxpose.xlu0.c.b16.end [8/8] 0, 128
      %v422 = vpop.trf.xlu0
      %v423 = vpop.trf.xlu0
      %v424 = vpop.trf.xlu0
      %v425 = vpop.trf.xlu0
      %v426 = vpop.trf.xlu0
      %v427 = vpop.trf.xlu0
      %v428 = vpop.trf.xlu0
      %v429 = vpop.trf.xlu0
      %430 = vxpose.xlu0.c.b16.start [1/8] %v407, 128
      %431 = vxpose.xlu0.c.b16.cont [2/8] %v409, 128
      %432 = vxpose.xlu0.c.b16.cont [3/8] 0, 128
      %433 = vxpose.xlu0.c.b16.cont [4/8] 0, 128
      %434 = vxpose.xlu0.c.b16.cont [5/8] 0, 128
      %435 = vxpose.xlu0.c.b16.cont [6/8] 0, 128
      %436 = vxpose.xlu0.c.b16.cont [7/8] 0, 128
      %437 = vxpose.xlu0.c.b16.end [8/8] 0, 128
      %v438 = vpop.trf.xlu0
      %v439 = vpop.trf.xlu0
      %v440 = vpop.trf.xlu0
      %v441 = vpop.trf.xlu0
      %v442 = vpop.trf.xlu0
      %v443 = vpop.trf.xlu0
      %v444 = vpop.trf.xlu0
      %v445 = vpop.trf.xlu0
      %vm446 = vcmask 261120
      %v448 = vsel %vm446, %v422, 0
      %v451 = vsel %vm446, %v423, 0
      %v454 = vsel %vm446, %v424, 0
      %v457 = vsel %vm446, %v425, 0
      %v460 = vsel %vm446, %v426, 0
      %v463 = vsel %vm446, %v427, 0
      %v466 = vsel %vm446, %v428, 0
      %v469 = vsel %vm446, %v429, 0
      %v472 = vsel %vm446, %v438, 0
      %v475 = vsel %vm446, %v439, 0
      %v478 = vsel %vm446, %v440, 0
      %v481 = vsel %vm446, %v441, 0
      %v484 = vsel %vm446, %v442, 0
      %v487 = vsel %vm446, %v443, 0
      %v490 = vsel %vm446, %v444, 0
      %v493 = vsel %vm446, %v445, 0
      %v496 = vsel %vm446, %v201, 0
      %498 = vmatprep.subr.bf16.mxu0 0
      %499 = vmatpush1.bf16.xpose.msra.mxu0 0
      %500 = vmatprep.subr.bf16.mxu0 0
      %501 = vmatpush1.bf16.xpose.msra.mxu0 0
      %502 = vmatprep.subr.bf16.mxu0 0
      %503 = vmatpush1.bf16.xpose.msra.mxu0 0
      %504 = vmatprep.subr.bf16.mxu0 0
      %505 = vmatpush1.bf16.xpose.msra.mxu0 0
      %506 = vmatprep.subr.bf16.mxu0 0
      %507 = vmatpush1.bf16.xpose.msra.mxu0 0
      %508 = vmatprep.subr.bf16.mxu0 0
      %509 = vmatpush1.bf16.xpose.msra.mxu0 0
      %510 = vmatprep.subr.bf16.mxu0 0
      %511 = vmatpush1.bf16.xpose.msra.mxu0 0
      %512 = vmatprep.subr.bf16.mxu0 0
      %513 = vmatpush1.bf16.xpose.msra.mxu0 %v496
      %514 = vmatprep.subr.bf16.mxu0 0
      %515 = vmatpush2.bf16.xpose.msra.mxu0 0
      %516 = vmatprep.subr.bf16.mxu0 0
      %517 = vmatpush2.bf16.xpose.msra.mxu0 0
      %518 = vmatprep.subr.bf16.mxu0 0
      %519 = vmatpush2.bf16.xpose.msra.mxu0 0
      %520 = vmatprep.subr.bf16.mxu0 0
      %521 = vmatpush2.bf16.xpose.msra.mxu0 0
      %522 = vmatprep.subr.bf16.mxu0 0
      %523 = vmatpush2.bf16.xpose.msra.mxu0 0
      %524 = vmatprep.subr.bf16.mxu0 0
      %525 = vmatpush2.bf16.xpose.msra.mxu0 0
      %526 = vmatprep.subr.bf16.mxu0 0
      %527 = vmatpush2.bf16.xpose.msra.mxu0 0
      %528 = vmatprep.subr.bf16.mxu0 0
      %529 = vmatpush2.bf16.xpose.msra.mxu0 0
      %530 = vmatprep.mubr.bf16.mxu0 0
      %531 = vmatmul.mubr.bf16.gmra.mxu0 %v448
      %v532 = vpop.f32.mrf.mxu0
      %v533 = vadd.f32 %v237, %v532
      %v534 = vpop.f32.mrf.mxu0
      %v535 = vpop.f32.mrf.mxu0
      %v536 = vadd.f32 %v242, %v535
      %v537 = vpop.f32.mrf.mxu0
      %538 = vmatprep.mubr.bf16.mxu0 0
      %539 = vmatmul.mubr.bf16.gmra.mxu0 %v451
      %v540 = vpop.f32.mrf.mxu0
      %v541 = vadd.f32 %v247, %v540
      %v542 = vpop.f32.mrf.mxu0
      %v543 = vpop.f32.mrf.mxu0
      %v544 = vadd.f32 %v252, %v543
      %v545 = vpop.f32.mrf.mxu0
      %546 = vmatprep.mubr.bf16.mxu0 0
      %547 = vmatmul.mubr.bf16.gmra.mxu0 %v454
      %v548 = vpop.f32.mrf.mxu0
      %v549 = vadd.f32 %v257, %v548
      %v550 = vpop.f32.mrf.mxu0
      %v551 = vpop.f32.mrf.mxu0
      %v552 = vadd.f32 %v262, %v551
      %v553 = vpop.f32.mrf.mxu0
      %554 = vmatprep.mubr.bf16.mxu0 0
      %555 = vmatmul.mubr.bf16.gmra.mxu0 %v457
      %v556 = vpop.f32.mrf.mxu0
      %v557 = vadd.f32 %v267, %v556
      %v558 = vpop.f32.mrf.mxu0
      %v559 = vpop.f32.mrf.mxu0
      %v560 = vadd.f32 %v272, %v559
      %v561 = vpop.f32.mrf.mxu0
      %562 = vmatprep.mubr.bf16.mxu0 0
      %563 = vmatmul.mubr.bf16.gmra.mxu0 %v460
      %v564 = vpop.f32.mrf.mxu0
      %v565 = vadd.f32 %v277, %v564
      %v566 = vpop.f32.mrf.mxu0
      %v567 = vpop.f32.mrf.mxu0
      %v568 = vadd.f32 %v282, %v567
      %v569 = vpop.f32.mrf.mxu0
      %570 = vmatprep.mubr.bf16.mxu0 0
      %571 = vmatmul.mubr.bf16.gmra.mxu0 %v463
      %v572 = vpop.f32.mrf.mxu0
      %v573 = vadd.f32 %v287, %v572
      %v574 = vpop.f32.mrf.mxu0
      %v575 = vpop.f32.mrf.mxu0
      %v576 = vadd.f32 %v292, %v575
      %v577 = vpop.f32.mrf.mxu0
      %578 = vmatprep.mubr.bf16.mxu0 0
      %579 = vmatmul.mubr.bf16.gmra.mxu0 %v466
      %v580 = vpop.f32.mrf.mxu0
      %v581 = vadd.f32 %v297, %v580
      %v582 = vpop.f32.mrf.mxu0
      %v583 = vpop.f32.mrf.mxu0
      %v584 = vadd.f32 %v302, %v583
      %v585 = vpop.f32.mrf.mxu0
      %586 = vmatprep.mubr.bf16.mxu0 0
      %587 = vmatmul.mubr.bf16.gmra.mxu0 %v469
      %v588 = vpop.f32.mrf.mxu0
      %v589 = vadd.f32 %v307, %v588
      %v590 = vpop.f32.mrf.mxu0
      %v591 = vpop.f32.mrf.mxu0
      %v592 = vadd.f32 %v312, %v591
      %v593 = vpop.f32.mrf.mxu0
      %594 = vmatprep.mubr.bf16.mxu0 0
      %595 = vmatmul.mubr.bf16.gmra.mxu0 %v472
      %v596 = vpop.f32.mrf.mxu0
      %v597 = vadd.f32 %v317, %v596
      %v598 = vpop.f32.mrf.mxu0
      %v599 = vpop.f32.mrf.mxu0
      %v600 = vadd.f32 %v322, %v599
      %v601 = vpop.f32.mrf.mxu0
      %602 = vmatprep.mubr.bf16.mxu0 0
      %603 = vmatmul.mubr.bf16.gmra.mxu0 %v475
      %v604 = vpop.f32.mrf.mxu0
      %v605 = vadd.f32 %v327, %v604
      %v606 = vpop.f32.mrf.mxu0
      %v607 = vpop.f32.mrf.mxu0
      %v608 = vadd.f32 %v332, %v607
      %v609 = vpop.f32.mrf.mxu0
      %610 = vmatprep.mubr.bf16.mxu0 0
      %611 = vmatmul.mubr.bf16.gmra.mxu0 %v478
      %v612 = vpop.f32.mrf.mxu0
      %v613 = vadd.f32 %v337, %v612
      %v614 = vpop.f32.mrf.mxu0
      %v615 = vpop.f32.mrf.mxu0
      %v616 = vadd.f32 %v342, %v615
      %v617 = vpop.f32.mrf.mxu0
      %618 = vmatprep.mubr.bf16.mxu0 0
      %619 = vmatmul.mubr.bf16.gmra.mxu0 %v481
      %v620 = vpop.f32.mrf.mxu0
      %v621 = vadd.f32 %v347, %v620
      %v622 = vpop.f32.mrf.mxu0
      %v623 = vpop.f32.mrf.mxu0
      %v624 = vadd.f32 %v352, %v623
      %v625 = vpop.f32.mrf.mxu0
      %626 = vmatprep.mubr.bf16.mxu0 0
      %627 = vmatmul.mubr.bf16.gmra.mxu0 %v484
      %v628 = vpop.f32.mrf.mxu0
      %v629 = vadd.f32 %v357, %v628
      %v630 = vpop.f32.mrf.mxu0
      %v631 = vpop.f32.mrf.mxu0
      %v632 = vadd.f32 %v362, %v631
      %v633 = vpop.f32.mrf.mxu0
      %634 = vmatprep.mubr.bf16.mxu0 0
      %635 = vmatmul.mubr.bf16.gmra.mxu0 %v487
      %v636 = vpop.f32.mrf.mxu0
      %v637 = vadd.f32 %v367, %v636
      %v638 = vpop.f32.mrf.mxu0
      %v639 = vpop.f32.mrf.mxu0
      %v640 = vadd.f32 %v372, %v639
      %v641 = vpop.f32.mrf.mxu0
      %642 = vmatprep.mubr.bf16.mxu0 0
      %643 = vmatmul.mubr.bf16.gmra.mxu0 %v490
      %v644 = vpop.f32.mrf.mxu0
      %v645 = vadd.f32 %v377, %v644
      %v646 = vpop.f32.mrf.mxu0
      %v647 = vpop.f32.mrf.mxu0
      %v648 = vadd.f32 %v382, %v647
      %v649 = vpop.f32.mrf.mxu0
      %650 = vmatprep.mubr.bf16.mxu0 0
      %651 = vmatmul.mubr.bf16.gmra.mxu0 %v493
      %v652 = vpop.f32.mrf.mxu0
      %v653 = vadd.f32 %v387, %v652
      %v654 = vpop.f32.mrf.mxu0
      %v655 = vpop.f32.mrf.mxu0
      %v656 = vadd.f32 %v392, %v655
      %v657 = vpop.f32.mrf.mxu0
      %658 = vdwg.mxu0
      %v659 = vld [vmem:[%s3] sm:$0xff]
      %v660 = vld [vmem:[%s3 + $0x8] sm:$0xff]
      %v661 = vld [vmem:[%s3 + $0x10] sm:$0xff]
      %v662 = vld [vmem:[%s3 + $0x18] sm:$0xff]
      %v663 = vld [vmem:[%s3 + $0x20] sm:$0xff]
      %v664 = vld [vmem:[%s3 + $0x28] sm:$0xff]
      %v665 = vld [vmem:[%s3 + $0x30] sm:$0xff]
      %v666 = vld [vmem:[%s3 + $0x38] sm:$0xff]
      %v667 = vld [vmem:[%s3 + $0x40] sm:$0xff]
      %v668 = vld [vmem:[%s3 + $0x48] sm:$0xff]
      %v669 = vld [vmem:[%s3 + $0x50] sm:$0xff]
      %v670 = vld [vmem:[%s3 + $0x58] sm:$0xff]
      %v671 = vld [vmem:[%s3 + $0x60] sm:$0xff]
      %v672 = vld [vmem:[%s3 + $0x68] sm:$0xff]
      %v673 = vld [vmem:[%s3 + $0x70] sm:$0xff]
      %v674 = vld [vmem:[%s3 + $0x78] sm:$0xff]
      %v675 = vld [vmem:[%s3 + $0x80] sm:$0xff]
      %v676 = vld [vmem:[%s3 + $0x88] sm:$0xff]
      %v677 = vld [vmem:[%s3 + $0x90] sm:$0xff]
      %v678 = vld [vmem:[%s3 + $0x98] sm:$0xff]
      %vm679 = vcmask 64512
      %v681 = vsel %vm679, %v533, 0
      %v684 = vsel %vm679, %v536, 0
      %v687 = vsel %vm679, %v541, 0
      %v690 = vsel %vm679, %v544, 0
      %v693 = vsel %vm679, %v549, 0
      %v696 = vsel %vm679, %v552, 0
      %v699 = vsel %vm679, %v557, 0
      %v702 = vsel %vm679, %v560, 0
      %v705 = vsel %vm679, %v565, 0
      %v708 = vsel %vm679, %v568, 0
      %v711 = vsel %vm679, %v573, 0
      %v714 = vsel %vm679, %v576, 0
      %v717 = vsel %vm679, %v581, 0
      %v720 = vsel %vm679, %v584, 0
      %v723 = vsel %vm679, %v589, 0
      %v726 = vsel %vm679, %v592, 0
      %v729 = vsel %vm679, %v597, 0
      %v732 = vsel %vm679, %v600, 0
      %v735 = vsel %vm679, %v605, 0
      %v738 = vsel %vm679, %v608, 0
      %v741 = vsel %vm679, %v613, 0
      %v744 = vsel %vm679, %v616, 0
      %v747 = vsel %vm679, %v621, 0
      %v750 = vsel %vm679, %v624, 0
      %v753 = vsel %vm679, %v629, 0
      %v756 = vsel %vm679, %v632, 0
      %v759 = vsel %vm679, %v637, 0
      %v762 = vsel %vm679, %v640, 0
      %v765 = vsel %vm679, %v645, 0
      %v768 = vsel %vm679, %v648, 0
      %v771 = vsel %vm679, %v653, 0
      %v774 = vsel %vm679, %v656, 0
      %776 = vmatprep.subr.mxu0 0.0
      %777 = vmatpush1.msra.mxu0 0.0
      %778 = vmatprep.subr.mxu0 0.0
      %779 = vmatpush1.msra.mxu0 0.0
      %780 = vmatprep.subr.mxu0 0.0
      %781 = vmatpush1.msra.mxu0 0.0
      %782 = vmatprep.subr.mxu0 0.0
      %783 = vmatpush1.msra.mxu0 0.0
      %784 = vmatprep.subr.mxu0 0.0
      %785 = vmatpush1.msra.mxu0 0.0
      %786 = vmatprep.subr.mxu0 0.0
      %787 = vmatpush1.msra.mxu0 0.0
      %788 = vmatprep.subr.mxu0 0.0
      %789 = vmatpush1.msra.mxu0 0.0
      %790 = vmatprep.subr.mxu0 0.0
      %791 = vmatpush1.msra.mxu0 0.0
      %792 = vmatprep.subr.mxu0 0.0
      %793 = vmatpush1.msra.mxu0 0.0
      %794 = vmatprep.subr.mxu0 0.0
      %795 = vmatpush1.msra.mxu0 0.0
      %796 = vmatprep.subr.mxu0 0.0
      %797 = vmatpush1.msra.mxu0 0.0
      %798 = vmatprep.subr.mxu0 0.0
      %799 = vmatpush1.msra.mxu0 0.0
      %800 = vmatprep.subr.mxu0 0.0
      %801 = vmatpush1.msra.mxu0 0.0
      %802 = vmatprep.subr.mxu0 0.0
      %803 = vmatpush1.msra.mxu0 0.0
      %804 = vmatprep.subr.mxu0 0.0
      %805 = vmatpush1.msra.mxu0 0.0
      %806 = vmatprep.subr.mxu0 %v660
      %807 = vmatpush1.msra.mxu0 %v659
      %808 = vmatprep.subr.mxu0 0.0
      %809 = vmatpush2.msra.mxu0 0.0
      %810 = vmatprep.subr.mxu0 0.0
      %811 = vmatpush2.msra.mxu0 0.0
      %812 = vmatprep.subr.mxu0 0.0
      %813 = vmatpush2.msra.mxu0 0.0
      %814 = vmatprep.subr.mxu0 0.0
      %815 = vmatpush2.msra.mxu0 0.0
      %816 = vmatprep.subr.mxu0 0.0
      %817 = vmatpush2.msra.mxu0 0.0
      %818 = vmatprep.subr.mxu0 0.0
      %819 = vmatpush2.msra.mxu0 0.0
      %820 = vmatprep.subr.mxu0 0.0
      %821 = vmatpush2.msra.mxu0 0.0
      %822 = vmatprep.subr.mxu0 0.0
      %823 = vmatpush2.msra.mxu0 0.0
      %824 = vmatprep.subr.mxu0 0.0
      %825 = vmatpush2.msra.mxu0 0.0
      %826 = vmatprep.subr.mxu0 0.0
      %827 = vmatpush2.msra.mxu0 0.0
      %828 = vmatprep.subr.mxu0 0.0
      %829 = vmatpush2.msra.mxu0 0.0
      %830 = vmatprep.subr.mxu0 0.0
      %831 = vmatpush2.msra.mxu0 0.0
      %832 = vmatprep.subr.mxu0 0.0
      %833 = vmatpush2.msra.mxu0 0.0
      %834 = vmatprep.subr.mxu0 0.0
      %835 = vmatpush2.msra.mxu0 0.0
      %836 = vmatprep.subr.mxu0 0.0
      %837 = vmatpush2.msra.mxu0 0.0
      %838 = vmatprep.subr.mxu0 0.0
      %839 = vmatpush2.msra.mxu0 0.0
      %840 = vmatprep.mubr.f32.mxu0 0.0
      %841 = vmatmul.mubr.f32.gmra.mxu0 %v681
      %v842 = vpop.f32.mrf.mxu0
      %v843 = vadd.f32 0.0, %v842
      %v844 = vpop.f32.mrf.mxu0
      %v845 = vadd.f32 0.0, %v844
      %846 = vmatprep.mubr.f32.mxu0 0.0
      %847 = vmatmul.mubr.f32.gmra.mxu0 %v684
      %v848 = vpop.f32.mrf.mxu0
      %v849 = vadd.f32 0.0, %v848
      %v850 = vpop.f32.mrf.mxu0
      %v851 = vadd.f32 0.0, %v850
      %852 = vmatprep.mubr.f32.mxu0 0.0
      %853 = vmatmul.mubr.f32.gmra.mxu0 %v687
      %v854 = vpop.f32.mrf.mxu0
      %v855 = vadd.f32 0.0, %v854
      %v856 = vpop.f32.mrf.mxu0
      %v857 = vadd.f32 0.0, %v856
      %858 = vmatprep.mubr.f32.mxu0 0.0
      %859 = vmatmul.mubr.f32.gmra.mxu0 %v690
      %v860 = vpop.f32.mrf.mxu0
      %v861 = vadd.f32 0.0, %v860
      %v862 = vpop.f32.mrf.mxu0
      %v863 = vadd.f32 0.0, %v862
      %864 = vmatprep.mubr.f32.mxu0 0.0
      %865 = vmatmul.mubr.f32.gmra.mxu0 %v693
      %v866 = vpop.f32.mrf.mxu0
      %v867 = vadd.f32 0.0, %v866
      %v868 = vpop.f32.mrf.mxu0
      %v869 = vadd.f32 0.0, %v868
      %870 = vmatprep.mubr.f32.mxu0 0.0
      %871 = vmatmul.mubr.f32.gmra.mxu0 %v696
      %v872 = vpop.f32.mrf.mxu0
      %v873 = vadd.f32 0.0, %v872
      %v874 = vpop.f32.mrf.mxu0
      %v875 = vadd.f32 0.0, %v874
      %876 = vmatprep.mubr.f32.mxu0 0.0
      %877 = vmatmul.mubr.f32.gmra.mxu0 %v699
      %v878 = vpop.f32.mrf.mxu0
      %v879 = vadd.f32 0.0, %v878
      %v880 = vpop.f32.mrf.mxu0
      %v881 = vadd.f32 0.0, %v880
      %882 = vmatprep.mubr.f32.mxu0 0.0
      %883 = vmatmul.mubr.f32.gmra.mxu0 %v702
      %v884 = vpop.f32.mrf.mxu0
      %v885 = vadd.f32 0.0, %v884
      %v886 = vpop.f32.mrf.mxu0
      %v887 = vadd.f32 0.0, %v886
      %888 = vmatprep.mubr.f32.mxu0 0.0
      %889 = vmatmul.mubr.f32.gmra.mxu0 %v705
      %v890 = vpop.f32.mrf.mxu0
      %v891 = vadd.f32 0.0, %v890
      %v892 = vpop.f32.mrf.mxu0
      %v893 = vadd.f32 0.0, %v892
      %894 = vmatprep.mubr.f32.mxu0 0.0
      %895 = vmatmul.mubr.f32.gmra.mxu0 %v708
      %v896 = vpop.f32.mrf.mxu0
      %v897 = vadd.f32 0.0, %v896
      %v898 = vpop.f32.mrf.mxu0
      %v899 = vadd.f32 0.0, %v898
      %900 = vmatprep.mubr.f32.mxu0 0.0
      %901 = vmatmul.mubr.f32.gmra.mxu0 %v711
      %v902 = vpop.f32.mrf.mxu0
      %v903 = vadd.f32 0.0, %v902
      %v904 = vpop.f32.mrf.mxu0
      %v905 = vadd.f32 0.0, %v904
      %906 = vmatprep.mubr.f32.mxu0 0.0
      %907 = vmatmul.mubr.f32.gmra.mxu0 %v714
      %v908 = vpop.f32.mrf.mxu0
      %v909 = vadd.f32 0.0, %v908
      %v910 = vpop.f32.mrf.mxu0
      %v911 = vadd.f32 0.0, %v910
      %912 = vmatprep.mubr.f32.mxu0 0.0
      %913 = vmatmul.mubr.f32.gmra.mxu0 %v717
      %v914 = vpop.f32.mrf.mxu0
      %v915 = vadd.f32 0.0, %v914
      %v916 = vpop.f32.mrf.mxu0
      %v917 = vadd.f32 0.0, %v916
      %918 = vmatprep.mubr.f32.mxu0 0.0
      %919 = vmatmul.mubr.f32.gmra.mxu0 %v720
      %v920 = vpop.f32.mrf.mxu0
      %v921 = vadd.f32 0.0, %v920
      %v922 = vpop.f32.mrf.mxu0
      %v923 = vadd.f32 0.0, %v922
      %924 = vmatprep.mubr.f32.mxu0 0.0
      %925 = vmatmul.mubr.f32.gmra.mxu0 %v723
      %v926 = vpop.f32.mrf.mxu0
      %v927 = vadd.f32 0.0, %v926
      %v928 = vpop.f32.mrf.mxu0
      %v929 = vadd.f32 0.0, %v928
      %930 = vmatprep.mubr.f32.mxu0 0.0
      %931 = vmatmul.mubr.f32.gmra.mxu0 %v726
      %v932 = vpop.f32.mrf.mxu0
      %v933 = vadd.f32 0.0, %v932
      %v934 = vpop.f32.mrf.mxu0
      %v935 = vadd.f32 0.0, %v934
      %936 = vmatprep.mubr.f32.mxu0 0.0
      %937 = vmatmul.mubr.f32.gmra.mxu0 %v729
      %v938 = vpop.f32.mrf.mxu0
      %v939 = vadd.f32 0.0, %v938
      %v940 = vpop.f32.mrf.mxu0
      %v941 = vadd.f32 0.0, %v940
      %942 = vmatprep.mubr.f32.mxu0 0.0
      %943 = vmatmul.mubr.f32.gmra.mxu0 %v732
      %v944 = vpop.f32.mrf.mxu0
      %v945 = vadd.f32 0.0, %v944
      %v946 = vpop.f32.mrf.mxu0
      %v947 = vadd.f32 0.0, %v946
      %948 = vmatprep.mubr.f32.mxu0 0.0
      %949 = vmatmul.mubr.f32.gmra.mxu0 %v735
      %v950 = vpop.f32.mrf.mxu0
      %v951 = vadd.f32 0.0, %v950
      %v952 = vpop.f32.mrf.mxu0
      %v953 = vadd.f32 0.0, %v952
      %954 = vmatprep.mubr.f32.mxu0 0.0
      %955 = vmatmul.mubr.f32.gmra.mxu0 %v738
      %v956 = vpop.f32.mrf.mxu0
      %v957 = vadd.f32 0.0, %v956
      %v958 = vpop.f32.mrf.mxu0
      %v959 = vadd.f32 0.0, %v958
      %960 = vmatprep.mubr.f32.mxu0 0.0
      %961 = vmatmul.mubr.f32.gmra.mxu0 %v741
      %v962 = vpop.f32.mrf.mxu0
      %v963 = vadd.f32 0.0, %v962
      %v964 = vpop.f32.mrf.mxu0
      %v965 = vadd.f32 0.0, %v964
      %966 = vmatprep.mubr.f32.mxu0 0.0
      %967 = vmatmul.mubr.f32.gmra.mxu0 %v744
      %v968 = vpop.f32.mrf.mxu0
      %v969 = vadd.f32 0.0, %v968
      %v970 = vpop.f32.mrf.mxu0
      %v971 = vadd.f32 0.0, %v970
      %972 = vmatprep.mubr.f32.mxu0 0.0
      %973 = vmatmul.mubr.f32.gmra.mxu0 %v747
      %v974 = vpop.f32.mrf.mxu0
      %v975 = vadd.f32 0.0, %v974
      %v976 = vpop.f32.mrf.mxu0
      %v977 = vadd.f32 0.0, %v976
      %978 = vmatprep.mubr.f32.mxu0 0.0
      %979 = vmatmul.mubr.f32.gmra.mxu0 %v750
      %v980 = vpop.f32.mrf.mxu0
      %v981 = vadd.f32 0.0, %v980
      %v982 = vpop.f32.mrf.mxu0
      %v983 = vadd.f32 0.0, %v982
      %984 = vmatprep.mubr.f32.mxu0 0.0
      %985 = vmatmul.mubr.f32.gmra.mxu0 %v753
      %v986 = vpop.f32.mrf.mxu0
      %v987 = vadd.f32 0.0, %v986
      %v988 = vpop.f32.mrf.mxu0
      %v989 = vadd.f32 0.0, %v988
      %990 = vmatprep.mubr.f32.mxu0 0.0
      %991 = vmatmul.mubr.f32.gmra.mxu0 %v756
      %v992 = vpop.f32.mrf.mxu0
      %v993 = vadd.f32 0.0, %v992
      %v994 = vpop.f32.mrf.mxu0
      %v995 = vadd.f32 0.0, %v994
      %996 = vmatprep.mubr.f32.mxu0 0.0
      %997 = vmatmul.mubr.f32.gmra.mxu0 %v759
      %v998 = vpop.f32.mrf.mxu0
      %v999 = vadd.f32 0.0, %v998
      %v1000 = vpop.f32.mrf.mxu0
      %v1001 = vadd.f32 0.0, %v1000
      %1002 = vmatprep.mubr.f32.mxu0 0.0
      %1003 = vmatmul.mubr.f32.gmra.mxu0 %v762
      %v1004 = vpop.f32.mrf.mxu0
      %v1005 = vadd.f32 0.0, %v1004
      %v1006 = vpop.f32.mrf.mxu0
      %v1007 = vadd.f32 0.0, %v1006
      %1008 = vmatprep.mubr.f32.mxu0 0.0
      %1009 = vmatmul.mubr.f32.gmra.mxu0 %v765
      %v1010 = vpop.f32.mrf.mxu0
      %v1011 = vadd.f32 0.0, %v1010
      %v1012 = vpop.f32.mrf.mxu0
      %v1013 = vadd.f32 0.0, %v1012
      %1014 = vmatprep.mubr.f32.mxu0 0.0
      %1015 = vmatmul.mubr.f32.gmra.mxu0 %v768
      %v1016 = vpop.f32.mrf.mxu0
      %v1017 = vadd.f32 0.0, %v1016
      %v1018 = vpop.f32.mrf.mxu0
      %v1019 = vadd.f32 0.0, %v1018
      %1020 = vmatprep.mubr.f32.mxu0 0.0
      %1021 = vmatmul.mubr.f32.gmra.mxu0 %v771
      %v1022 = vpop.f32.mrf.mxu0
      %v1023 = vadd.f32 0.0, %v1022
      %v1024 = vpop.f32.mrf.mxu0
      %v1025 = vadd.f32 0.0, %v1024
      %1026 = vmatprep.mubr.f32.mxu0 0.0
      %1027 = vmatmul.mubr.f32.gmra.mxu0 %v774
      %v1028 = vpop.f32.mrf.mxu0
      %v1029 = vadd.f32 0.0, %v1028
      %v1030 = vpop.f32.mrf.mxu0
      %v1031 = vadd.f32 0.0, %v1030
      %1032 = vdwg.mxu0
      %1033 = vmatprep.subr.mxu0 0.0
      %1034 = vmatpush1.msra.mxu0 0.0
      %1035 = vmatprep.subr.mxu0 0.0
      %1036 = vmatpush1.msra.mxu0 0.0
      %1037 = vmatprep.subr.mxu0 0.0
      %1038 = vmatpush1.msra.mxu0 0.0
      %1039 = vmatprep.subr.mxu0 0.0
      %1040 = vmatpush1.msra.mxu0 0.0
      %1041 = vmatprep.subr.mxu0 0.0
      %1042 = vmatpush1.msra.mxu0 0.0
      %1043 = vmatprep.subr.mxu0 0.0
      %1044 = vmatpush1.msra.mxu0 0.0
      %1045 = vmatprep.subr.mxu0 0.0
      %1046 = vmatpush1.msra.mxu0 0.0
      %1047 = vmatprep.subr.mxu0 0.0
      %1048 = vmatpush1.msra.mxu0 0.0
      %1049 = vmatprep.subr.mxu0 0.0
      %1050 = vmatpush1.msra.mxu0 0.0
      %1051 = vmatprep.subr.mxu0 0.0
      %1052 = vmatpush1.msra.mxu0 0.0
      %1053 = vmatprep.subr.mxu0 0.0
      %1054 = vmatpush1.msra.mxu0 0.0
      %1055 = vmatprep.subr.mxu0 0.0
      %1056 = vmatpush1.msra.mxu0 0.0
      %1057 = vmatprep.subr.mxu0 0.0
      %1058 = vmatpush1.msra.mxu0 0.0
      %1059 = vmatprep.subr.mxu0 0.0
      %1060 = vmatpush1.msra.mxu0 0.0
      %1061 = vmatprep.subr.mxu0 0.0
      %1062 = vmatpush1.msra.mxu0 0.0
      %1063 = vmatprep.subr.mxu0 %v662
      %1064 = vmatpush1.msra.mxu0 %v661
      %1065 = vmatprep.subr.mxu0 0.0
      %1066 = vmatpush2.msra.mxu0 0.0
      %1067 = vmatprep.subr.mxu0 0.0
      %1068 = vmatpush2.msra.mxu0 0.0
      %1069 = vmatprep.subr.mxu0 0.0
      %1070 = vmatpush2.msra.mxu0 0.0
      %1071 = vmatprep.subr.mxu0 0.0
      %1072 = vmatpush2.msra.mxu0 0.0
      %1073 = vmatprep.subr.mxu0 0.0
      %1074 = vmatpush2.msra.mxu0 0.0
      %1075 = vmatprep.subr.mxu0 0.0
      %1076 = vmatpush2.msra.mxu0 0.0
      %1077 = vmatprep.subr.mxu0 0.0
      %1078 = vmatpush2.msra.mxu0 0.0
      %1079 = vmatprep.subr.mxu0 0.0
      %1080 = vmatpush2.msra.mxu0 0.0
      %1081 = vmatprep.subr.mxu0 0.0
      %1082 = vmatpush2.msra.mxu0 0.0
      %1083 = vmatprep.subr.mxu0 0.0
      %1084 = vmatpush2.msra.mxu0 0.0
      %1085 = vmatprep.subr.mxu0 0.0
      %1086 = vmatpush2.msra.mxu0 0.0
      %1087 = vmatprep.subr.mxu0 0.0
      %1088 = vmatpush2.msra.mxu0 0.0
      %1089 = vmatprep.subr.mxu0 0.0
      %1090 = vmatpush2.msra.mxu0 0.0
      %1091 = vmatprep.subr.mxu0 0.0
      %1092 = vmatpush2.msra.mxu0 0.0
      %1093 = vmatprep.subr.mxu0 0.0
      %1094 = vmatpush2.msra.mxu0 0.0
      %1095 = vmatprep.subr.mxu0 0.0
      %1096 = vmatpush2.msra.mxu0 0.0
      %1097 = vmatprep.mubr.f32.mxu0 0.0
      %1098 = vmatmul.mubr.f32.gmra.mxu0 %v681
      %v1099 = vpop.f32.mrf.mxu0
      %v1100 = vadd.f32 0.0, %v1099
      %v1101 = vpop.f32.mrf.mxu0
      %v1102 = vadd.f32 0.0, %v1101
      %1103 = vmatprep.mubr.f32.mxu0 0.0
      %1104 = vmatmul.mubr.f32.gmra.mxu0 %v684
      %v1105 = vpop.f32.mrf.mxu0
      %v1106 = vadd.f32 0.0, %v1105
      %v1107 = vpop.f32.mrf.mxu0
      %v1108 = vadd.f32 0.0, %v1107
      %1109 = vmatprep.mubr.f32.mxu0 0.0
      %1110 = vmatmul.mubr.f32.gmra.mxu0 %v687
      %v1111 = vpop.f32.mrf.mxu0
      %v1112 = vadd.f32 0.0, %v1111
      %v1113 = vpop.f32.mrf.mxu0
      %v1114 = vadd.f32 0.0, %v1113
      %1115 = vmatprep.mubr.f32.mxu0 0.0
      %1116 = vmatmul.mubr.f32.gmra.mxu0 %v690
      %v1117 = vpop.f32.mrf.mxu0
      %v1118 = vadd.f32 0.0, %v1117
      %v1119 = vpop.f32.mrf.mxu0
      %v1120 = vadd.f32 0.0, %v1119
      %1121 = vmatprep.mubr.f32.mxu0 0.0
      %1122 = vmatmul.mubr.f32.gmra.mxu0 %v693
      %v1123 = vpop.f32.mrf.mxu0
      %v1124 = vadd.f32 0.0, %v1123
      %v1125 = vpop.f32.mrf.mxu0
      %v1126 = vadd.f32 0.0, %v1125
      %1127 = vmatprep.mubr.f32.mxu0 0.0
      %1128 = vmatmul.mubr.f32.gmra.mxu0 %v696
      %v1129 = vpop.f32.mrf.mxu0
      %v1130 = vadd.f32 0.0, %v1129
      %v1131 = vpop.f32.mrf.mxu0
      %v1132 = vadd.f32 0.0, %v1131
      %1133 = vmatprep.mubr.f32.mxu0 0.0
      %1134 = vmatmul.mubr.f32.gmra.mxu0 %v699
      %v1135 = vpop.f32.mrf.mxu0
      %v1136 = vadd.f32 0.0, %v1135
      %v1137 = vpop.f32.mrf.mxu0
      %v1138 = vadd.f32 0.0, %v1137
      %1139 = vmatprep.mubr.f32.mxu0 0.0
      %1140 = vmatmul.mubr.f32.gmra.mxu0 %v702
      %v1141 = vpop.f32.mrf.mxu0
      %v1142 = vadd.f32 0.0, %v1141
      %v1143 = vpop.f32.mrf.mxu0
      %v1144 = vadd.f32 0.0, %v1143
      %1145 = vmatprep.mubr.f32.mxu0 0.0
      %1146 = vmatmul.mubr.f32.gmra.mxu0 %v705
      %v1147 = vpop.f32.mrf.mxu0
      %v1148 = vadd.f32 0.0, %v1147
      %v1149 = vpop.f32.mrf.mxu0
      %v1150 = vadd.f32 0.0, %v1149
      %1151 = vmatprep.mubr.f32.mxu0 0.0
      %1152 = vmatmul.mubr.f32.gmra.mxu0 %v708
      %v1153 = vpop.f32.mrf.mxu0
      %v1154 = vadd.f32 0.0, %v1153
      %v1155 = vpop.f32.mrf.mxu0
      %v1156 = vadd.f32 0.0, %v1155
      %1157 = vmatprep.mubr.f32.mxu0 0.0
      %1158 = vmatmul.mubr.f32.gmra.mxu0 %v711
      %v1159 = vpop.f32.mrf.mxu0
      %v1160 = vadd.f32 0.0, %v1159
      %v1161 = vpop.f32.mrf.mxu0
      %v1162 = vadd.f32 0.0, %v1161
      %1163 = vmatprep.mubr.f32.mxu0 0.0
      %1164 = vmatmul.mubr.f32.gmra.mxu0 %v714
      %v1165 = vpop.f32.mrf.mxu0
      %v1166 = vadd.f32 0.0, %v1165
      %v1167 = vpop.f32.mrf.mxu0
      %v1168 = vadd.f32 0.0, %v1167
      %1169 = vmatprep.mubr.f32.mxu0 0.0
      %1170 = vmatmul.mubr.f32.gmra.mxu0 %v717
      %v1171 = vpop.f32.mrf.mxu0
      %v1172 = vadd.f32 0.0, %v1171
      %v1173 = vpop.f32.mrf.mxu0
      %v1174 = vadd.f32 0.0, %v1173
      %1175 = vmatprep.mubr.f32.mxu0 0.0
      %1176 = vmatmul.mubr.f32.gmra.mxu0 %v720
      %v1177 = vpop.f32.mrf.mxu0
      %v1178 = vadd.f32 0.0, %v1177
      %v1179 = vpop.f32.mrf.mxu0
      %v1180 = vadd.f32 0.0, %v1179
      %1181 = vmatprep.mubr.f32.mxu0 0.0
      %1182 = vmatmul.mubr.f32.gmra.mxu0 %v723
      %v1183 = vpop.f32.mrf.mxu0
      %v1184 = vadd.f32 0.0, %v1183
      %v1185 = vpop.f32.mrf.mxu0
      %v1186 = vadd.f32 0.0, %v1185
      %1187 = vmatprep.mubr.f32.mxu0 0.0
      %1188 = vmatmul.mubr.f32.gmra.mxu0 %v726
      %v1189 = vpop.f32.mrf.mxu0
      %v1190 = vadd.f32 0.0, %v1189
      %v1191 = vpop.f32.mrf.mxu0
      %v1192 = vadd.f32 0.0, %v1191
      %1193 = vmatprep.mubr.f32.mxu0 0.0
      %1194 = vmatmul.mubr.f32.gmra.mxu0 %v729
      %v1195 = vpop.f32.mrf.mxu0
      %v1196 = vadd.f32 0.0, %v1195
      %v1197 = vpop.f32.mrf.mxu0
      %v1198 = vadd.f32 0.0, %v1197
      %1199 = vmatprep.mubr.f32.mxu0 0.0
      %1200 = vmatmul.mubr.f32.gmra.mxu0 %v732
      %v1201 = vpop.f32.mrf.mxu0
      %v1202 = vadd.f32 0.0, %v1201
      %v1203 = vpop.f32.mrf.mxu0
      %v1204 = vadd.f32 0.0, %v1203
      %1205 = vmatprep.mubr.f32.mxu0 0.0
      %1206 = vmatmul.mubr.f32.gmra.mxu0 %v735
      %v1207 = vpop.f32.mrf.mxu0
      %v1208 = vadd.f32 0.0, %v1207
      %v1209 = vpop.f32.mrf.mxu0
      %v1210 = vadd.f32 0.0, %v1209
      %1211 = vmatprep.mubr.f32.mxu0 0.0
      %1212 = vmatmul.mubr.f32.gmra.mxu0 %v738
      %v1213 = vpop.f32.mrf.mxu0
      %v1214 = vadd.f32 0.0, %v1213
      %v1215 = vpop.f32.mrf.mxu0
      %v1216 = vadd.f32 0.0, %v1215
      %1217 = vmatprep.mubr.f32.mxu0 0.0
      %1218 = vmatmul.mubr.f32.gmra.mxu0 %v741
      %v1219 = vpop.f32.mrf.mxu0
      %v1220 = vadd.f32 0.0, %v1219
      %v1221 = vpop.f32.mrf.mxu0
      %v1222 = vadd.f32 0.0, %v1221
      %1223 = vmatprep.mubr.f32.mxu0 0.0
      %1224 = vmatmul.mubr.f32.gmra.mxu0 %v744
      %v1225 = vpop.f32.mrf.mxu0
      %v1226 = vadd.f32 0.0, %v1225
      %v1227 = vpop.f32.mrf.mxu0
      %v1228 = vadd.f32 0.0, %v1227
      %1229 = vmatprep.mubr.f32.mxu0 0.0
      %1230 = vmatmul.mubr.f32.gmra.mxu0 %v747
      %v1231 = vpop.f32.mrf.mxu0
      %v1232 = vadd.f32 0.0, %v1231
      %v1233 = vpop.f32.mrf.mxu0
      %v1234 = vadd.f32 0.0, %v1233
      %1235 = vmatprep.mubr.f32.mxu0 0.0
      %1236 = vmatmul.mubr.f32.gmra.mxu0 %v750
      %v1237 = vpop.f32.mrf.mxu0
      %v1238 = vadd.f32 0.0, %v1237
      %v1239 = vpop.f32.mrf.mxu0
      %v1240 = vadd.f32 0.0, %v1239
      %1241 = vmatprep.mubr.f32.mxu0 0.0
      %1242 = vmatmul.mubr.f32.gmra.mxu0 %v753
      %v1243 = vpop.f32.mrf.mxu0
      %v1244 = vadd.f32 0.0, %v1243
      %v1245 = vpop.f32.mrf.mxu0
      %v1246 = vadd.f32 0.0, %v1245
      %1247 = vmatprep.mubr.f32.mxu0 0.0
      %1248 = vmatmul.mubr.f32.gmra.mxu0 %v756
      %v1249 = vpop.f32.mrf.mxu0
      %v1250 = vadd.f32 0.0, %v1249
      %v1251 = vpop.f32.mrf.mxu0
      %v1252 = vadd.f32 0.0, %v1251
      %1253 = vmatprep.mubr.f32.mxu0 0.0
      %1254 = vmatmul.mubr.f32.gmra.mxu0 %v759
      %v1255 = vpop.f32.mrf.mxu0
      %v1256 = vadd.f32 0.0, %v1255
      %v1257 = vpop.f32.mrf.mxu0
      %v1258 = vadd.f32 0.0, %v1257
      %1259 = vmatprep.mubr.f32.mxu0 0.0
      %1260 = vmatmul.mubr.f32.gmra.mxu0 %v762
      %v1261 = vpop.f32.mrf.mxu0
      %v1262 = vadd.f32 0.0, %v1261
      %v1263 = vpop.f32.mrf.mxu0
      %v1264 = vadd.f32 0.0, %v1263
      %1265 = vmatprep.mubr.f32.mxu0 0.0
      %1266 = vmatmul.mubr.f32.gmra.mxu0 %v765
      %v1267 = vpop.f32.mrf.mxu0
      %v1268 = vadd.f32 0.0, %v1267
      %v1269 = vpop.f32.mrf.mxu0
      %v1270 = vadd.f32 0.0, %v1269
      %1271 = vmatprep.mubr.f32.mxu0 0.0
      %1272 = vmatmul.mubr.f32.gmra.mxu0 %v768
      %v1273 = vpop.f32.mrf.mxu0
      %v1274 = vadd.f32 0.0, %v1273
      %v1275 = vpop.f32.mrf.mxu0
      %v1276 = vadd.f32 0.0, %v1275
      %1277 = vmatprep.mubr.f32.mxu0 0.0
      %1278 = vmatmul.mubr.f32.gmra.mxu0 %v771
      %v1279 = vpop.f32.mrf.mxu0
      %v1280 = vadd.f32 0.0, %v1279
      %v1281 = vpop.f32.mrf.mxu0
      %v1282 = vadd.f32 0.0, %v1281
      %1283 = vmatprep.mubr.f32.mxu0 0.0
      %1284 = vmatmul.mubr.f32.gmra.mxu0 %v774
      %v1285 = vpop.f32.mrf.mxu0
      %v1286 = vadd.f32 0.0, %v1285
      %v1287 = vpop.f32.mrf.mxu0
      %v1288 = vadd.f32 0.0, %v1287
      %1289 = vdwg.mxu0
      %1290 = vmatprep.subr.mxu0 0.0
      %1291 = vmatpush1.msra.mxu0 0.0
      %1292 = vmatprep.subr.mxu0 0.0
      %1293 = vmatpush1.msra.mxu0 0.0
      %1294 = vmatprep.subr.mxu0 0.0
      %1295 = vmatpush1.msra.mxu0 0.0
      %1296 = vmatprep.subr.mxu0 0.0
      %1297 = vmatpush1.msra.mxu0 0.0
      %1298 = vmatprep.subr.mxu0 0.0
      %1299 = vmatpush1.msra.mxu0 0.0
      %1300 = vmatprep.subr.mxu0 0.0
      %1301 = vmatpush1.msra.mxu0 0.0
      %1302 = vmatprep.subr.mxu0 0.0
      %1303 = vmatpush1.msra.mxu0 0.0
      %1304 = vmatprep.subr.mxu0 0.0
      %1305 = vmatpush1.msra.mxu0 0.0
      %1306 = vmatprep.subr.mxu0 0.0
      %1307 = vmatpush1.msra.mxu0 0.0
      %1308 = vmatprep.subr.mxu0 0.0
      %1309 = vmatpush1.msra.mxu0 0.0
      %1310 = vmatprep.subr.mxu0 0.0
      %1311 = vmatpush1.msra.mxu0 0.0
      %1312 = vmatprep.subr.mxu0 0.0
      %1313 = vmatpush1.msra.mxu0 0.0
      %1314 = vmatprep.subr.mxu0 0.0
      %1315 = vmatpush1.msra.mxu0 0.0
      %1316 = vmatprep.subr.mxu0 0.0
      %1317 = vmatpush1.msra.mxu0 0.0
      %1318 = vmatprep.subr.mxu0 0.0
      %1319 = vmatpush1.msra.mxu0 0.0
      %1320 = vmatprep.subr.mxu0 %v664
      %1321 = vmatpush1.msra.mxu0 %v663
      %1322 = vmatprep.subr.mxu0 0.0
      %1323 = vmatpush2.msra.mxu0 0.0
      %1324 = vmatprep.subr.mxu0 0.0
      %1325 = vmatpush2.msra.mxu0 0.0
      %1326 = vmatprep.subr.mxu0 0.0
      %1327 = vmatpush2.msra.mxu0 0.0
      %1328 = vmatprep.subr.mxu0 0.0
      %1329 = vmatpush2.msra.mxu0 0.0
      %1330 = vmatprep.subr.mxu0 0.0
      %1331 = vmatpush2.msra.mxu0 0.0
      %1332 = vmatprep.subr.mxu0 0.0
      %1333 = vmatpush2.msra.mxu0 0.0
      %1334 = vmatprep.subr.mxu0 0.0
      %1335 = vmatpush2.msra.mxu0 0.0
      %1336 = vmatprep.subr.mxu0 0.0
      %1337 = vmatpush2.msra.mxu0 0.0
      %1338 = vmatprep.subr.mxu0 0.0
      %1339 = vmatpush2.msra.mxu0 0.0
      %1340 = vmatprep.subr.mxu0 0.0
      %1341 = vmatpush2.msra.mxu0 0.0
      %1342 = vmatprep.subr.mxu0 0.0
      %1343 = vmatpush2.msra.mxu0 0.0
      %1344 = vmatprep.subr.mxu0 0.0
      %1345 = vmatpush2.msra.mxu0 0.0
      %1346 = vmatprep.subr.mxu0 0.0
      %1347 = vmatpush2.msra.mxu0 0.0
      %1348 = vmatprep.subr.mxu0 0.0
      %1349 = vmatpush2.msra.mxu0 0.0
      %1350 = vmatprep.subr.mxu0 0.0
      %1351 = vmatpush2.msra.mxu0 0.0
      %1352 = vmatprep.subr.mxu0 0.0
      %1353 = vmatpush2.msra.mxu0 0.0
      %1354 = vmatprep.mubr.f32.mxu0 0.0
      %1355 = vmatmul.mubr.f32.gmra.mxu0 %v681
      %v1356 = vpop.f32.mrf.mxu0
      %v1357 = vadd.f32 0.0, %v1356
      %v1358 = vpop.f32.mrf.mxu0
      %v1359 = vadd.f32 0.0, %v1358
      %1360 = vmatprep.mubr.f32.mxu0 0.0
      %1361 = vmatmul.mubr.f32.gmra.mxu0 %v684
      %v1362 = vpop.f32.mrf.mxu0
      %v1363 = vadd.f32 0.0, %v1362
      %v1364 = vpop.f32.mrf.mxu0
      %v1365 = vadd.f32 0.0, %v1364
      %1366 = vmatprep.mubr.f32.mxu0 0.0
      %1367 = vmatmul.mubr.f32.gmra.mxu0 %v687
      %v1368 = vpop.f32.mrf.mxu0
      %v1369 = vadd.f32 0.0, %v1368
      %v1370 = vpop.f32.mrf.mxu0
      %v1371 = vadd.f32 0.0, %v1370
      %1372 = vmatprep.mubr.f32.mxu0 0.0
      %1373 = vmatmul.mubr.f32.gmra.mxu0 %v690
      %v1374 = vpop.f32.mrf.mxu0
      %v1375 = vadd.f32 0.0, %v1374
      %v1376 = vpop.f32.mrf.mxu0
      %v1377 = vadd.f32 0.0, %v1376
      %1378 = vmatprep.mubr.f32.mxu0 0.0
      %1379 = vmatmul.mubr.f32.gmra.mxu0 %v693
      %v1380 = vpop.f32.mrf.mxu0
      %v1381 = vadd.f32 0.0, %v1380
      %v1382 = vpop.f32.mrf.mxu0
      %v1383 = vadd.f32 0.0, %v1382
      %1384 = vmatprep.mubr.f32.mxu0 0.0
      %1385 = vmatmul.mubr.f32.gmra.mxu0 %v696
      %v1386 = vpop.f32.mrf.mxu0
      %v1387 = vadd.f32 0.0, %v1386
      %v1388 = vpop.f32.mrf.mxu0
      %v1389 = vadd.f32 0.0, %v1388
      %1390 = vmatprep.mubr.f32.mxu0 0.0
      %1391 = vmatmul.mubr.f32.gmra.mxu0 %v699
      %v1392 = vpop.f32.mrf.mxu0
      %v1393 = vadd.f32 0.0, %v1392
      %v1394 = vpop.f32.mrf.mxu0
      %v1395 = vadd.f32 0.0, %v1394
      %1396 = vmatprep.mubr.f32.mxu0 0.0
      %1397 = vmatmul.mubr.f32.gmra.mxu0 %v702
      %v1398 = vpop.f32.mrf.mxu0
      %v1399 = vadd.f32 0.0, %v1398
      %v1400 = vpop.f32.mrf.mxu0
      %v1401 = vadd.f32 0.0, %v1400
      %1402 = vmatprep.mubr.f32.mxu0 0.0
      %1403 = vmatmul.mubr.f32.gmra.mxu0 %v705
      %v1404 = vpop.f32.mrf.mxu0
      %v1405 = vadd.f32 0.0, %v1404
      %v1406 = vpop.f32.mrf.mxu0
      %v1407 = vadd.f32 0.0, %v1406
      %1408 = vmatprep.mubr.f32.mxu0 0.0
      %1409 = vmatmul.mubr.f32.gmra.mxu0 %v708
      %v1410 = vpop.f32.mrf.mxu0
      %v1411 = vadd.f32 0.0, %v1410
      %v1412 = vpop.f32.mrf.mxu0
      %v1413 = vadd.f32 0.0, %v1412
      %1414 = vmatprep.mubr.f32.mxu0 0.0
      %1415 = vmatmul.mubr.f32.gmra.mxu0 %v711
      %v1416 = vpop.f32.mrf.mxu0
      %v1417 = vadd.f32 0.0, %v1416
      %v1418 = vpop.f32.mrf.mxu0
      %v1419 = vadd.f32 0.0, %v1418
      %1420 = vmatprep.mubr.f32.mxu0 0.0
      %1421 = vmatmul.mubr.f32.gmra.mxu0 %v714
      %v1422 = vpop.f32.mrf.mxu0
      %v1423 = vadd.f32 0.0, %v1422
      %v1424 = vpop.f32.mrf.mxu0
      %v1425 = vadd.f32 0.0, %v1424
      %1426 = vmatprep.mubr.f32.mxu0 0.0
      %1427 = vmatmul.mubr.f32.gmra.mxu0 %v717
      %v1428 = vpop.f32.mrf.mxu0
      %v1429 = vadd.f32 0.0, %v1428
      %v1430 = vpop.f32.mrf.mxu0
      %v1431 = vadd.f32 0.0, %v1430
      %1432 = vmatprep.mubr.f32.mxu0 0.0
      %1433 = vmatmul.mubr.f32.gmra.mxu0 %v720
      %v1434 = vpop.f32.mrf.mxu0
      %v1435 = vadd.f32 0.0, %v1434
      %v1436 = vpop.f32.mrf.mxu0
      %v1437 = vadd.f32 0.0, %v1436
      %1438 = vmatprep.mubr.f32.mxu0 0.0
      %1439 = vmatmul.mubr.f32.gmra.mxu0 %v723
      %v1440 = vpop.f32.mrf.mxu0
      %v1441 = vadd.f32 0.0, %v1440
      %v1442 = vpop.f32.mrf.mxu0
      %v1443 = vadd.f32 0.0, %v1442
      %1444 = vmatprep.mubr.f32.mxu0 0.0
      %1445 = vmatmul.mubr.f32.gmra.mxu0 %v726
      %v1446 = vpop.f32.mrf.mxu0
      %v1447 = vadd.f32 0.0, %v1446
      %v1448 = vpop.f32.mrf.mxu0
      %v1449 = vadd.f32 0.0, %v1448
      %1450 = vmatprep.mubr.f32.mxu0 0.0
      %1451 = vmatmul.mubr.f32.gmra.mxu0 %v729
      %v1452 = vpop.f32.mrf.mxu0
      %v1453 = vadd.f32 0.0, %v1452
      %v1454 = vpop.f32.mrf.mxu0
      %v1455 = vadd.f32 0.0, %v1454
      %1456 = vmatprep.mubr.f32.mxu0 0.0
      %1457 = vmatmul.mubr.f32.gmra.mxu0 %v732
      %v1458 = vpop.f32.mrf.mxu0
      %v1459 = vadd.f32 0.0, %v1458
      %v1460 = vpop.f32.mrf.mxu0
      %v1461 = vadd.f32 0.0, %v1460
      %1462 = vmatprep.mubr.f32.mxu0 0.0
      %1463 = vmatmul.mubr.f32.gmra.mxu0 %v735
      %v1464 = vpop.f32.mrf.mxu0
      %v1465 = vadd.f32 0.0, %v1464
      %v1466 = vpop.f32.mrf.mxu0
      %v1467 = vadd.f32 0.0, %v1466
      %1468 = vmatprep.mubr.f32.mxu0 0.0
      %1469 = vmatmul.mubr.f32.gmra.mxu0 %v738
      %v1470 = vpop.f32.mrf.mxu0
      %v1471 = vadd.f32 0.0, %v1470
      %v1472 = vpop.f32.mrf.mxu0
      %v1473 = vadd.f32 0.0, %v1472
      %1474 = vmatprep.mubr.f32.mxu0 0.0
      %1475 = vmatmul.mubr.f32.gmra.mxu0 %v741
      %v1476 = vpop.f32.mrf.mxu0
      %v1477 = vadd.f32 0.0, %v1476
      %v1478 = vpop.f32.mrf.mxu0
      %v1479 = vadd.f32 0.0, %v1478
      %1480 = vmatprep.mubr.f32.mxu0 0.0
      %1481 = vmatmul.mubr.f32.gmra.mxu0 %v744
      %v1482 = vpop.f32.mrf.mxu0
      %v1483 = vadd.f32 0.0, %v1482
      %v1484 = vpop.f32.mrf.mxu0
      %v1485 = vadd.f32 0.0, %v1484
      %1486 = vmatprep.mubr.f32.mxu0 0.0
      %1487 = vmatmul.mubr.f32.gmra.mxu0 %v747
      %v1488 = vpop.f32.mrf.mxu0
      %v1489 = vadd.f32 0.0, %v1488
      %v1490 = vpop.f32.mrf.mxu0
      %v1491 = vadd.f32 0.0, %v1490
      %1492 = vmatprep.mubr.f32.mxu0 0.0
      %1493 = vmatmul.mubr.f32.gmra.mxu0 %v750
      %v1494 = vpop.f32.mrf.mxu0
      %v1495 = vadd.f32 0.0, %v1494
      %v1496 = vpop.f32.mrf.mxu0
      %v1497 = vadd.f32 0.0, %v1496
      %1498 = vmatprep.mubr.f32.mxu0 0.0
      %1499 = vmatmul.mubr.f32.gmra.mxu0 %v753
      %v1500 = vpop.f32.mrf.mxu0
      %v1501 = vadd.f32 0.0, %v1500
      %v1502 = vpop.f32.mrf.mxu0
      %v1503 = vadd.f32 0.0, %v1502
      %1504 = vmatprep.mubr.f32.mxu0 0.0
      %1505 = vmatmul.mubr.f32.gmra.mxu0 %v756
      %v1506 = vpop.f32.mrf.mxu0
      %v1507 = vadd.f32 0.0, %v1506
      %v1508 = vpop.f32.mrf.mxu0
      %v1509 = vadd.f32 0.0, %v1508
      %1510 = vmatprep.mubr.f32.mxu0 0.0
      %1511 = vmatmul.mubr.f32.gmra.mxu0 %v759
      %v1512 = vpop.f32.mrf.mxu0
      %v1513 = vadd.f32 0.0, %v1512
      %v1514 = vpop.f32.mrf.mxu0
      %v1515 = vadd.f32 0.0, %v1514
      %1516 = vmatprep.mubr.f32.mxu0 0.0
      %1517 = vmatmul.mubr.f32.gmra.mxu0 %v762
      %v1518 = vpop.f32.mrf.mxu0
      %v1519 = vadd.f32 0.0, %v1518
      %v1520 = vpop.f32.mrf.mxu0
      %v1521 = vadd.f32 0.0, %v1520
      %1522 = vmatprep.mubr.f32.mxu0 0.0
      %1523 = vmatmul.mubr.f32.gmra.mxu0 %v765
      %v1524 = vpop.f32.mrf.mxu0
      %v1525 = vadd.f32 0.0, %v1524
      %v1526 = vpop.f32.mrf.mxu0
      %v1527 = vadd.f32 0.0, %v1526
      %1528 = vmatprep.mubr.f32.mxu0 0.0
      %1529 = vmatmul.mubr.f32.gmra.mxu0 %v768
      %v1530 = vpop.f32.mrf.mxu0
      %v1531 = vadd.f32 0.0, %v1530
      %v1532 = vpop.f32.mrf.mxu0
      %v1533 = vadd.f32 0.0, %v1532
      %1534 = vmatprep.mubr.f32.mxu0 0.0
      %1535 = vmatmul.mubr.f32.gmra.mxu0 %v771
      %v1536 = vpop.f32.mrf.mxu0
      %v1537 = vadd.f32 0.0, %v1536
      %v1538 = vpop.f32.mrf.mxu0
      %v1539 = vadd.f32 0.0, %v1538
      %1540 = vmatprep.mubr.f32.mxu0 0.0
      %1541 = vmatmul.mubr.f32.gmra.mxu0 %v774
      %v1542 = vpop.f32.mrf.mxu0
      %v1543 = vadd.f32 0.0, %v1542
      %v1544 = vpop.f32.mrf.mxu0
      %v1545 = vadd.f32 0.0, %v1544
      %1546 = vdwg.mxu0
      %1547 = vmatprep.subr.mxu0 0.0
      %1548 = vmatpush1.msra.mxu0 0.0
      %1549 = vmatprep.subr.mxu0 0.0
      %1550 = vmatpush1.msra.mxu0 0.0
      %1551 = vmatprep.subr.mxu0 0.0
      %1552 = vmatpush1.msra.mxu0 0.0
      %1553 = vmatprep.subr.mxu0 0.0
      %1554 = vmatpush1.msra.mxu0 0.0
      %1555 = vmatprep.subr.mxu0 0.0
      %1556 = vmatpush1.msra.mxu0 0.0
      %1557 = vmatprep.subr.mxu0 0.0
      %1558 = vmatpush1.msra.mxu0 0.0
      %1559 = vmatprep.subr.mxu0 0.0
      %1560 = vmatpush1.msra.mxu0 0.0
      %1561 = vmatprep.subr.mxu0 0.0
      %1562 = vmatpush1.msra.mxu0 0.0
      %1563 = vmatprep.subr.mxu0 0.0
      %1564 = vmatpush1.msra.mxu0 0.0
      %1565 = vmatprep.subr.mxu0 0.0
      %1566 = vmatpush1.msra.mxu0 0.0
      %1567 = vmatprep.subr.mxu0 0.0
      %1568 = vmatpush1.msra.mxu0 0.0
      %1569 = vmatprep.subr.mxu0 0.0
      %1570 = vmatpush1.msra.mxu0 0.0
      %1571 = vmatprep.subr.mxu0 0.0
      %1572 = vmatpush1.msra.mxu0 0.0
      %1573 = vmatprep.subr.mxu0 0.0
      %1574 = vmatpush1.msra.mxu0 0.0
      %1575 = vmatprep.subr.mxu0 0.0
      %1576 = vmatpush1.msra.mxu0 0.0
      %1577 = vmatprep.subr.mxu0 %v666
      %1578 = vmatpush1.msra.mxu0 %v665
      %1579 = vmatprep.subr.mxu0 0.0
      %1580 = vmatpush2.msra.mxu0 0.0
      %1581 = vmatprep.subr.mxu0 0.0
      %1582 = vmatpush2.msra.mxu0 0.0
      %1583 = vmatprep.subr.mxu0 0.0
      %1584 = vmatpush2.msra.mxu0 0.0
      %1585 = vmatprep.subr.mxu0 0.0
      %1586 = vmatpush2.msra.mxu0 0.0
      %1587 = vmatprep.subr.mxu0 0.0
      %1588 = vmatpush2.msra.mxu0 0.0
      %1589 = vmatprep.subr.mxu0 0.0
      %1590 = vmatpush2.msra.mxu0 0.0
      %1591 = vmatprep.subr.mxu0 0.0
      %1592 = vmatpush2.msra.mxu0 0.0
      %1593 = vmatprep.subr.mxu0 0.0
      %1594 = vmatpush2.msra.mxu0 0.0
      %1595 = vmatprep.subr.mxu0 0.0
      %1596 = vmatpush2.msra.mxu0 0.0
      %1597 = vmatprep.subr.mxu0 0.0
      %1598 = vmatpush2.msra.mxu0 0.0
      %1599 = vmatprep.subr.mxu0 0.0
      %1600 = vmatpush2.msra.mxu0 0.0
      %1601 = vmatprep.subr.mxu0 0.0
      %1602 = vmatpush2.msra.mxu0 0.0
      %1603 = vmatprep.subr.mxu0 0.0
      %1604 = vmatpush2.msra.mxu0 0.0
      %1605 = vmatprep.subr.mxu0 0.0
      %1606 = vmatpush2.msra.mxu0 0.0
      %1607 = vmatprep.subr.mxu0 0.0
      %1608 = vmatpush2.msra.mxu0 0.0
      %1609 = vmatprep.subr.mxu0 0.0
      %1610 = vmatpush2.msra.mxu0 0.0
      %1611 = vmatprep.mubr.f32.mxu0 0.0
      %1612 = vmatmul.mubr.f32.gmra.mxu0 %v681
      %v1613 = vpop.f32.mrf.mxu0
      %v1614 = vadd.f32 0.0, %v1613
      %v1615 = vpop.f32.mrf.mxu0
      %v1616 = vadd.f32 0.0, %v1615
      %1617 = vmatprep.mubr.f32.mxu0 0.0
      %1618 = vmatmul.mubr.f32.gmra.mxu0 %v684
      %v1619 = vpop.f32.mrf.mxu0
      %v1620 = vadd.f32 0.0, %v1619
      %v1621 = vpop.f32.mrf.mxu0
      %v1622 = vadd.f32 0.0, %v1621
      %1623 = vmatprep.mubr.f32.mxu0 0.0
      %1624 = vmatmul.mubr.f32.gmra.mxu0 %v687
      %v1625 = vpop.f32.mrf.mxu0
      %v1626 = vadd.f32 0.0, %v1625
      %v1627 = vpop.f32.mrf.mxu0
      %v1628 = vadd.f32 0.0, %v1627
      %1629 = vmatprep.mubr.f32.mxu0 0.0
      %1630 = vmatmul.mubr.f32.gmra.mxu0 %v690
      %v1631 = vpop.f32.mrf.mxu0
      %v1632 = vadd.f32 0.0, %v1631
      %v1633 = vpop.f32.mrf.mxu0
      %v1634 = vadd.f32 0.0, %v1633
      %1635 = vmatprep.mubr.f32.mxu0 0.0
      %1636 = vmatmul.mubr.f32.gmra.mxu0 %v693
      %v1637 = vpop.f32.mrf.mxu0
      %v1638 = vadd.f32 0.0, %v1637
      %v1639 = vpop.f32.mrf.mxu0
      %v1640 = vadd.f32 0.0, %v1639
      %1641 = vmatprep.mubr.f32.mxu0 0.0
      %1642 = vmatmul.mubr.f32.gmra.mxu0 %v696
      %v1643 = vpop.f32.mrf.mxu0
      %v1644 = vadd.f32 0.0, %v1643
      %v1645 = vpop.f32.mrf.mxu0
      %v1646 = vadd.f32 0.0, %v1645
      %1647 = vmatprep.mubr.f32.mxu0 0.0
      %1648 = vmatmul.mubr.f32.gmra.mxu0 %v699
      %v1649 = vpop.f32.mrf.mxu0
      %v1650 = vadd.f32 0.0, %v1649
      %v1651 = vpop.f32.mrf.mxu0
      %v1652 = vadd.f32 0.0, %v1651
      %1653 = vmatprep.mubr.f32.mxu0 0.0
      %1654 = vmatmul.mubr.f32.gmra.mxu0 %v702
      %v1655 = vpop.f32.mrf.mxu0
      %v1656 = vadd.f32 0.0, %v1655
      %v1657 = vpop.f32.mrf.mxu0
      %v1658 = vadd.f32 0.0, %v1657
      %1659 = vmatprep.mubr.f32.mxu0 0.0
      %1660 = vmatmul.mubr.f32.gmra.mxu0 %v705
      %v1661 = vpop.f32.mrf.mxu0
      %v1662 = vadd.f32 0.0, %v1661
      %v1663 = vpop.f32.mrf.mxu0
      %v1664 = vadd.f32 0.0, %v1663
      %1665 = vmatprep.mubr.f32.mxu0 0.0
      %1666 = vmatmul.mubr.f32.gmra.mxu0 %v708
      %v1667 = vpop.f32.mrf.mxu0
      %v1668 = vadd.f32 0.0, %v1667
      %v1669 = vpop.f32.mrf.mxu0
      %v1670 = vadd.f32 0.0, %v1669
      %1671 = vmatprep.mubr.f32.mxu0 0.0
      %1672 = vmatmul.mubr.f32.gmra.mxu0 %v711
      %v1673 = vpop.f32.mrf.mxu0
      %v1674 = vadd.f32 0.0, %v1673
      %v1675 = vpop.f32.mrf.mxu0
      %v1676 = vadd.f32 0.0, %v1675
      %1677 = vmatprep.mubr.f32.mxu0 0.0
      %1678 = vmatmul.mubr.f32.gmra.mxu0 %v714
      %v1679 = vpop.f32.mrf.mxu0
      %v1680 = vadd.f32 0.0, %v1679
      %v1681 = vpop.f32.mrf.mxu0
      %v1682 = vadd.f32 0.0, %v1681
      %1683 = vmatprep.mubr.f32.mxu0 0.0
      %1684 = vmatmul.mubr.f32.gmra.mxu0 %v717
      %v1685 = vpop.f32.mrf.mxu0
      %v1686 = vadd.f32 0.0, %v1685
      %v1687 = vpop.f32.mrf.mxu0
      %v1688 = vadd.f32 0.0, %v1687
      %1689 = vmatprep.mubr.f32.mxu0 0.0
      %1690 = vmatmul.mubr.f32.gmra.mxu0 %v720
      %v1691 = vpop.f32.mrf.mxu0
      %v1692 = vadd.f32 0.0, %v1691
      %v1693 = vpop.f32.mrf.mxu0
      %v1694 = vadd.f32 0.0, %v1693
      %1695 = vmatprep.mubr.f32.mxu0 0.0
      %1696 = vmatmul.mubr.f32.gmra.mxu0 %v723
      %v1697 = vpop.f32.mrf.mxu0
      %v1698 = vadd.f32 0.0, %v1697
      %v1699 = vpop.f32.mrf.mxu0
      %v1700 = vadd.f32 0.0, %v1699
      %1701 = vmatprep.mubr.f32.mxu0 0.0
      %1702 = vmatmul.mubr.f32.gmra.mxu0 %v726
      %v1703 = vpop.f32.mrf.mxu0
      %v1704 = vadd.f32 0.0, %v1703
      %v1705 = vpop.f32.mrf.mxu0
      %v1706 = vadd.f32 0.0, %v1705
      %1707 = vmatprep.mubr.f32.mxu0 0.0
      %1708 = vmatmul.mubr.f32.gmra.mxu0 %v729
      %v1709 = vpop.f32.mrf.mxu0
      %v1710 = vadd.f32 0.0, %v1709
      %v1711 = vpop.f32.mrf.mxu0
      %v1712 = vadd.f32 0.0, %v1711
      %1713 = vmatprep.mubr.f32.mxu0 0.0
      %1714 = vmatmul.mubr.f32.gmra.mxu0 %v732
      %v1715 = vpop.f32.mrf.mxu0
      %v1716 = vadd.f32 0.0, %v1715
      %v1717 = vpop.f32.mrf.mxu0
      %v1718 = vadd.f32 0.0, %v1717
      %1719 = vmatprep.mubr.f32.mxu0 0.0
      %1720 = vmatmul.mubr.f32.gmra.mxu0 %v735
      %v1721 = vpop.f32.mrf.mxu0
      %v1722 = vadd.f32 0.0, %v1721
      %v1723 = vpop.f32.mrf.mxu0
      %v1724 = vadd.f32 0.0, %v1723
      %1725 = vmatprep.mubr.f32.mxu0 0.0
      %1726 = vmatmul.mubr.f32.gmra.mxu0 %v738
      %v1727 = vpop.f32.mrf.mxu0
      %v1728 = vadd.f32 0.0, %v1727
      %v1729 = vpop.f32.mrf.mxu0
      %v1730 = vadd.f32 0.0, %v1729
      %1731 = vmatprep.mubr.f32.mxu0 0.0
      %1732 = vmatmul.mubr.f32.gmra.mxu0 %v741
      %v1733 = vpop.f32.mrf.mxu0
      %v1734 = vadd.f32 0.0, %v1733
      %v1735 = vpop.f32.mrf.mxu0
      %v1736 = vadd.f32 0.0, %v1735
      %1737 = vmatprep.mubr.f32.mxu0 0.0
      %1738 = vmatmul.mubr.f32.gmra.mxu0 %v744
      %v1739 = vpop.f32.mrf.mxu0
      %v1740 = vadd.f32 0.0, %v1739
      %v1741 = vpop.f32.mrf.mxu0
      %v1742 = vadd.f32 0.0, %v1741
      %1743 = vmatprep.mubr.f32.mxu0 0.0
      %1744 = vmatmul.mubr.f32.gmra.mxu0 %v747
      %v1745 = vpop.f32.mrf.mxu0
      %v1746 = vadd.f32 0.0, %v1745
      %v1747 = vpop.f32.mrf.mxu0
      %v1748 = vadd.f32 0.0, %v1747
      %1749 = vmatprep.mubr.f32.mxu0 0.0
      %1750 = vmatmul.mubr.f32.gmra.mxu0 %v750
      %v1751 = vpop.f32.mrf.mxu0
      %v1752 = vadd.f32 0.0, %v1751
      %v1753 = vpop.f32.mrf.mxu0
      %v1754 = vadd.f32 0.0, %v1753
      %1755 = vmatprep.mubr.f32.mxu0 0.0
      %1756 = vmatmul.mubr.f32.gmra.mxu0 %v753
      %v1757 = vpop.f32.mrf.mxu0
      %v1758 = vadd.f32 0.0, %v1757
      %v1759 = vpop.f32.mrf.mxu0
      %v1760 = vadd.f32 0.0, %v1759
      %1761 = vmatprep.mubr.f32.mxu0 0.0
      %1762 = vmatmul.mubr.f32.gmra.mxu0 %v756
      %v1763 = vpop.f32.mrf.mxu0
      %v1764 = vadd.f32 0.0, %v1763
      %v1765 = vpop.f32.mrf.mxu0
      %v1766 = vadd.f32 0.0, %v1765
      %1767 = vmatprep.mubr.f32.mxu0 0.0
      %1768 = vmatmul.mubr.f32.gmra.mxu0 %v759
      %v1769 = vpop.f32.mrf.mxu0
      %v1770 = vadd.f32 0.0, %v1769
      %v1771 = vpop.f32.mrf.mxu0
      %v1772 = vadd.f32 0.0, %v1771
      %1773 = vmatprep.mubr.f32.mxu0 0.0
      %1774 = vmatmul.mubr.f32.gmra.mxu0 %v762
      %v1775 = vpop.f32.mrf.mxu0
      %v1776 = vadd.f32 0.0, %v1775
      %v1777 = vpop.f32.mrf.mxu0
      %v1778 = vadd.f32 0.0, %v1777
      %1779 = vmatprep.mubr.f32.mxu0 0.0
      %1780 = vmatmul.mubr.f32.gmra.mxu0 %v765
      %v1781 = vpop.f32.mrf.mxu0
      %v1782 = vadd.f32 0.0, %v1781
      %v1783 = vpop.f32.mrf.mxu0
      %v1784 = vadd.f32 0.0, %v1783
      %1785 = vmatprep.mubr.f32.mxu0 0.0
      %1786 = vmatmul.mubr.f32.gmra.mxu0 %v768
      %v1787 = vpop.f32.mrf.mxu0
      %v1788 = vadd.f32 0.0, %v1787
      %v1789 = vpop.f32.mrf.mxu0
      %v1790 = vadd.f32 0.0, %v1789
      %1791 = vmatprep.mubr.f32.mxu0 0.0
      %1792 = vmatmul.mubr.f32.gmra.mxu0 %v771
      %v1793 = vpop.f32.mrf.mxu0
      %v1794 = vadd.f32 0.0, %v1793
      %v1795 = vpop.f32.mrf.mxu0
      %v1796 = vadd.f32 0.0, %v1795
      %1797 = vmatprep.mubr.f32.mxu0 0.0
      %1798 = vmatmul.mubr.f32.gmra.mxu0 %v774
      %v1799 = vpop.f32.mrf.mxu0
      %v1800 = vadd.f32 0.0, %v1799
      %v1801 = vpop.f32.mrf.mxu0
      %v1802 = vadd.f32 0.0, %v1801
      %1803 = vdwg.mxu0
      %1804 = vmatprep.subr.mxu0 0.0
      %1805 = vmatpush1.msra.mxu0 0.0
      %1806 = vmatprep.subr.mxu0 0.0
      %1807 = vmatpush1.msra.mxu0 0.0
      %1808 = vmatprep.subr.mxu0 0.0
      %1809 = vmatpush1.msra.mxu0 0.0
      %1810 = vmatprep.subr.mxu0 0.0
      %1811 = vmatpush1.msra.mxu0 0.0
      %1812 = vmatprep.subr.mxu0 0.0
      %1813 = vmatpush1.msra.mxu0 0.0
      %1814 = vmatprep.subr.mxu0 0.0
      %1815 = vmatpush1.msra.mxu0 0.0
      %1816 = vmatprep.subr.mxu0 0.0
      %1817 = vmatpush1.msra.mxu0 0.0
      %1818 = vmatprep.subr.mxu0 0.0
      %1819 = vmatpush1.msra.mxu0 0.0
      %1820 = vmatprep.subr.mxu0 0.0
      %1821 = vmatpush1.msra.mxu0 0.0
      %1822 = vmatprep.subr.mxu0 0.0
      %1823 = vmatpush1.msra.mxu0 0.0
      %1824 = vmatprep.subr.mxu0 0.0
      %1825 = vmatpush1.msra.mxu0 0.0
      %1826 = vmatprep.subr.mxu0 0.0
      %1827 = vmatpush1.msra.mxu0 0.0
      %1828 = vmatprep.subr.mxu0 0.0
      %1829 = vmatpush1.msra.mxu0 0.0
      %1830 = vmatprep.subr.mxu0 0.0
      %1831 = vmatpush1.msra.mxu0 0.0
      %1832 = vmatprep.subr.mxu0 0.0
      %1833 = vmatpush1.msra.mxu0 0.0
      %1834 = vmatprep.subr.mxu0 %v668
      %1835 = vmatpush1.msra.mxu0 %v667
      %1836 = vmatprep.subr.mxu0 0.0
      %1837 = vmatpush2.msra.mxu0 0.0
      %1838 = vmatprep.subr.mxu0 0.0
      %1839 = vmatpush2.msra.mxu0 0.0
      %1840 = vmatprep.subr.mxu0 0.0
      %1841 = vmatpush2.msra.mxu0 0.0
      %1842 = vmatprep.subr.mxu0 0.0
      %1843 = vmatpush2.msra.mxu0 0.0
      %1844 = vmatprep.subr.mxu0 0.0
      %1845 = vmatpush2.msra.mxu0 0.0
      %1846 = vmatprep.subr.mxu0 0.0
      %1847 = vmatpush2.msra.mxu0 0.0
      %1848 = vmatprep.subr.mxu0 0.0
      %1849 = vmatpush2.msra.mxu0 0.0
      %1850 = vmatprep.subr.mxu0 0.0
      %1851 = vmatpush2.msra.mxu0 0.0
      %1852 = vmatprep.subr.mxu0 0.0
      %1853 = vmatpush2.msra.mxu0 0.0
      %1854 = vmatprep.subr.mxu0 0.0
      %1855 = vmatpush2.msra.mxu0 0.0
      %1856 = vmatprep.subr.mxu0 0.0
      %1857 = vmatpush2.msra.mxu0 0.0
      %1858 = vmatprep.subr.mxu0 0.0
      %1859 = vmatpush2.msra.mxu0 0.0
      %1860 = vmatprep.subr.mxu0 0.0
      %1861 = vmatpush2.msra.mxu0 0.0
      %1862 = vmatprep.subr.mxu0 0.0
      %1863 = vmatpush2.msra.mxu0 0.0
      %1864 = vmatprep.subr.mxu0 0.0
      %1865 = vmatpush2.msra.mxu0 0.0
      %1866 = vmatprep.subr.mxu0 0.0
      %1867 = vmatpush2.msra.mxu0 0.0
      %1868 = vmatprep.mubr.f32.mxu0 0.0
      %1869 = vmatmul.mubr.f32.gmra.mxu0 %v681
      %v1870 = vpop.f32.mrf.mxu0
      %v1871 = vadd.f32 0.0, %v1870
      %v1872 = vpop.f32.mrf.mxu0
      %v1873 = vadd.f32 0.0, %v1872
      %1874 = vmatprep.mubr.f32.mxu0 0.0
      %1875 = vmatmul.mubr.f32.gmra.mxu0 %v684
      %v1876 = vpop.f32.mrf.mxu0
      %v1877 = vadd.f32 0.0, %v1876
      %v1878 = vpop.f32.mrf.mxu0
      %v1879 = vadd.f32 0.0, %v1878
      %1880 = vmatprep.mubr.f32.mxu0 0.0
      %1881 = vmatmul.mubr.f32.gmra.mxu0 %v687
      %v1882 = vpop.f32.mrf.mxu0
      %v1883 = vadd.f32 0.0, %v1882
      %v1884 = vpop.f32.mrf.mxu0
      %v1885 = vadd.f32 0.0, %v1884
      %1886 = vmatprep.mubr.f32.mxu0 0.0
      %1887 = vmatmul.mubr.f32.gmra.mxu0 %v690
      %v1888 = vpop.f32.mrf.mxu0
      %v1889 = vadd.f32 0.0, %v1888
      %v1890 = vpop.f32.mrf.mxu0
      %v1891 = vadd.f32 0.0, %v1890
      %1892 = vmatprep.mubr.f32.mxu0 0.0
      %1893 = vmatmul.mubr.f32.gmra.mxu0 %v693
      %v1894 = vpop.f32.mrf.mxu0
      %v1895 = vadd.f32 0.0, %v1894
      %v1896 = vpop.f32.mrf.mxu0
      %v1897 = vadd.f32 0.0, %v1896
      %1898 = vmatprep.mubr.f32.mxu0 0.0
      %1899 = vmatmul.mubr.f32.gmra.mxu0 %v696
      %v1900 = vpop.f32.mrf.mxu0
      %v1901 = vadd.f32 0.0, %v1900
      %v1902 = vpop.f32.mrf.mxu0
      %v1903 = vadd.f32 0.0, %v1902
      %1904 = vmatprep.mubr.f32.mxu0 0.0
      %1905 = vmatmul.mubr.f32.gmra.mxu0 %v699
      %v1906 = vpop.f32.mrf.mxu0
      %v1907 = vadd.f32 0.0, %v1906
      %v1908 = vpop.f32.mrf.mxu0
      %v1909 = vadd.f32 0.0, %v1908
      %1910 = vmatprep.mubr.f32.mxu0 0.0
      %1911 = vmatmul.mubr.f32.gmra.mxu0 %v702
      %v1912 = vpop.f32.mrf.mxu0
      %v1913 = vadd.f32 0.0, %v1912
      %v1914 = vpop.f32.mrf.mxu0
      %v1915 = vadd.f32 0.0, %v1914
      %1916 = vmatprep.mubr.f32.mxu0 0.0
      %1917 = vmatmul.mubr.f32.gmra.mxu0 %v705
      %v1918 = vpop.f32.mrf.mxu0
      %v1919 = vadd.f32 0.0, %v1918
      %v1920 = vpop.f32.mrf.mxu0
      %v1921 = vadd.f32 0.0, %v1920
      %1922 = vmatprep.mubr.f32.mxu0 0.0
      %1923 = vmatmul.mubr.f32.gmra.mxu0 %v708
      %v1924 = vpop.f32.mrf.mxu0
      %v1925 = vadd.f32 0.0, %v1924
      %v1926 = vpop.f32.mrf.mxu0
      %v1927 = vadd.f32 0.0, %v1926
      %1928 = vmatprep.mubr.f32.mxu0 0.0
      %1929 = vmatmul.mubr.f32.gmra.mxu0 %v711
      %v1930 = vpop.f32.mrf.mxu0
      %v1931 = vadd.f32 0.0, %v1930
      %v1932 = vpop.f32.mrf.mxu0
      %v1933 = vadd.f32 0.0, %v1932
      %1934 = vmatprep.mubr.f32.mxu0 0.0
      %1935 = vmatmul.mubr.f32.gmra.mxu0 %v714
      %v1936 = vpop.f32.mrf.mxu0
      %v1937 = vadd.f32 0.0, %v1936
      %v1938 = vpop.f32.mrf.mxu0
      %v1939 = vadd.f32 0.0, %v1938
      %1940 = vmatprep.mubr.f32.mxu0 0.0
      %1941 = vmatmul.mubr.f32.gmra.mxu0 %v717
      %v1942 = vpop.f32.mrf.mxu0
      %v1943 = vadd.f32 0.0, %v1942
      %v1944 = vpop.f32.mrf.mxu0
      %v1945 = vadd.f32 0.0, %v1944
      %1946 = vmatprep.mubr.f32.mxu0 0.0
      %1947 = vmatmul.mubr.f32.gmra.mxu0 %v720
      %v1948 = vpop.f32.mrf.mxu0
      %v1949 = vadd.f32 0.0, %v1948
      %v1950 = vpop.f32.mrf.mxu0
      %v1951 = vadd.f32 0.0, %v1950
      %1952 = vmatprep.mubr.f32.mxu0 0.0
      %1953 = vmatmul.mubr.f32.gmra.mxu0 %v723
      %v1954 = vpop.f32.mrf.mxu0
      %v1955 = vadd.f32 0.0, %v1954
      %v1956 = vpop.f32.mrf.mxu0
      %v1957 = vadd.f32 0.0, %v1956
      %1958 = vmatprep.mubr.f32.mxu0 0.0
      %1959 = vmatmul.mubr.f32.gmra.mxu0 %v726
      %v1960 = vpop.f32.mrf.mxu0
      %v1961 = vadd.f32 0.0, %v1960
      %v1962 = vpop.f32.mrf.mxu0
      %v1963 = vadd.f32 0.0, %v1962
      %1964 = vmatprep.mubr.f32.mxu0 0.0
      %1965 = vmatmul.mubr.f32.gmra.mxu0 %v729
      %v1966 = vpop.f32.mrf.mxu0
      %v1967 = vadd.f32 0.0, %v1966
      %v1968 = vpop.f32.mrf.mxu0
      %v1969 = vadd.f32 0.0, %v1968
      %1970 = vmatprep.mubr.f32.mxu0 0.0
      %1971 = vmatmul.mubr.f32.gmra.mxu0 %v732
      %v1972 = vpop.f32.mrf.mxu0
      %v1973 = vadd.f32 0.0, %v1972
      %v1974 = vpop.f32.mrf.mxu0
      %v1975 = vadd.f32 0.0, %v1974
      %1976 = vmatprep.mubr.f32.mxu0 0.0
      %1977 = vmatmul.mubr.f32.gmra.mxu0 %v735
      %v1978 = vpop.f32.mrf.mxu0
      %v1979 = vadd.f32 0.0, %v1978
      %v1980 = vpop.f32.mrf.mxu0
      %v1981 = vadd.f32 0.0, %v1980
      %1982 = vmatprep.mubr.f32.mxu0 0.0
      %1983 = vmatmul.mubr.f32.gmra.mxu0 %v738
      %v1984 = vpop.f32.mrf.mxu0
      %v1985 = vadd.f32 0.0, %v1984
      %v1986 = vpop.f32.mrf.mxu0
      %v1987 = vadd.f32 0.0, %v1986
      %1988 = vmatprep.mubr.f32.mxu0 0.0
      %1989 = vmatmul.mubr.f32.gmra.mxu0 %v741
      %v1990 = vpop.f32.mrf.mxu0
      %v1991 = vadd.f32 0.0, %v1990
      %v1992 = vpop.f32.mrf.mxu0
      %v1993 = vadd.f32 0.0, %v1992
      %1994 = vmatprep.mubr.f32.mxu0 0.0
      %1995 = vmatmul.mubr.f32.gmra.mxu0 %v744
      %v1996 = vpop.f32.mrf.mxu0
      %v1997 = vadd.f32 0.0, %v1996
      %v1998 = vpop.f32.mrf.mxu0
      %v1999 = vadd.f32 0.0, %v1998
      %2000 = vmatprep.mubr.f32.mxu0 0.0
      %2001 = vmatmul.mubr.f32.gmra.mxu0 %v747
      %v2002 = vpop.f32.mrf.mxu0
      %v2003 = vadd.f32 0.0, %v2002
      %v2004 = vpop.f32.mrf.mxu0
      %v2005 = vadd.f32 0.0, %v2004
      %2006 = vmatprep.mubr.f32.mxu0 0.0
      %2007 = vmatmul.mubr.f32.gmra.mxu0 %v750
      %v2008 = vpop.f32.mrf.mxu0
      %v2009 = vadd.f32 0.0, %v2008
      %v2010 = vpop.f32.mrf.mxu0
      %v2011 = vadd.f32 0.0, %v2010
      %2012 = vmatprep.mubr.f32.mxu0 0.0
      %2013 = vmatmul.mubr.f32.gmra.mxu0 %v753
      %v2014 = vpop.f32.mrf.mxu0
      %v2015 = vadd.f32 0.0, %v2014
      %v2016 = vpop.f32.mrf.mxu0
      %v2017 = vadd.f32 0.0, %v2016
      %2018 = vmatprep.mubr.f32.mxu0 0.0
      %2019 = vmatmul.mubr.f32.gmra.mxu0 %v756
      %v2020 = vpop.f32.mrf.mxu0
      %v2021 = vadd.f32 0.0, %v2020
      %v2022 = vpop.f32.mrf.mxu0
      %v2023 = vadd.f32 0.0, %v2022
      %2024 = vmatprep.mubr.f32.mxu0 0.0
      %2025 = vmatmul.mubr.f32.gmra.mxu0 %v759
      %v2026 = vpop.f32.mrf.mxu0
      %v2027 = vadd.f32 0.0, %v2026
      %v2028 = vpop.f32.mrf.mxu0
      %v2029 = vadd.f32 0.0, %v2028
      %2030 = vmatprep.mubr.f32.mxu0 0.0
      %2031 = vmatmul.mubr.f32.gmra.mxu0 %v762
      %v2032 = vpop.f32.mrf.mxu0
      %v2033 = vadd.f32 0.0, %v2032
      %v2034 = vpop.f32.mrf.mxu0
      %v2035 = vadd.f32 0.0, %v2034
      %2036 = vmatprep.mubr.f32.mxu0 0.0
      %2037 = vmatmul.mubr.f32.gmra.mxu0 %v765
      %v2038 = vpop.f32.mrf.mxu0
      %v2039 = vadd.f32 0.0, %v2038
      %v2040 = vpop.f32.mrf.mxu0
      %v2041 = vadd.f32 0.0, %v2040
      %2042 = vmatprep.mubr.f32.mxu0 0.0
      %2043 = vmatmul.mubr.f32.gmra.mxu0 %v768
      %v2044 = vpop.f32.mrf.mxu0
      %v2045 = vadd.f32 0.0, %v2044
      %v2046 = vpop.f32.mrf.mxu0
      %v2047 = vadd.f32 0.0, %v2046
      %2048 = vmatprep.mubr.f32.mxu0 0.0
      %2049 = vmatmul.mubr.f32.gmra.mxu0 %v771
      %v2050 = vpop.f32.mrf.mxu0
      %v2051 = vadd.f32 0.0, %v2050
      %v2052 = vpop.f32.mrf.mxu0
      %v2053 = vadd.f32 0.0, %v2052
      %2054 = vmatprep.mubr.f32.mxu0 0.0
      %2055 = vmatmul.mubr.f32.gmra.mxu0 %v774
      %v2056 = vpop.f32.mrf.mxu0
      %v2057 = vadd.f32 0.0, %v2056
      %v2058 = vpop.f32.mrf.mxu0
      %v2059 = vadd.f32 0.0, %v2058
      %2060 = vdwg.mxu0
      %2061 = vmatprep.subr.mxu0 0.0
      %2062 = vmatpush1.msra.mxu0 0.0
      %2063 = vmatprep.subr.mxu0 0.0
      %2064 = vmatpush1.msra.mxu0 0.0
      %2065 = vmatprep.subr.mxu0 0.0
      %2066 = vmatpush1.msra.mxu0 0.0
      %2067 = vmatprep.subr.mxu0 0.0
      %2068 = vmatpush1.msra.mxu0 0.0
      %2069 = vmatprep.subr.mxu0 0.0
      %2070 = vmatpush1.msra.mxu0 0.0
      %2071 = vmatprep.subr.mxu0 0.0
      %2072 = vmatpush1.msra.mxu0 0.0
      %2073 = vmatprep.subr.mxu0 0.0
      %2074 = vmatpush1.msra.mxu0 0.0
      %2075 = vmatprep.subr.mxu0 0.0
      %2076 = vmatpush1.msra.mxu0 0.0
      %2077 = vmatprep.subr.mxu0 0.0
      %2078 = vmatpush1.msra.mxu0 0.0
      %2079 = vmatprep.subr.mxu0 0.0
      %2080 = vmatpush1.msra.mxu0 0.0
      %2081 = vmatprep.subr.mxu0 0.0
      %2082 = vmatpush1.msra.mxu0 0.0
      %2083 = vmatprep.subr.mxu0 0.0
      %2084 = vmatpush1.msra.mxu0 0.0
      %2085 = vmatprep.subr.mxu0 0.0
      %2086 = vmatpush1.msra.mxu0 0.0
      %2087 = vmatprep.subr.mxu0 0.0
      %2088 = vmatpush1.msra.mxu0 0.0
      %2089 = vmatprep.subr.mxu0 0.0
      %2090 = vmatpush1.msra.mxu0 0.0
      %2091 = vmatprep.subr.mxu0 %v670
      %2092 = vmatpush1.msra.mxu0 %v669
      %2093 = vmatprep.subr.mxu0 0.0
      %2094 = vmatpush2.msra.mxu0 0.0
      %2095 = vmatprep.subr.mxu0 0.0
      %2096 = vmatpush2.msra.mxu0 0.0
      %2097 = vmatprep.subr.mxu0 0.0
      %2098 = vmatpush2.msra.mxu0 0.0
      %2099 = vmatprep.subr.mxu0 0.0
      %2100 = vmatpush2.msra.mxu0 0.0
      %2101 = vmatprep.subr.mxu0 0.0
      %2102 = vmatpush2.msra.mxu0 0.0
      %2103 = vmatprep.subr.mxu0 0.0
      %2104 = vmatpush2.msra.mxu0 0.0
      %2105 = vmatprep.subr.mxu0 0.0
      %2106 = vmatpush2.msra.mxu0 0.0
      %2107 = vmatprep.subr.mxu0 0.0
      %2108 = vmatpush2.msra.mxu0 0.0
      %2109 = vmatprep.subr.mxu0 0.0
      %2110 = vmatpush2.msra.mxu0 0.0
      %2111 = vmatprep.subr.mxu0 0.0
      %2112 = vmatpush2.msra.mxu0 0.0
      %2113 = vmatprep.subr.mxu0 0.0
      %2114 = vmatpush2.msra.mxu0 0.0
      %2115 = vmatprep.subr.mxu0 0.0
      %2116 = vmatpush2.msra.mxu0 0.0
      %2117 = vmatprep.subr.mxu0 0.0
      %2118 = vmatpush2.msra.mxu0 0.0
      %2119 = vmatprep.subr.mxu0 0.0
      %2120 = vmatpush2.msra.mxu0 0.0
      %2121 = vmatprep.subr.mxu0 0.0
      %2122 = vmatpush2.msra.mxu0 0.0
      %2123 = vmatprep.subr.mxu0 0.0
      %2124 = vmatpush2.msra.mxu0 0.0
      %2125 = vmatprep.mubr.f32.mxu0 0.0
      %2126 = vmatmul.mubr.f32.gmra.mxu0 %v681
      %v2127 = vpop.f32.mrf.mxu0
      %v2128 = vadd.f32 0.0, %v2127
      %v2129 = vpop.f32.mrf.mxu0
      %v2130 = vadd.f32 0.0, %v2129
      %2131 = vmatprep.mubr.f32.mxu0 0.0
      %2132 = vmatmul.mubr.f32.gmra.mxu0 %v684
      %v2133 = vpop.f32.mrf.mxu0
      %v2134 = vadd.f32 0.0, %v2133
      %v2135 = vpop.f32.mrf.mxu0
      %v2136 = vadd.f32 0.0, %v2135
      %2137 = vmatprep.mubr.f32.mxu0 0.0
      %2138 = vmatmul.mubr.f32.gmra.mxu0 %v687
      %v2139 = vpop.f32.mrf.mxu0
      %v2140 = vadd.f32 0.0, %v2139
      %v2141 = vpop.f32.mrf.mxu0
      %v2142 = vadd.f32 0.0, %v2141
      %2143 = vmatprep.mubr.f32.mxu0 0.0
      %2144 = vmatmul.mubr.f32.gmra.mxu0 %v690
      %v2145 = vpop.f32.mrf.mxu0
      %v2146 = vadd.f32 0.0, %v2145
      %v2147 = vpop.f32.mrf.mxu0
      %v2148 = vadd.f32 0.0, %v2147
      %2149 = vmatprep.mubr.f32.mxu0 0.0
      %2150 = vmatmul.mubr.f32.gmra.mxu0 %v693
      %v2151 = vpop.f32.mrf.mxu0
      %v2152 = vadd.f32 0.0, %v2151
      %v2153 = vpop.f32.mrf.mxu0
      %v2154 = vadd.f32 0.0, %v2153
      %2155 = vmatprep.mubr.f32.mxu0 0.0
      %2156 = vmatmul.mubr.f32.gmra.mxu0 %v696
      %v2157 = vpop.f32.mrf.mxu0
      %v2158 = vadd.f32 0.0, %v2157
      %v2159 = vpop.f32.mrf.mxu0
      %v2160 = vadd.f32 0.0, %v2159
      %2161 = vmatprep.mubr.f32.mxu0 0.0
      %2162 = vmatmul.mubr.f32.gmra.mxu0 %v699
      %v2163 = vpop.f32.mrf.mxu0
      %v2164 = vadd.f32 0.0, %v2163
      %v2165 = vpop.f32.mrf.mxu0
      %v2166 = vadd.f32 0.0, %v2165
      %2167 = vmatprep.mubr.f32.mxu0 0.0
      %2168 = vmatmul.mubr.f32.gmra.mxu0 %v702
      %v2169 = vpop.f32.mrf.mxu0
      %v2170 = vadd.f32 0.0, %v2169
      %v2171 = vpop.f32.mrf.mxu0
      %v2172 = vadd.f32 0.0, %v2171
      %2173 = vmatprep.mubr.f32.mxu0 0.0
      %2174 = vmatmul.mubr.f32.gmra.mxu0 %v705
      %v2175 = vpop.f32.mrf.mxu0
      %v2176 = vadd.f32 0.0, %v2175
      %v2177 = vpop.f32.mrf.mxu0
      %v2178 = vadd.f32 0.0, %v2177
      %2179 = vmatprep.mubr.f32.mxu0 0.0
      %2180 = vmatmul.mubr.f32.gmra.mxu0 %v708
      %v2181 = vpop.f32.mrf.mxu0
      %v2182 = vadd.f32 0.0, %v2181
      %v2183 = vpop.f32.mrf.mxu0
      %v2184 = vadd.f32 0.0, %v2183
      %2185 = vmatprep.mubr.f32.mxu0 0.0
      %2186 = vmatmul.mubr.f32.gmra.mxu0 %v711
      %v2187 = vpop.f32.mrf.mxu0
      %v2188 = vadd.f32 0.0, %v2187
      %v2189 = vpop.f32.mrf.mxu0
      %v2190 = vadd.f32 0.0, %v2189
      %2191 = vmatprep.mubr.f32.mxu0 0.0
      %2192 = vmatmul.mubr.f32.gmra.mxu0 %v714
      %v2193 = vpop.f32.mrf.mxu0
      %v2194 = vadd.f32 0.0, %v2193
      %v2195 = vpop.f32.mrf.mxu0
      %v2196 = vadd.f32 0.0, %v2195
      %2197 = vmatprep.mubr.f32.mxu0 0.0
      %2198 = vmatmul.mubr.f32.gmra.mxu0 %v717
      %v2199 = vpop.f32.mrf.mxu0
      %v2200 = vadd.f32 0.0, %v2199
      %v2201 = vpop.f32.mrf.mxu0
      %v2202 = vadd.f32 0.0, %v2201
      %2203 = vmatprep.mubr.f32.mxu0 0.0
      %2204 = vmatmul.mubr.f32.gmra.mxu0 %v720
      %v2205 = vpop.f32.mrf.mxu0
      %v2206 = vadd.f32 0.0, %v2205
      %v2207 = vpop.f32.mrf.mxu0
      %v2208 = vadd.f32 0.0, %v2207
      %2209 = vmatprep.mubr.f32.mxu0 0.0
      %2210 = vmatmul.mubr.f32.gmra.mxu0 %v723
      %v2211 = vpop.f32.mrf.mxu0
      %v2212 = vadd.f32 0.0, %v2211
      %v2213 = vpop.f32.mrf.mxu0
      %v2214 = vadd.f32 0.0, %v2213
      %2215 = vmatprep.mubr.f32.mxu0 0.0
      %2216 = vmatmul.mubr.f32.gmra.mxu0 %v726
      %v2217 = vpop.f32.mrf.mxu0
      %v2218 = vadd.f32 0.0, %v2217
      %v2219 = vpop.f32.mrf.mxu0
      %v2220 = vadd.f32 0.0, %v2219
      %2221 = vmatprep.mubr.f32.mxu0 0.0
      %2222 = vmatmul.mubr.f32.gmra.mxu0 %v729
      %v2223 = vpop.f32.mrf.mxu0
      %v2224 = vadd.f32 0.0, %v2223
      %v2225 = vpop.f32.mrf.mxu0
      %v2226 = vadd.f32 0.0, %v2225
      %2227 = vmatprep.mubr.f32.mxu0 0.0
      %2228 = vmatmul.mubr.f32.gmra.mxu0 %v732
      %v2229 = vpop.f32.mrf.mxu0
      %v2230 = vadd.f32 0.0, %v2229
      %v2231 = vpop.f32.mrf.mxu0
      %v2232 = vadd.f32 0.0, %v2231
      %2233 = vmatprep.mubr.f32.mxu0 0.0
      %2234 = vmatmul.mubr.f32.gmra.mxu0 %v735
      %v2235 = vpop.f32.mrf.mxu0
      %v2236 = vadd.f32 0.0, %v2235
      %v2237 = vpop.f32.mrf.mxu0
      %v2238 = vadd.f32 0.0, %v2237
      %2239 = vmatprep.mubr.f32.mxu0 0.0
      %2240 = vmatmul.mubr.f32.gmra.mxu0 %v738
      %v2241 = vpop.f32.mrf.mxu0
      %v2242 = vadd.f32 0.0, %v2241
      %v2243 = vpop.f32.mrf.mxu0
      %v2244 = vadd.f32 0.0, %v2243
      %2245 = vmatprep.mubr.f32.mxu0 0.0
      %2246 = vmatmul.mubr.f32.gmra.mxu0 %v741
      %v2247 = vpop.f32.mrf.mxu0
      %v2248 = vadd.f32 0.0, %v2247
      %v2249 = vpop.f32.mrf.mxu0
      %v2250 = vadd.f32 0.0, %v2249
      %2251 = vmatprep.mubr.f32.mxu0 0.0
      %2252 = vmatmul.mubr.f32.gmra.mxu0 %v744
      %v2253 = vpop.f32.mrf.mxu0
      %v2254 = vadd.f32 0.0, %v2253
      %v2255 = vpop.f32.mrf.mxu0
      %v2256 = vadd.f32 0.0, %v2255
      %2257 = vmatprep.mubr.f32.mxu0 0.0
      %2258 = vmatmul.mubr.f32.gmra.mxu0 %v747
      %v2259 = vpop.f32.mrf.mxu0
      %v2260 = vadd.f32 0.0, %v2259
      %v2261 = vpop.f32.mrf.mxu0
      %v2262 = vadd.f32 0.0, %v2261
      %2263 = vmatprep.mubr.f32.mxu0 0.0
      %2264 = vmatmul.mubr.f32.gmra.mxu0 %v750
      %v2265 = vpop.f32.mrf.mxu0
      %v2266 = vadd.f32 0.0, %v2265
      %v2267 = vpop.f32.mrf.mxu0
      %v2268 = vadd.f32 0.0, %v2267
      %2269 = vmatprep.mubr.f32.mxu0 0.0
      %2270 = vmatmul.mubr.f32.gmra.mxu0 %v753
      %v2271 = vpop.f32.mrf.mxu0
      %v2272 = vadd.f32 0.0, %v2271
      %v2273 = vpop.f32.mrf.mxu0
      %v2274 = vadd.f32 0.0, %v2273
      %2275 = vmatprep.mubr.f32.mxu0 0.0
      %2276 = vmatmul.mubr.f32.gmra.mxu0 %v756
      %v2277 = vpop.f32.mrf.mxu0
      %v2278 = vadd.f32 0.0, %v2277
      %v2279 = vpop.f32.mrf.mxu0
      %v2280 = vadd.f32 0.0, %v2279
      %2281 = vmatprep.mubr.f32.mxu0 0.0
      %2282 = vmatmul.mubr.f32.gmra.mxu0 %v759
      %v2283 = vpop.f32.mrf.mxu0
      %v2284 = vadd.f32 0.0, %v2283
      %v2285 = vpop.f32.mrf.mxu0
      %v2286 = vadd.f32 0.0, %v2285
      %2287 = vmatprep.mubr.f32.mxu0 0.0
      %2288 = vmatmul.mubr.f32.gmra.mxu0 %v762
      %v2289 = vpop.f32.mrf.mxu0
      %v2290 = vadd.f32 0.0, %v2289
      %v2291 = vpop.f32.mrf.mxu0
      %v2292 = vadd.f32 0.0, %v2291
      %2293 = vmatprep.mubr.f32.mxu0 0.0
      %2294 = vmatmul.mubr.f32.gmra.mxu0 %v765
      %v2295 = vpop.f32.mrf.mxu0
      %v2296 = vadd.f32 0.0, %v2295
      %v2297 = vpop.f32.mrf.mxu0
      %v2298 = vadd.f32 0.0, %v2297
      %2299 = vmatprep.mubr.f32.mxu0 0.0
      %2300 = vmatmul.mubr.f32.gmra.mxu0 %v768
      %v2301 = vpop.f32.mrf.mxu0
      %v2302 = vadd.f32 0.0, %v2301
      %v2303 = vpop.f32.mrf.mxu0
      %v2304 = vadd.f32 0.0, %v2303
      %2305 = vmatprep.mubr.f32.mxu0 0.0
      %2306 = vmatmul.mubr.f32.gmra.mxu0 %v771
      %v2307 = vpop.f32.mrf.mxu0
      %v2308 = vadd.f32 0.0, %v2307
      %v2309 = vpop.f32.mrf.mxu0
      %v2310 = vadd.f32 0.0, %v2309
      %2311 = vmatprep.mubr.f32.mxu0 0.0
      %2312 = vmatmul.mubr.f32.gmra.mxu0 %v774
      %v2313 = vpop.f32.mrf.mxu0
      %v2314 = vadd.f32 0.0, %v2313
      %v2315 = vpop.f32.mrf.mxu0
      %v2316 = vadd.f32 0.0, %v2315
      %2317 = vdwg.mxu0
      %2318 = vmatprep.subr.mxu0 0.0
      %2319 = vmatpush1.msra.mxu0 0.0
      %2320 = vmatprep.subr.mxu0 0.0
      %2321 = vmatpush1.msra.mxu0 0.0
      %2322 = vmatprep.subr.mxu0 0.0
      %2323 = vmatpush1.msra.mxu0 0.0
      %2324 = vmatprep.subr.mxu0 0.0
      %2325 = vmatpush1.msra.mxu0 0.0
      %2326 = vmatprep.subr.mxu0 0.0
      %2327 = vmatpush1.msra.mxu0 0.0
      %2328 = vmatprep.subr.mxu0 0.0
      %2329 = vmatpush1.msra.mxu0 0.0
      %2330 = vmatprep.subr.mxu0 0.0
      %2331 = vmatpush1.msra.mxu0 0.0
      %2332 = vmatprep.subr.mxu0 0.0
      %2333 = vmatpush1.msra.mxu0 0.0
      %2334 = vmatprep.subr.mxu0 0.0
      %2335 = vmatpush1.msra.mxu0 0.0
      %2336 = vmatprep.subr.mxu0 0.0
      %2337 = vmatpush1.msra.mxu0 0.0
      %2338 = vmatprep.subr.mxu0 0.0
      %2339 = vmatpush1.msra.mxu0 0.0
      %2340 = vmatprep.subr.mxu0 0.0
      %2341 = vmatpush1.msra.mxu0 0.0
      %2342 = vmatprep.subr.mxu0 0.0
      %2343 = vmatpush1.msra.mxu0 0.0
      %2344 = vmatprep.subr.mxu0 0.0
      %2345 = vmatpush1.msra.mxu0 0.0
      %2346 = vmatprep.subr.mxu0 0.0
      %2347 = vmatpush1.msra.mxu0 0.0
      %2348 = vmatprep.subr.mxu0 %v672
      %2349 = vmatpush1.msra.mxu0 %v671
      %2350 = vmatprep.subr.mxu0 0.0
      %2351 = vmatpush2.msra.mxu0 0.0
      %2352 = vmatprep.subr.mxu0 0.0
      %2353 = vmatpush2.msra.mxu0 0.0
      %2354 = vmatprep.subr.mxu0 0.0
      %2355 = vmatpush2.msra.mxu0 0.0
      %2356 = vmatprep.subr.mxu0 0.0
      %2357 = vmatpush2.msra.mxu0 0.0
      %2358 = vmatprep.subr.mxu0 0.0
      %2359 = vmatpush2.msra.mxu0 0.0
      %2360 = vmatprep.subr.mxu0 0.0
      %2361 = vmatpush2.msra.mxu0 0.0
      %2362 = vmatprep.subr.mxu0 0.0
      %2363 = vmatpush2.msra.mxu0 0.0
      %2364 = vmatprep.subr.mxu0 0.0
      %2365 = vmatpush2.msra.mxu0 0.0
      %2366 = vmatprep.subr.mxu0 0.0
      %2367 = vmatpush2.msra.mxu0 0.0
      %2368 = vmatprep.subr.mxu0 0.0
      %2369 = vmatpush2.msra.mxu0 0.0
      %2370 = vmatprep.subr.mxu0 0.0
      %2371 = vmatpush2.msra.mxu0 0.0
      %2372 = vmatprep.subr.mxu0 0.0
      %2373 = vmatpush2.msra.mxu0 0.0
      %2374 = vmatprep.subr.mxu0 0.0
      %2375 = vmatpush2.msra.mxu0 0.0
      %2376 = vmatprep.subr.mxu0 0.0
      %2377 = vmatpush2.msra.mxu0 0.0
      %2378 = vmatprep.subr.mxu0 0.0
      %2379 = vmatpush2.msra.mxu0 0.0
      %2380 = vmatprep.subr.mxu0 0.0
      %2381 = vmatpush2.msra.mxu0 0.0
      %2382 = vmatprep.mubr.f32.mxu0 0.0
      %2383 = vmatmul.mubr.f32.gmra.mxu0 %v681
      %v2384 = vpop.f32.mrf.mxu0
      %v2385 = vadd.f32 0.0, %v2384
      %v2386 = vpop.f32.mrf.mxu0
      %v2387 = vadd.f32 0.0, %v2386
      %2388 = vmatprep.mubr.f32.mxu0 0.0
      %2389 = vmatmul.mubr.f32.gmra.mxu0 %v684
      %v2390 = vpop.f32.mrf.mxu0
      %v2391 = vadd.f32 0.0, %v2390
      %v2392 = vpop.f32.mrf.mxu0
      %v2393 = vadd.f32 0.0, %v2392
      %2394 = vmatprep.mubr.f32.mxu0 0.0
      %2395 = vmatmul.mubr.f32.gmra.mxu0 %v687
      %v2396 = vpop.f32.mrf.mxu0
      %v2397 = vadd.f32 0.0, %v2396
      %v2398 = vpop.f32.mrf.mxu0
      %v2399 = vadd.f32 0.0, %v2398
      %2400 = vmatprep.mubr.f32.mxu0 0.0
      %2401 = vmatmul.mubr.f32.gmra.mxu0 %v690
      %v2402 = vpop.f32.mrf.mxu0
      %v2403 = vadd.f32 0.0, %v2402
      %v2404 = vpop.f32.mrf.mxu0
      %v2405 = vadd.f32 0.0, %v2404
      %2406 = vmatprep.mubr.f32.mxu0 0.0
      %2407 = vmatmul.mubr.f32.gmra.mxu0 %v693
      %v2408 = vpop.f32.mrf.mxu0
      %v2409 = vadd.f32 0.0, %v2408
      %v2410 = vpop.f32.mrf.mxu0
      %v2411 = vadd.f32 0.0, %v2410
      %2412 = vmatprep.mubr.f32.mxu0 0.0
      %2413 = vmatmul.mubr.f32.gmra.mxu0 %v696
      %v2414 = vpop.f32.mrf.mxu0
      %v2415 = vadd.f32 0.0, %v2414
      %v2416 = vpop.f32.mrf.mxu0
      %v2417 = vadd.f32 0.0, %v2416
      %2418 = vmatprep.mubr.f32.mxu0 0.0
      %2419 = vmatmul.mubr.f32.gmra.mxu0 %v699
      %v2420 = vpop.f32.mrf.mxu0
      %v2421 = vadd.f32 0.0, %v2420
      %v2422 = vpop.f32.mrf.mxu0
      %v2423 = vadd.f32 0.0, %v2422
      %2424 = vmatprep.mubr.f32.mxu0 0.0
      %2425 = vmatmul.mubr.f32.gmra.mxu0 %v702
      %v2426 = vpop.f32.mrf.mxu0
      %v2427 = vadd.f32 0.0, %v2426
      %v2428 = vpop.f32.mrf.mxu0
      %v2429 = vadd.f32 0.0, %v2428
      %2430 = vmatprep.mubr.f32.mxu0 0.0
      %2431 = vmatmul.mubr.f32.gmra.mxu0 %v705
      %v2432 = vpop.f32.mrf.mxu0
      %v2433 = vadd.f32 0.0, %v2432
      %v2434 = vpop.f32.mrf.mxu0
      %v2435 = vadd.f32 0.0, %v2434
      %2436 = vmatprep.mubr.f32.mxu0 0.0
      %2437 = vmatmul.mubr.f32.gmra.mxu0 %v708
      %v2438 = vpop.f32.mrf.mxu0
      %v2439 = vadd.f32 0.0, %v2438
      %v2440 = vpop.f32.mrf.mxu0
      %v2441 = vadd.f32 0.0, %v2440
      %2442 = vmatprep.mubr.f32.mxu0 0.0
      %2443 = vmatmul.mubr.f32.gmra.mxu0 %v711
      %v2444 = vpop.f32.mrf.mxu0
      %v2445 = vadd.f32 0.0, %v2444
      %v2446 = vpop.f32.mrf.mxu0
      %v2447 = vadd.f32 0.0, %v2446
      %2448 = vmatprep.mubr.f32.mxu0 0.0
      %2449 = vmatmul.mubr.f32.gmra.mxu0 %v714
      %v2450 = vpop.f32.mrf.mxu0
      %v2451 = vadd.f32 0.0, %v2450
      %v2452 = vpop.f32.mrf.mxu0
      %v2453 = vadd.f32 0.0, %v2452
      %2454 = vmatprep.mubr.f32.mxu0 0.0
      %2455 = vmatmul.mubr.f32.gmra.mxu0 %v717
      %v2456 = vpop.f32.mrf.mxu0
      %v2457 = vadd.f32 0.0, %v2456
      %v2458 = vpop.f32.mrf.mxu0
      %v2459 = vadd.f32 0.0, %v2458
      %2460 = vmatprep.mubr.f32.mxu0 0.0
      %2461 = vmatmul.mubr.f32.gmra.mxu0 %v720
      %v2462 = vpop.f32.mrf.mxu0
      %v2463 = vadd.f32 0.0, %v2462
      %v2464 = vpop.f32.mrf.mxu0
      %v2465 = vadd.f32 0.0, %v2464
      %2466 = vmatprep.mubr.f32.mxu0 0.0
      %2467 = vmatmul.mubr.f32.gmra.mxu0 %v723
      %v2468 = vpop.f32.mrf.mxu0
      %v2469 = vadd.f32 0.0, %v2468
      %v2470 = vpop.f32.mrf.mxu0
      %v2471 = vadd.f32 0.0, %v2470
      %2472 = vmatprep.mubr.f32.mxu0 0.0
      %2473 = vmatmul.mubr.f32.gmra.mxu0 %v726
      %v2474 = vpop.f32.mrf.mxu0
      %v2475 = vadd.f32 0.0, %v2474
      %v2476 = vpop.f32.mrf.mxu0
      %v2477 = vadd.f32 0.0, %v2476
      %2478 = vmatprep.mubr.f32.mxu0 0.0
      %2479 = vmatmul.mubr.f32.gmra.mxu0 %v729
      %v2480 = vpop.f32.mrf.mxu0
      %v2481 = vadd.f32 0.0, %v2480
      %v2482 = vpop.f32.mrf.mxu0
      %v2483 = vadd.f32 0.0, %v2482
      %2484 = vmatprep.mubr.f32.mxu0 0.0
      %2485 = vmatmul.mubr.f32.gmra.mxu0 %v732
      %v2486 = vpop.f32.mrf.mxu0
      %v2487 = vadd.f32 0.0, %v2486
      %v2488 = vpop.f32.mrf.mxu0
      %v2489 = vadd.f32 0.0, %v2488
      %2490 = vmatprep.mubr.f32.mxu0 0.0
      %2491 = vmatmul.mubr.f32.gmra.mxu0 %v735
      %v2492 = vpop.f32.mrf.mxu0
      %v2493 = vadd.f32 0.0, %v2492
      %v2494 = vpop.f32.mrf.mxu0
      %v2495 = vadd.f32 0.0, %v2494
      %2496 = vmatprep.mubr.f32.mxu0 0.0
      %2497 = vmatmul.mubr.f32.gmra.mxu0 %v738
      %v2498 = vpop.f32.mrf.mxu0
      %v2499 = vadd.f32 0.0, %v2498
      %v2500 = vpop.f32.mrf.mxu0
      %v2501 = vadd.f32 0.0, %v2500
      %2502 = vmatprep.mubr.f32.mxu0 0.0
      %2503 = vmatmul.mubr.f32.gmra.mxu0 %v741
      %v2504 = vpop.f32.mrf.mxu0
      %v2505 = vadd.f32 0.0, %v2504
      %v2506 = vpop.f32.mrf.mxu0
      %v2507 = vadd.f32 0.0, %v2506
      %2508 = vmatprep.mubr.f32.mxu0 0.0
      %2509 = vmatmul.mubr.f32.gmra.mxu0 %v744
      %v2510 = vpop.f32.mrf.mxu0
      %v2511 = vadd.f32 0.0, %v2510
      %v2512 = vpop.f32.mrf.mxu0
      %v2513 = vadd.f32 0.0, %v2512
      %2514 = vmatprep.mubr.f32.mxu0 0.0
      %2515 = vmatmul.mubr.f32.gmra.mxu0 %v747
      %v2516 = vpop.f32.mrf.mxu0
      %v2517 = vadd.f32 0.0, %v2516
      %v2518 = vpop.f32.mrf.mxu0
      %v2519 = vadd.f32 0.0, %v2518
      %2520 = vmatprep.mubr.f32.mxu0 0.0
      %2521 = vmatmul.mubr.f32.gmra.mxu0 %v750
      %v2522 = vpop.f32.mrf.mxu0
      %v2523 = vadd.f32 0.0, %v2522
      %v2524 = vpop.f32.mrf.mxu0
      %v2525 = vadd.f32 0.0, %v2524
      %2526 = vmatprep.mubr.f32.mxu0 0.0
      %2527 = vmatmul.mubr.f32.gmra.mxu0 %v753
      %v2528 = vpop.f32.mrf.mxu0
      %v2529 = vadd.f32 0.0, %v2528
      %v2530 = vpop.f32.mrf.mxu0
      %v2531 = vadd.f32 0.0, %v2530
      %2532 = vmatprep.mubr.f32.mxu0 0.0
      %2533 = vmatmul.mubr.f32.gmra.mxu0 %v756
      %v2534 = vpop.f32.mrf.mxu0
      %v2535 = vadd.f32 0.0, %v2534
      %v2536 = vpop.f32.mrf.mxu0
      %v2537 = vadd.f32 0.0, %v2536
      %2538 = vmatprep.mubr.f32.mxu0 0.0
      %2539 = vmatmul.mubr.f32.gmra.mxu0 %v759
      %v2540 = vpop.f32.mrf.mxu0
      %v2541 = vadd.f32 0.0, %v2540
      %v2542 = vpop.f32.mrf.mxu0
      %v2543 = vadd.f32 0.0, %v2542
      %2544 = vmatprep.mubr.f32.mxu0 0.0
      %2545 = vmatmul.mubr.f32.gmra.mxu0 %v762
      %v2546 = vpop.f32.mrf.mxu0
      %v2547 = vadd.f32 0.0, %v2546
      %v2548 = vpop.f32.mrf.mxu0
      %v2549 = vadd.f32 0.0, %v2548
      %2550 = vmatprep.mubr.f32.mxu0 0.0
      %2551 = vmatmul.mubr.f32.gmra.mxu0 %v765
      %v2552 = vpop.f32.mrf.mxu0
      %v2553 = vadd.f32 0.0, %v2552
      %v2554 = vpop.f32.mrf.mxu0
      %v2555 = vadd.f32 0.0, %v2554
      %2556 = vmatprep.mubr.f32.mxu0 0.0
      %2557 = vmatmul.mubr.f32.gmra.mxu0 %v768
      %v2558 = vpop.f32.mrf.mxu0
      %v2559 = vadd.f32 0.0, %v2558
      %v2560 = vpop.f32.mrf.mxu0
      %v2561 = vadd.f32 0.0, %v2560
      %2562 = vmatprep.mubr.f32.mxu0 0.0
      %2563 = vmatmul.mubr.f32.gmra.mxu0 %v771
      %v2564 = vpop.f32.mrf.mxu0
      %v2565 = vadd.f32 0.0, %v2564
      %v2566 = vpop.f32.mrf.mxu0
      %v2567 = vadd.f32 0.0, %v2566
      %2568 = vmatprep.mubr.f32.mxu0 0.0
      %2569 = vmatmul.mubr.f32.gmra.mxu0 %v774
      %v2570 = vpop.f32.mrf.mxu0
      %v2571 = vadd.f32 0.0, %v2570
      %v2572 = vpop.f32.mrf.mxu0
      %v2573 = vadd.f32 0.0, %v2572
      %2574 = vdwg.mxu0
      %2575 = vmatprep.subr.mxu0 0.0
      %2576 = vmatpush1.msra.mxu0 0.0
      %2577 = vmatprep.subr.mxu0 0.0
      %2578 = vmatpush1.msra.mxu0 0.0
      %2579 = vmatprep.subr.mxu0 0.0
      %2580 = vmatpush1.msra.mxu0 0.0
      %2581 = vmatprep.subr.mxu0 0.0
      %2582 = vmatpush1.msra.mxu0 0.0
      %2583 = vmatprep.subr.mxu0 0.0
      %2584 = vmatpush1.msra.mxu0 0.0
      %2585 = vmatprep.subr.mxu0 0.0
      %2586 = vmatpush1.msra.mxu0 0.0
      %2587 = vmatprep.subr.mxu0 0.0
      %2588 = vmatpush1.msra.mxu0 0.0
      %2589 = vmatprep.subr.mxu0 0.0
      %2590 = vmatpush1.msra.mxu0 0.0
      %2591 = vmatprep.subr.mxu0 0.0
      %2592 = vmatpush1.msra.mxu0 0.0
      %2593 = vmatprep.subr.mxu0 0.0
      %2594 = vmatpush1.msra.mxu0 0.0
      %2595 = vmatprep.subr.mxu0 0.0
      %2596 = vmatpush1.msra.mxu0 0.0
      %2597 = vmatprep.subr.mxu0 0.0
      %2598 = vmatpush1.msra.mxu0 0.0
      %2599 = vmatprep.subr.mxu0 0.0
      %2600 = vmatpush1.msra.mxu0 0.0
      %2601 = vmatprep.subr.mxu0 0.0
      %2602 = vmatpush1.msra.mxu0 0.0
      %2603 = vmatprep.subr.mxu0 0.0
      %2604 = vmatpush1.msra.mxu0 0.0
      %2605 = vmatprep.subr.mxu0 %v674
      %2606 = vmatpush1.msra.mxu0 %v673
      %2607 = vmatprep.subr.mxu0 0.0
      %2608 = vmatpush2.msra.mxu0 0.0
      %2609 = vmatprep.subr.mxu0 0.0
      %2610 = vmatpush2.msra.mxu0 0.0
      %2611 = vmatprep.subr.mxu0 0.0
      %2612 = vmatpush2.msra.mxu0 0.0
      %2613 = vmatprep.subr.mxu0 0.0
      %2614 = vmatpush2.msra.mxu0 0.0
      %2615 = vmatprep.subr.mxu0 0.0
      %2616 = vmatpush2.msra.mxu0 0.0
      %2617 = vmatprep.subr.mxu0 0.0
      %2618 = vmatpush2.msra.mxu0 0.0
      %2619 = vmatprep.subr.mxu0 0.0
      %2620 = vmatpush2.msra.mxu0 0.0
      %2621 = vmatprep.subr.mxu0 0.0
      %2622 = vmatpush2.msra.mxu0 0.0
      %2623 = vmatprep.subr.mxu0 0.0
      %2624 = vmatpush2.msra.mxu0 0.0
      %2625 = vmatprep.subr.mxu0 0.0
      %2626 = vmatpush2.msra.mxu0 0.0
      %2627 = vmatprep.subr.mxu0 0.0
      %2628 = vmatpush2.msra.mxu0 0.0
      %2629 = vmatprep.subr.mxu0 0.0
      %2630 = vmatpush2.msra.mxu0 0.0
      %2631 = vmatprep.subr.mxu0 0.0
      %2632 = vmatpush2.msra.mxu0 0.0
      %2633 = vmatprep.subr.mxu0 0.0
      %2634 = vmatpush2.msra.mxu0 0.0
      %2635 = vmatprep.subr.mxu0 0.0
      %2636 = vmatpush2.msra.mxu0 0.0
      %2637 = vmatprep.subr.mxu0 0.0
      %2638 = vmatpush2.msra.mxu0 0.0
      %2639 = vmatprep.mubr.f32.mxu0 0.0
      %2640 = vmatmul.mubr.f32.gmra.mxu0 %v681
      %v2641 = vpop.f32.mrf.mxu0
      %v2642 = vadd.f32 0.0, %v2641
      %v2643 = vpop.f32.mrf.mxu0
      %v2644 = vadd.f32 0.0, %v2643
      %2645 = vmatprep.mubr.f32.mxu0 0.0
      %2646 = vmatmul.mubr.f32.gmra.mxu0 %v684
      %v2647 = vpop.f32.mrf.mxu0
      %v2648 = vadd.f32 0.0, %v2647
      %v2649 = vpop.f32.mrf.mxu0
      %v2650 = vadd.f32 0.0, %v2649
      %2651 = vmatprep.mubr.f32.mxu0 0.0
      %2652 = vmatmul.mubr.f32.gmra.mxu0 %v687
      %v2653 = vpop.f32.mrf.mxu0
      %v2654 = vadd.f32 0.0, %v2653
      %v2655 = vpop.f32.mrf.mxu0
      %v2656 = vadd.f32 0.0, %v2655
      %2657 = vmatprep.mubr.f32.mxu0 0.0
      %2658 = vmatmul.mubr.f32.gmra.mxu0 %v690
      %v2659 = vpop.f32.mrf.mxu0
      %v2660 = vadd.f32 0.0, %v2659
      %v2661 = vpop.f32.mrf.mxu0
      %v2662 = vadd.f32 0.0, %v2661
      %2663 = vmatprep.mubr.f32.mxu0 0.0
      %2664 = vmatmul.mubr.f32.gmra.mxu0 %v693
      %v2665 = vpop.f32.mrf.mxu0
      %v2666 = vadd.f32 0.0, %v2665
      %v2667 = vpop.f32.mrf.mxu0
      %v2668 = vadd.f32 0.0, %v2667
      %2669 = vmatprep.mubr.f32.mxu0 0.0
      %2670 = vmatmul.mubr.f32.gmra.mxu0 %v696
      %v2671 = vpop.f32.mrf.mxu0
      %v2672 = vadd.f32 0.0, %v2671
      %v2673 = vpop.f32.mrf.mxu0
      %v2674 = vadd.f32 0.0, %v2673
      %2675 = vmatprep.mubr.f32.mxu0 0.0
      %2676 = vmatmul.mubr.f32.gmra.mxu0 %v699
      %v2677 = vpop.f32.mrf.mxu0
      %v2678 = vadd.f32 0.0, %v2677
      %v2679 = vpop.f32.mrf.mxu0
      %v2680 = vadd.f32 0.0, %v2679
      %2681 = vmatprep.mubr.f32.mxu0 0.0
      %2682 = vmatmul.mubr.f32.gmra.mxu0 %v702
      %v2683 = vpop.f32.mrf.mxu0
      %v2684 = vadd.f32 0.0, %v2683
      %v2685 = vpop.f32.mrf.mxu0
      %v2686 = vadd.f32 0.0, %v2685
      %2687 = vmatprep.mubr.f32.mxu0 0.0
      %2688 = vmatmul.mubr.f32.gmra.mxu0 %v705
      %v2689 = vpop.f32.mrf.mxu0
      %v2690 = vadd.f32 0.0, %v2689
      %v2691 = vpop.f32.mrf.mxu0
      %v2692 = vadd.f32 0.0, %v2691
      %2693 = vmatprep.mubr.f32.mxu0 0.0
      %2694 = vmatmul.mubr.f32.gmra.mxu0 %v708
      %v2695 = vpop.f32.mrf.mxu0
      %v2696 = vadd.f32 0.0, %v2695
      %v2697 = vpop.f32.mrf.mxu0
      %v2698 = vadd.f32 0.0, %v2697
      %2699 = vmatprep.mubr.f32.mxu0 0.0
      %2700 = vmatmul.mubr.f32.gmra.mxu0 %v711
      %v2701 = vpop.f32.mrf.mxu0
      %v2702 = vadd.f32 0.0, %v2701
      %v2703 = vpop.f32.mrf.mxu0
      %v2704 = vadd.f32 0.0, %v2703
      %2705 = vmatprep.mubr.f32.mxu0 0.0
      %2706 = vmatmul.mubr.f32.gmra.mxu0 %v714
      %v2707 = vpop.f32.mrf.mxu0
      %v2708 = vadd.f32 0.0, %v2707
      %v2709 = vpop.f32.mrf.mxu0
      %v2710 = vadd.f32 0.0, %v2709
      %2711 = vmatprep.mubr.f32.mxu0 0.0
      %2712 = vmatmul.mubr.f32.gmra.mxu0 %v717
      %v2713 = vpop.f32.mrf.mxu0
      %v2714 = vadd.f32 0.0, %v2713
      %v2715 = vpop.f32.mrf.mxu0
      %v2716 = vadd.f32 0.0, %v2715
      %2717 = vmatprep.mubr.f32.mxu0 0.0
      %2718 = vmatmul.mubr.f32.gmra.mxu0 %v720
      %v2719 = vpop.f32.mrf.mxu0
      %v2720 = vadd.f32 0.0, %v2719
      %v2721 = vpop.f32.mrf.mxu0
      %v2722 = vadd.f32 0.0, %v2721
      %2723 = vmatprep.mubr.f32.mxu0 0.0
      %2724 = vmatmul.mubr.f32.gmra.mxu0 %v723
      %v2725 = vpop.f32.mrf.mxu0
      %v2726 = vadd.f32 0.0, %v2725
      %v2727 = vpop.f32.mrf.mxu0
      %v2728 = vadd.f32 0.0, %v2727
      %2729 = vmatprep.mubr.f32.mxu0 0.0
      %2730 = vmatmul.mubr.f32.gmra.mxu0 %v726
      %v2731 = vpop.f32.mrf.mxu0
      %v2732 = vadd.f32 0.0, %v2731
      %v2733 = vpop.f32.mrf.mxu0
      %v2734 = vadd.f32 0.0, %v2733
      %2735 = vmatprep.mubr.f32.mxu0 0.0
      %2736 = vmatmul.mubr.f32.gmra.mxu0 %v729
      %v2737 = vpop.f32.mrf.mxu0
      %v2738 = vadd.f32 0.0, %v2737
      %v2739 = vpop.f32.mrf.mxu0
      %v2740 = vadd.f32 0.0, %v2739
      %2741 = vmatprep.mubr.f32.mxu0 0.0
      %2742 = vmatmul.mubr.f32.gmra.mxu0 %v732
      %v2743 = vpop.f32.mrf.mxu0
      %v2744 = vadd.f32 0.0, %v2743
      %v2745 = vpop.f32.mrf.mxu0
      %v2746 = vadd.f32 0.0, %v2745
      %2747 = vmatprep.mubr.f32.mxu0 0.0
      %2748 = vmatmul.mubr.f32.gmra.mxu0 %v735
      %v2749 = vpop.f32.mrf.mxu0
      %v2750 = vadd.f32 0.0, %v2749
      %v2751 = vpop.f32.mrf.mxu0
      %v2752 = vadd.f32 0.0, %v2751
      %2753 = vmatprep.mubr.f32.mxu0 0.0
      %2754 = vmatmul.mubr.f32.gmra.mxu0 %v738
      %v2755 = vpop.f32.mrf.mxu0
      %v2756 = vadd.f32 0.0, %v2755
      %v2757 = vpop.f32.mrf.mxu0
      %v2758 = vadd.f32 0.0, %v2757
      %2759 = vmatprep.mubr.f32.mxu0 0.0
      %2760 = vmatmul.mubr.f32.gmra.mxu0 %v741
      %v2761 = vpop.f32.mrf.mxu0
      %v2762 = vadd.f32 0.0, %v2761
      %v2763 = vpop.f32.mrf.mxu0
      %v2764 = vadd.f32 0.0, %v2763
      %2765 = vmatprep.mubr.f32.mxu0 0.0
      %2766 = vmatmul.mubr.f32.gmra.mxu0 %v744
      %v2767 = vpop.f32.mrf.mxu0
      %v2768 = vadd.f32 0.0, %v2767
      %v2769 = vpop.f32.mrf.mxu0
      %v2770 = vadd.f32 0.0, %v2769
      %2771 = vmatprep.mubr.f32.mxu0 0.0
      %2772 = vmatmul.mubr.f32.gmra.mxu0 %v747
      %v2773 = vpop.f32.mrf.mxu0
      %v2774 = vadd.f32 0.0, %v2773
      %v2775 = vpop.f32.mrf.mxu0
      %v2776 = vadd.f32 0.0, %v2775
      %2777 = vmatprep.mubr.f32.mxu0 0.0
      %2778 = vmatmul.mubr.f32.gmra.mxu0 %v750
      %v2779 = vpop.f32.mrf.mxu0
      %v2780 = vadd.f32 0.0, %v2779
      %v2781 = vpop.f32.mrf.mxu0
      %v2782 = vadd.f32 0.0, %v2781
      %2783 = vmatprep.mubr.f32.mxu0 0.0
      %2784 = vmatmul.mubr.f32.gmra.mxu0 %v753
      %v2785 = vpop.f32.mrf.mxu0
      %v2786 = vadd.f32 0.0, %v2785
      %v2787 = vpop.f32.mrf.mxu0
      %v2788 = vadd.f32 0.0, %v2787
      %2789 = vmatprep.mubr.f32.mxu0 0.0
      %2790 = vmatmul.mubr.f32.gmra.mxu0 %v756
      %v2791 = vpop.f32.mrf.mxu0
      %v2792 = vadd.f32 0.0, %v2791
      %v2793 = vpop.f32.mrf.mxu0
      %v2794 = vadd.f32 0.0, %v2793
      %2795 = vmatprep.mubr.f32.mxu0 0.0
      %2796 = vmatmul.mubr.f32.gmra.mxu0 %v759
      %v2797 = vpop.f32.mrf.mxu0
      %v2798 = vadd.f32 0.0, %v2797
      %v2799 = vpop.f32.mrf.mxu0
      %v2800 = vadd.f32 0.0, %v2799
      %2801 = vmatprep.mubr.f32.mxu0 0.0
      %2802 = vmatmul.mubr.f32.gmra.mxu0 %v762
      %v2803 = vpop.f32.mrf.mxu0
      %v2804 = vadd.f32 0.0, %v2803
      %v2805 = vpop.f32.mrf.mxu0
      %v2806 = vadd.f32 0.0, %v2805
      %2807 = vmatprep.mubr.f32.mxu0 0.0
      %2808 = vmatmul.mubr.f32.gmra.mxu0 %v765
      %v2809 = vpop.f32.mrf.mxu0
      %v2810 = vadd.f32 0.0, %v2809
      %v2811 = vpop.f32.mrf.mxu0
      %v2812 = vadd.f32 0.0, %v2811
      %2813 = vmatprep.mubr.f32.mxu0 0.0
      %2814 = vmatmul.mubr.f32.gmra.mxu0 %v768
      %v2815 = vpop.f32.mrf.mxu0
      %v2816 = vadd.f32 0.0, %v2815
      %v2817 = vpop.f32.mrf.mxu0
      %v2818 = vadd.f32 0.0, %v2817
      %2819 = vmatprep.mubr.f32.mxu0 0.0
      %2820 = vmatmul.mubr.f32.gmra.mxu0 %v771
      %v2821 = vpop.f32.mrf.mxu0
      %v2822 = vadd.f32 0.0, %v2821
      %v2823 = vpop.f32.mrf.mxu0
      %v2824 = vadd.f32 0.0, %v2823
      %2825 = vmatprep.mubr.f32.mxu0 0.0
      %2826 = vmatmul.mubr.f32.gmra.mxu0 %v774
      %v2827 = vpop.f32.mrf.mxu0
      %v2828 = vadd.f32 0.0, %v2827
      %v2829 = vpop.f32.mrf.mxu0
      %v2830 = vadd.f32 0.0, %v2829
      %2831 = vdwg.mxu0
      %2832 = vmatprep.subr.mxu0 0.0
      %2833 = vmatpush1.msra.mxu0 0.0
      %2834 = vmatprep.subr.mxu0 0.0
      %2835 = vmatpush1.msra.mxu0 0.0
      %2836 = vmatprep.subr.mxu0 0.0
      %2837 = vmatpush1.msra.mxu0 0.0
      %2838 = vmatprep.subr.mxu0 0.0
      %2839 = vmatpush1.msra.mxu0 0.0
      %2840 = vmatprep.subr.mxu0 0.0
      %2841 = vmatpush1.msra.mxu0 0.0
      %2842 = vmatprep.subr.mxu0 0.0
      %2843 = vmatpush1.msra.mxu0 0.0
      %2844 = vmatprep.subr.mxu0 0.0
      %2845 = vmatpush1.msra.mxu0 0.0
      %2846 = vmatprep.subr.mxu0 0.0
      %2847 = vmatpush1.msra.mxu0 0.0
      %2848 = vmatprep.subr.mxu0 0.0
      %2849 = vmatpush1.msra.mxu0 0.0
      %2850 = vmatprep.subr.mxu0 0.0
      %2851 = vmatpush1.msra.mxu0 0.0
      %2852 = vmatprep.subr.mxu0 0.0
      %2853 = vmatpush1.msra.mxu0 0.0
      %2854 = vmatprep.subr.mxu0 0.0
      %2855 = vmatpush1.msra.mxu0 0.0
      %2856 = vmatprep.subr.mxu0 0.0
      %2857 = vmatpush1.msra.mxu0 0.0
      %2858 = vmatprep.subr.mxu0 0.0
      %2859 = vmatpush1.msra.mxu0 0.0
      %2860 = vmatprep.subr.mxu0 0.0
      %2861 = vmatpush1.msra.mxu0 0.0
      %2862 = vmatprep.subr.mxu0 %v676
      %2863 = vmatpush1.msra.mxu0 %v675
      %2864 = vmatprep.subr.mxu0 0.0
      %2865 = vmatpush2.msra.mxu0 0.0
      %2866 = vmatprep.subr.mxu0 0.0
      %2867 = vmatpush2.msra.mxu0 0.0
      %2868 = vmatprep.subr.mxu0 0.0
      %2869 = vmatpush2.msra.mxu0 0.0
      %2870 = vmatprep.subr.mxu0 0.0
      %2871 = vmatpush2.msra.mxu0 0.0
      %2872 = vmatprep.subr.mxu0 0.0
      %2873 = vmatpush2.msra.mxu0 0.0
      %2874 = vmatprep.subr.mxu0 0.0
      %2875 = vmatpush2.msra.mxu0 0.0
      %2876 = vmatprep.subr.mxu0 0.0
      %2877 = vmatpush2.msra.mxu0 0.0
      %2878 = vmatprep.subr.mxu0 0.0
      %2879 = vmatpush2.msra.mxu0 0.0
      %2880 = vmatprep.subr.mxu0 0.0
      %2881 = vmatpush2.msra.mxu0 0.0
      %2882 = vmatprep.subr.mxu0 0.0
      %2883 = vmatpush2.msra.mxu0 0.0
      %2884 = vmatprep.subr.mxu0 0.0
      %2885 = vmatpush2.msra.mxu0 0.0
      %2886 = vmatprep.subr.mxu0 0.0
      %2887 = vmatpush2.msra.mxu0 0.0
      %2888 = vmatprep.subr.mxu0 0.0
      %2889 = vmatpush2.msra.mxu0 0.0
      %2890 = vmatprep.subr.mxu0 0.0
      %2891 = vmatpush2.msra.mxu0 0.0
      %2892 = vmatprep.subr.mxu0 0.0
      %2893 = vmatpush2.msra.mxu0 0.0
      %2894 = vmatprep.subr.mxu0 0.0
      %2895 = vmatpush2.msra.mxu0 0.0
      %2896 = vmatprep.mubr.f32.mxu0 0.0
      %2897 = vmatmul.mubr.f32.gmra.mxu0 %v681
      %v2898 = vpop.f32.mrf.mxu0
      %v2899 = vadd.f32 0.0, %v2898
      %v2900 = vpop.f32.mrf.mxu0
      %v2901 = vadd.f32 0.0, %v2900
      %2902 = vmatprep.mubr.f32.mxu0 0.0
      %2903 = vmatmul.mubr.f32.gmra.mxu0 %v684
      %v2904 = vpop.f32.mrf.mxu0
      %v2905 = vadd.f32 0.0, %v2904
      %v2906 = vpop.f32.mrf.mxu0
      %v2907 = vadd.f32 0.0, %v2906
      %2908 = vmatprep.mubr.f32.mxu0 0.0
      %2909 = vmatmul.mubr.f32.gmra.mxu0 %v687
      %v2910 = vpop.f32.mrf.mxu0
      %v2911 = vadd.f32 0.0, %v2910
      %v2912 = vpop.f32.mrf.mxu0
      %v2913 = vadd.f32 0.0, %v2912
      %2914 = vmatprep.mubr.f32.mxu0 0.0
      %2915 = vmatmul.mubr.f32.gmra.mxu0 %v690
      %v2916 = vpop.f32.mrf.mxu0
      %v2917 = vadd.f32 0.0, %v2916
      %v2918 = vpop.f32.mrf.mxu0
      %v2919 = vadd.f32 0.0, %v2918
      %2920 = vmatprep.mubr.f32.mxu0 0.0
      %2921 = vmatmul.mubr.f32.gmra.mxu0 %v693
      %v2922 = vpop.f32.mrf.mxu0
      %v2923 = vadd.f32 0.0, %v2922
      %v2924 = vpop.f32.mrf.mxu0
      %v2925 = vadd.f32 0.0, %v2924
      %2926 = vmatprep.mubr.f32.mxu0 0.0
      %2927 = vmatmul.mubr.f32.gmra.mxu0 %v696
      %v2928 = vpop.f32.mrf.mxu0
      %v2929 = vadd.f32 0.0, %v2928
      %v2930 = vpop.f32.mrf.mxu0
      %v2931 = vadd.f32 0.0, %v2930
      %2932 = vmatprep.mubr.f32.mxu0 0.0
      %2933 = vmatmul.mubr.f32.gmra.mxu0 %v699
      %v2934 = vpop.f32.mrf.mxu0
      %v2935 = vadd.f32 0.0, %v2934
      %v2936 = vpop.f32.mrf.mxu0
      %v2937 = vadd.f32 0.0, %v2936
      %2938 = vmatprep.mubr.f32.mxu0 0.0
      %2939 = vmatmul.mubr.f32.gmra.mxu0 %v702
      %v2940 = vpop.f32.mrf.mxu0
      %v2941 = vadd.f32 0.0, %v2940
      %v2942 = vpop.f32.mrf.mxu0
      %v2943 = vadd.f32 0.0, %v2942
      %2944 = vmatprep.mubr.f32.mxu0 0.0
      %2945 = vmatmul.mubr.f32.gmra.mxu0 %v705
      %v2946 = vpop.f32.mrf.mxu0
      %v2947 = vadd.f32 0.0, %v2946
      %v2948 = vpop.f32.mrf.mxu0
      %v2949 = vadd.f32 0.0, %v2948
      %2950 = vmatprep.mubr.f32.mxu0 0.0
      %2951 = vmatmul.mubr.f32.gmra.mxu0 %v708
      %v2952 = vpop.f32.mrf.mxu0
      %v2953 = vadd.f32 0.0, %v2952
      %v2954 = vpop.f32.mrf.mxu0
      %v2955 = vadd.f32 0.0, %v2954
      %2956 = vmatprep.mubr.f32.mxu0 0.0
      %2957 = vmatmul.mubr.f32.gmra.mxu0 %v711
      %v2958 = vpop.f32.mrf.mxu0
      %v2959 = vadd.f32 0.0, %v2958
      %v2960 = vpop.f32.mrf.mxu0
      %v2961 = vadd.f32 0.0, %v2960
      %2962 = vmatprep.mubr.f32.mxu0 0.0
      %2963 = vmatmul.mubr.f32.gmra.mxu0 %v714
      %v2964 = vpop.f32.mrf.mxu0
      %v2965 = vadd.f32 0.0, %v2964
      %v2966 = vpop.f32.mrf.mxu0
      %v2967 = vadd.f32 0.0, %v2966
      %2968 = vmatprep.mubr.f32.mxu0 0.0
      %2969 = vmatmul.mubr.f32.gmra.mxu0 %v717
      %v2970 = vpop.f32.mrf.mxu0
      %v2971 = vadd.f32 0.0, %v2970
      %v2972 = vpop.f32.mrf.mxu0
      %v2973 = vadd.f32 0.0, %v2972
      %2974 = vmatprep.mubr.f32.mxu0 0.0
      %2975 = vmatmul.mubr.f32.gmra.mxu0 %v720
      %v2976 = vpop.f32.mrf.mxu0
      %v2977 = vadd.f32 0.0, %v2976
      %v2978 = vpop.f32.mrf.mxu0
      %v2979 = vadd.f32 0.0, %v2978
      %2980 = vmatprep.mubr.f32.mxu0 0.0
      %2981 = vmatmul.mubr.f32.gmra.mxu0 %v723
      %v2982 = vpop.f32.mrf.mxu0
      %v2983 = vadd.f32 0.0, %v2982
      %v2984 = vpop.f32.mrf.mxu0
      %v2985 = vadd.f32 0.0, %v2984
      %2986 = vmatprep.mubr.f32.mxu0 0.0
      %2987 = vmatmul.mubr.f32.gmra.mxu0 %v726
      %v2988 = vpop.f32.mrf.mxu0
      %v2989 = vadd.f32 0.0, %v2988
      %v2990 = vpop.f32.mrf.mxu0
      %v2991 = vadd.f32 0.0, %v2990
      %2992 = vmatprep.mubr.f32.mxu0 0.0
      %2993 = vmatmul.mubr.f32.gmra.mxu0 %v729
      %v2994 = vpop.f32.mrf.mxu0
      %v2995 = vadd.f32 0.0, %v2994
      %v2996 = vpop.f32.mrf.mxu0
      %v2997 = vadd.f32 0.0, %v2996
      %2998 = vmatprep.mubr.f32.mxu0 0.0
      %2999 = vmatmul.mubr.f32.gmra.mxu0 %v732
      %v3000 = vpop.f32.mrf.mxu0
      %v3001 = vadd.f32 0.0, %v3000
      %v3002 = vpop.f32.mrf.mxu0
      %v3003 = vadd.f32 0.0, %v3002
      %3004 = vmatprep.mubr.f32.mxu0 0.0
      %3005 = vmatmul.mubr.f32.gmra.mxu0 %v735
      %v3006 = vpop.f32.mrf.mxu0
      %v3007 = vadd.f32 0.0, %v3006
      %v3008 = vpop.f32.mrf.mxu0
      %v3009 = vadd.f32 0.0, %v3008
      %3010 = vmatprep.mubr.f32.mxu0 0.0
      %3011 = vmatmul.mubr.f32.gmra.mxu0 %v738
      %v3012 = vpop.f32.mrf.mxu0
      %v3013 = vadd.f32 0.0, %v3012
      %v3014 = vpop.f32.mrf.mxu0
      %v3015 = vadd.f32 0.0, %v3014
      %3016 = vmatprep.mubr.f32.mxu0 0.0
      %3017 = vmatmul.mubr.f32.gmra.mxu0 %v741
      %v3018 = vpop.f32.mrf.mxu0
      %v3019 = vadd.f32 0.0, %v3018
      %v3020 = vpop.f32.mrf.mxu0
      %v3021 = vadd.f32 0.0, %v3020
      %3022 = vmatprep.mubr.f32.mxu0 0.0
      %3023 = vmatmul.mubr.f32.gmra.mxu0 %v744
      %v3024 = vpop.f32.mrf.mxu0
      %v3025 = vadd.f32 0.0, %v3024
      %v3026 = vpop.f32.mrf.mxu0
      %v3027 = vadd.f32 0.0, %v3026
      %3028 = vmatprep.mubr.f32.mxu0 0.0
      %3029 = vmatmul.mubr.f32.gmra.mxu0 %v747
      %v3030 = vpop.f32.mrf.mxu0
      %v3031 = vadd.f32 0.0, %v3030
      %v3032 = vpop.f32.mrf.mxu0
      %v3033 = vadd.f32 0.0, %v3032
      %3034 = vmatprep.mubr.f32.mxu0 0.0
      %3035 = vmatmul.mubr.f32.gmra.mxu0 %v750
      %v3036 = vpop.f32.mrf.mxu0
      %v3037 = vadd.f32 0.0, %v3036
      %v3038 = vpop.f32.mrf.mxu0
      %v3039 = vadd.f32 0.0, %v3038
      %3040 = vmatprep.mubr.f32.mxu0 0.0
      %3041 = vmatmul.mubr.f32.gmra.mxu0 %v753
      %v3042 = vpop.f32.mrf.mxu0
      %v3043 = vadd.f32 0.0, %v3042
      %v3044 = vpop.f32.mrf.mxu0
      %v3045 = vadd.f32 0.0, %v3044
      %3046 = vmatprep.mubr.f32.mxu0 0.0
      %3047 = vmatmul.mubr.f32.gmra.mxu0 %v756
      %v3048 = vpop.f32.mrf.mxu0
      %v3049 = vadd.f32 0.0, %v3048
      %v3050 = vpop.f32.mrf.mxu0
      %v3051 = vadd.f32 0.0, %v3050
      %3052 = vmatprep.mubr.f32.mxu0 0.0
      %3053 = vmatmul.mubr.f32.gmra.mxu0 %v759
      %v3054 = vpop.f32.mrf.mxu0
      %v3055 = vadd.f32 0.0, %v3054
      %v3056 = vpop.f32.mrf.mxu0
      %v3057 = vadd.f32 0.0, %v3056
      %3058 = vmatprep.mubr.f32.mxu0 0.0
      %3059 = vmatmul.mubr.f32.gmra.mxu0 %v762
      %v3060 = vpop.f32.mrf.mxu0
      %v3061 = vadd.f32 0.0, %v3060
      %v3062 = vpop.f32.mrf.mxu0
      %v3063 = vadd.f32 0.0, %v3062
      %3064 = vmatprep.mubr.f32.mxu0 0.0
      %3065 = vmatmul.mubr.f32.gmra.mxu0 %v765
      %v3066 = vpop.f32.mrf.mxu0
      %v3067 = vadd.f32 0.0, %v3066
      %v3068 = vpop.f32.mrf.mxu0
      %v3069 = vadd.f32 0.0, %v3068
      %3070 = vmatprep.mubr.f32.mxu0 0.0
      %3071 = vmatmul.mubr.f32.gmra.mxu0 %v768
      %v3072 = vpop.f32.mrf.mxu0
      %v3073 = vadd.f32 0.0, %v3072
      %v3074 = vpop.f32.mrf.mxu0
      %v3075 = vadd.f32 0.0, %v3074
      %3076 = vmatprep.mubr.f32.mxu0 0.0
      %3077 = vmatmul.mubr.f32.gmra.mxu0 %v771
      %v3078 = vpop.f32.mrf.mxu0
      %v3079 = vadd.f32 0.0, %v3078
      %v3080 = vpop.f32.mrf.mxu0
      %v3081 = vadd.f32 0.0, %v3080
      %3082 = vmatprep.mubr.f32.mxu0 0.0
      %3083 = vmatmul.mubr.f32.gmra.mxu0 %v774
      %v3084 = vpop.f32.mrf.mxu0
      %v3085 = vadd.f32 0.0, %v3084
      %v3086 = vpop.f32.mrf.mxu0
      %v3087 = vadd.f32 0.0, %v3086
      %3088 = vdwg.mxu0
      %3089 = vmatprep.subr.mxu0 0.0
      %3090 = vmatpush1.msra.mxu0 0.0
      %3091 = vmatprep.subr.mxu0 0.0
      %3092 = vmatpush1.msra.mxu0 0.0
      %3093 = vmatprep.subr.mxu0 0.0
      %3094 = vmatpush1.msra.mxu0 0.0
      %3095 = vmatprep.subr.mxu0 0.0
      %3096 = vmatpush1.msra.mxu0 0.0
      %3097 = vmatprep.subr.mxu0 0.0
      %3098 = vmatpush1.msra.mxu0 0.0
      %3099 = vmatprep.subr.mxu0 0.0
      %3100 = vmatpush1.msra.mxu0 0.0
      %3101 = vmatprep.subr.mxu0 0.0
      %3102 = vmatpush1.msra.mxu0 0.0
      %3103 = vmatprep.subr.mxu0 0.0
      %3104 = vmatpush1.msra.mxu0 0.0
      %3105 = vmatprep.subr.mxu0 0.0
      %3106 = vmatpush1.msra.mxu0 0.0
      %3107 = vmatprep.subr.mxu0 0.0
      %3108 = vmatpush1.msra.mxu0 0.0
      %3109 = vmatprep.subr.mxu0 0.0
      %3110 = vmatpush1.msra.mxu0 0.0
      %3111 = vmatprep.subr.mxu0 0.0
      %3112 = vmatpush1.msra.mxu0 0.0
      %3113 = vmatprep.subr.mxu0 0.0
      %3114 = vmatpush1.msra.mxu0 0.0
      %3115 = vmatprep.subr.mxu0 0.0
      %3116 = vmatpush1.msra.mxu0 0.0
      %3117 = vmatprep.subr.mxu0 0.0
      %3118 = vmatpush1.msra.mxu0 0.0
      %3119 = vmatprep.subr.mxu0 %v678
      %3120 = vmatpush1.msra.mxu0 %v677
      %3121 = vmatprep.subr.mxu0 0.0
      %3122 = vmatpush2.msra.mxu0 0.0
      %3123 = vmatprep.subr.mxu0 0.0
      %3124 = vmatpush2.msra.mxu0 0.0
      %3125 = vmatprep.subr.mxu0 0.0
      %3126 = vmatpush2.msra.mxu0 0.0
      %3127 = vmatprep.subr.mxu0 0.0
      %3128 = vmatpush2.msra.mxu0 0.0
      %3129 = vmatprep.subr.mxu0 0.0
      %3130 = vmatpush2.msra.mxu0 0.0
      %3131 = vmatprep.subr.mxu0 0.0
      %3132 = vmatpush2.msra.mxu0 0.0
      %3133 = vmatprep.subr.mxu0 0.0
      %3134 = vmatpush2.msra.mxu0 0.0
      %3135 = vmatprep.subr.mxu0 0.0
      %3136 = vmatpush2.msra.mxu0 0.0
      %3137 = vmatprep.subr.mxu0 0.0
      %3138 = vmatpush2.msra.mxu0 0.0
      %3139 = vmatprep.subr.mxu0 0.0
      %3140 = vmatpush2.msra.mxu0 0.0
      %3141 = vmatprep.subr.mxu0 0.0
      %3142 = vmatpush2.msra.mxu0 0.0
      %3143 = vmatprep.subr.mxu0 0.0
      %3144 = vmatpush2.msra.mxu0 0.0
      %3145 = vmatprep.subr.mxu0 0.0
      %3146 = vmatpush2.msra.mxu0 0.0
      %3147 = vmatprep.subr.mxu0 0.0
      %3148 = vmatpush2.msra.mxu0 0.0
      %3149 = vmatprep.subr.mxu0 0.0
      %3150 = vmatpush2.msra.mxu0 0.0
      %3151 = vmatprep.subr.mxu0 0.0
      %3152 = vmatpush2.msra.mxu0 0.0
      %3153 = vmatprep.mubr.f32.mxu0 0.0
      %3154 = vmatmul.mubr.f32.gmra.mxu0 %v681
      %v3155 = vpop.f32.mrf.mxu0
      %v3156 = vadd.f32 0.0, %v3155
      %v3157 = vpop.f32.mrf.mxu0
      %v3158 = vadd.f32 0.0, %v3157
      %3159 = vmatprep.mubr.f32.mxu0 0.0
      %3160 = vmatmul.mubr.f32.gmra.mxu0 %v684
      %v3161 = vpop.f32.mrf.mxu0
      %v3162 = vadd.f32 0.0, %v3161
      %v3163 = vpop.f32.mrf.mxu0
      %v3164 = vadd.f32 0.0, %v3163
      %3165 = vmatprep.mubr.f32.mxu0 0.0
      %3166 = vmatmul.mubr.f32.gmra.mxu0 %v687
      %v3167 = vpop.f32.mrf.mxu0
      %v3168 = vadd.f32 0.0, %v3167
      %v3169 = vpop.f32.mrf.mxu0
      %v3170 = vadd.f32 0.0, %v3169
      %3171 = vmatprep.mubr.f32.mxu0 0.0
      %3172 = vmatmul.mubr.f32.gmra.mxu0 %v690
      %v3173 = vpop.f32.mrf.mxu0
      %v3174 = vadd.f32 0.0, %v3173
      %v3175 = vpop.f32.mrf.mxu0
      %v3176 = vadd.f32 0.0, %v3175
      %3177 = vmatprep.mubr.f32.mxu0 0.0
      %3178 = vmatmul.mubr.f32.gmra.mxu0 %v693
      %v3179 = vpop.f32.mrf.mxu0
      %v3180 = vadd.f32 0.0, %v3179
      %v3181 = vpop.f32.mrf.mxu0
      %v3182 = vadd.f32 0.0, %v3181
      %3183 = vmatprep.mubr.f32.mxu0 0.0
      %3184 = vmatmul.mubr.f32.gmra.mxu0 %v696
      %v3185 = vpop.f32.mrf.mxu0
      %v3186 = vadd.f32 0.0, %v3185
      %v3187 = vpop.f32.mrf.mxu0
      %v3188 = vadd.f32 0.0, %v3187
      %3189 = vmatprep.mubr.f32.mxu0 0.0
      %3190 = vmatmul.mubr.f32.gmra.mxu0 %v699
      %v3191 = vpop.f32.mrf.mxu0
      %v3192 = vadd.f32 0.0, %v3191
      %v3193 = vpop.f32.mrf.mxu0
      %v3194 = vadd.f32 0.0, %v3193
      %3195 = vmatprep.mubr.f32.mxu0 0.0
      %3196 = vmatmul.mubr.f32.gmra.mxu0 %v702
      %v3197 = vpop.f32.mrf.mxu0
      %v3198 = vadd.f32 0.0, %v3197
      %v3199 = vpop.f32.mrf.mxu0
      %v3200 = vadd.f32 0.0, %v3199
      %3201 = vmatprep.mubr.f32.mxu0 0.0
      %3202 = vmatmul.mubr.f32.gmra.mxu0 %v705
      %v3203 = vpop.f32.mrf.mxu0
      %v3204 = vadd.f32 0.0, %v3203
      %v3205 = vpop.f32.mrf.mxu0
      %v3206 = vadd.f32 0.0, %v3205
      %3207 = vmatprep.mubr.f32.mxu0 0.0
      %3208 = vmatmul.mubr.f32.gmra.mxu0 %v708
      %v3209 = vpop.f32.mrf.mxu0
      %v3210 = vadd.f32 0.0, %v3209
      %v3211 = vpop.f32.mrf.mxu0
      %v3212 = vadd.f32 0.0, %v3211
      %3213 = vmatprep.mubr.f32.mxu0 0.0
      %3214 = vmatmul.mubr.f32.gmra.mxu0 %v711
      %v3215 = vpop.f32.mrf.mxu0
      %v3216 = vadd.f32 0.0, %v3215
      %v3217 = vpop.f32.mrf.mxu0
      %v3218 = vadd.f32 0.0, %v3217
      %3219 = vmatprep.mubr.f32.mxu0 0.0
      %3220 = vmatmul.mubr.f32.gmra.mxu0 %v714
      %v3221 = vpop.f32.mrf.mxu0
      %v3222 = vadd.f32 0.0, %v3221
      %v3223 = vpop.f32.mrf.mxu0
      %v3224 = vadd.f32 0.0, %v3223
      %3225 = vmatprep.mubr.f32.mxu0 0.0
      %3226 = vmatmul.mubr.f32.gmra.mxu0 %v717
      %v3227 = vpop.f32.mrf.mxu0
      %v3228 = vadd.f32 0.0, %v3227
      %v3229 = vpop.f32.mrf.mxu0
      %v3230 = vadd.f32 0.0, %v3229
      %3231 = vmatprep.mubr.f32.mxu0 0.0
      %3232 = vmatmul.mubr.f32.gmra.mxu0 %v720
      %v3233 = vpop.f32.mrf.mxu0
      %v3234 = vadd.f32 0.0, %v3233
      %v3235 = vpop.f32.mrf.mxu0
      %v3236 = vadd.f32 0.0, %v3235
      %3237 = vmatprep.mubr.f32.mxu0 0.0
      %3238 = vmatmul.mubr.f32.gmra.mxu0 %v723
      %v3239 = vpop.f32.mrf.mxu0
      %v3240 = vadd.f32 0.0, %v3239
      %v3241 = vpop.f32.mrf.mxu0
      %v3242 = vadd.f32 0.0, %v3241
      %3243 = vmatprep.mubr.f32.mxu0 0.0
      %3244 = vmatmul.mubr.f32.gmra.mxu0 %v726
      %v3245 = vpop.f32.mrf.mxu0
      %v3246 = vadd.f32 0.0, %v3245
      %v3247 = vpop.f32.mrf.mxu0
      %v3248 = vadd.f32 0.0, %v3247
      %3249 = vmatprep.mubr.f32.mxu0 0.0
      %3250 = vmatmul.mubr.f32.gmra.mxu0 %v729
      %v3251 = vpop.f32.mrf.mxu0
      %v3252 = vadd.f32 0.0, %v3251
      %v3253 = vpop.f32.mrf.mxu0
      %v3254 = vadd.f32 0.0, %v3253
      %3255 = vmatprep.mubr.f32.mxu0 0.0
      %3256 = vmatmul.mubr.f32.gmra.mxu0 %v732
      %v3257 = vpop.f32.mrf.mxu0
      %v3258 = vadd.f32 0.0, %v3257
      %v3259 = vpop.f32.mrf.mxu0
      %v3260 = vadd.f32 0.0, %v3259
      %3261 = vmatprep.mubr.f32.mxu0 0.0
      %3262 = vmatmul.mubr.f32.gmra.mxu0 %v735
      %v3263 = vpop.f32.mrf.mxu0
      %v3264 = vadd.f32 0.0, %v3263
      %v3265 = vpop.f32.mrf.mxu0
      %v3266 = vadd.f32 0.0, %v3265
      %3267 = vmatprep.mubr.f32.mxu0 0.0
      %3268 = vmatmul.mubr.f32.gmra.mxu0 %v738
      %v3269 = vpop.f32.mrf.mxu0
      %v3270 = vadd.f32 0.0, %v3269
      %v3271 = vpop.f32.mrf.mxu0
      %v3272 = vadd.f32 0.0, %v3271
      %3273 = vmatprep.mubr.f32.mxu0 0.0
      %3274 = vmatmul.mubr.f32.gmra.mxu0 %v741
      %v3275 = vpop.f32.mrf.mxu0
      %v3276 = vadd.f32 0.0, %v3275
      %v3277 = vpop.f32.mrf.mxu0
      %v3278 = vadd.f32 0.0, %v3277
      %3279 = vmatprep.mubr.f32.mxu0 0.0
      %3280 = vmatmul.mubr.f32.gmra.mxu0 %v744
      %v3281 = vpop.f32.mrf.mxu0
      %v3282 = vadd.f32 0.0, %v3281
      %v3283 = vpop.f32.mrf.mxu0
      %v3284 = vadd.f32 0.0, %v3283
      %3285 = vmatprep.mubr.f32.mxu0 0.0
      %3286 = vmatmul.mubr.f32.gmra.mxu0 %v747
      %v3287 = vpop.f32.mrf.mxu0
      %v3288 = vadd.f32 0.0, %v3287
      %v3289 = vpop.f32.mrf.mxu0
      %v3290 = vadd.f32 0.0, %v3289
      %3291 = vmatprep.mubr.f32.mxu0 0.0
      %3292 = vmatmul.mubr.f32.gmra.mxu0 %v750
      %v3293 = vpop.f32.mrf.mxu0
      %v3294 = vadd.f32 0.0, %v3293
      %v3295 = vpop.f32.mrf.mxu0
      %v3296 = vadd.f32 0.0, %v3295
      %3297 = vmatprep.mubr.f32.mxu0 0.0
      %3298 = vmatmul.mubr.f32.gmra.mxu0 %v753
      %v3299 = vpop.f32.mrf.mxu0
      %v3300 = vadd.f32 0.0, %v3299
      %v3301 = vpop.f32.mrf.mxu0
      %v3302 = vadd.f32 0.0, %v3301
      %3303 = vmatprep.mubr.f32.mxu0 0.0
      %3304 = vmatmul.mubr.f32.gmra.mxu0 %v756
      %v3305 = vpop.f32.mrf.mxu0
      %v3306 = vadd.f32 0.0, %v3305
      %v3307 = vpop.f32.mrf.mxu0
      %v3308 = vadd.f32 0.0, %v3307
      %3309 = vmatprep.mubr.f32.mxu0 0.0
      %3310 = vmatmul.mubr.f32.gmra.mxu0 %v759
      %v3311 = vpop.f32.mrf.mxu0
      %v3312 = vadd.f32 0.0, %v3311
      %v3313 = vpop.f32.mrf.mxu0
      %v3314 = vadd.f32 0.0, %v3313
      %3315 = vmatprep.mubr.f32.mxu0 0.0
      %3316 = vmatmul.mubr.f32.gmra.mxu0 %v762
      %v3317 = vpop.f32.mrf.mxu0
      %v3318 = vadd.f32 0.0, %v3317
      %v3319 = vpop.f32.mrf.mxu0
      %v3320 = vadd.f32 0.0, %v3319
      %3321 = vmatprep.mubr.f32.mxu0 0.0
      %3322 = vmatmul.mubr.f32.gmra.mxu0 %v765
      %v3323 = vpop.f32.mrf.mxu0
      %v3324 = vadd.f32 0.0, %v3323
      %v3325 = vpop.f32.mrf.mxu0
      %v3326 = vadd.f32 0.0, %v3325
      %3327 = vmatprep.mubr.f32.mxu0 0.0
      %3328 = vmatmul.mubr.f32.gmra.mxu0 %v768
      %v3329 = vpop.f32.mrf.mxu0
      %v3330 = vadd.f32 0.0, %v3329
      %v3331 = vpop.f32.mrf.mxu0
      %v3332 = vadd.f32 0.0, %v3331
      %3333 = vmatprep.mubr.f32.mxu0 0.0
      %3334 = vmatmul.mubr.f32.gmra.mxu0 %v771
      %v3335 = vpop.f32.mrf.mxu0
      %v3336 = vadd.f32 0.0, %v3335
      %v3337 = vpop.f32.mrf.mxu0
      %v3338 = vadd.f32 0.0, %v3337
      %3339 = vmatprep.mubr.f32.mxu0 0.0
      %3340 = vmatmul.mubr.f32.gmra.mxu0 %v774
      %v3341 = vpop.f32.mrf.mxu0
      %v3342 = vadd.f32 0.0, %v3341
      %v3343 = vpop.f32.mrf.mxu0
      %v3344 = vadd.f32 0.0, %v3343
      %3345 = vdwg.mxu0
      %3346 = vst [vmem:[%s194] sm:$0xff] %v843
      %3347 = vst [vmem:[%s194 + $0x8] sm:$0xff] %v845
      %3348 = vst [vmem:[%s194 + $0x10] sm:$0xff] %v1100
      %3349 = vst [vmem:[%s194 + $0x18] sm:$0xff] %v1102
      %3350 = vst [vmem:[%s194 + $0x20] sm:$0xff] %v1357
      %3351 = vst [vmem:[%s194 + $0x28] sm:$0xff] %v1359
      %3352 = vst [vmem:[%s194 + $0x30] sm:$0xff] %v1614
      %3353 = vst [vmem:[%s194 + $0x38] sm:$0xff] %v1616
      %3354 = vst [vmem:[%s194 + $0x40] sm:$0xff] %v1871
      %3355 = vst [vmem:[%s194 + $0x48] sm:$0xff] %v1873
      %3356 = vst [vmem:[%s194 + $0x50] sm:$0xff] %v2128
      %3357 = vst [vmem:[%s194 + $0x58] sm:$0xff] %v2130
      %3358 = vst [vmem:[%s194 + $0x60] sm:$0xff] %v2385
      %3359 = vst [vmem:[%s194 + $0x68] sm:$0xff] %v2387
      %3360 = vst [vmem:[%s194 + $0x70] sm:$0xff] %v2642
      %3361 = vst [vmem:[%s194 + $0x78] sm:$0xff] %v2644
      %3362 = vst [vmem:[%s194 + $0x80] sm:$0xff] %v2899
      %3363 = vst [vmem:[%s194 + $0x88] sm:$0xff] %v2901
      %3364 = vst [vmem:[%s194 + $0x90] sm:$0xff] %v3156
      %vm3365 = vcmask 556032
      %3366 = vst.msk [vmem:[%s194 + $0x98] sm:$0xff] %vm3365, %v3158
      %3367 = vst [vmem:[%s194 + $0xa0] sm:$0xff] %v849
      %3368 = vst [vmem:[%s194 + $0xa8] sm:$0xff] %v851
      %3369 = vst [vmem:[%s194 + $0xb0] sm:$0xff] %v1106
      %3370 = vst [vmem:[%s194 + $0xb8] sm:$0xff] %v1108
      %3371 = vst [vmem:[%s194 + $0xc0] sm:$0xff] %v1363
      %3372 = vst [vmem:[%s194 + $0xc8] sm:$0xff] %v1365
      %3373 = vst [vmem:[%s194 + $0xd0] sm:$0xff] %v1620
      %3374 = vst [vmem:[%s194 + $0xd8] sm:$0xff] %v1622
      %3375 = vst [vmem:[%s194 + $0xe0] sm:$0xff] %v1877
      %3376 = vst [vmem:[%s194 + $0xe8] sm:$0xff] %v1879
      %3377 = vst [vmem:[%s194 + $0xf0] sm:$0xff] %v2134
      %3378 = vst [vmem:[%s194 + $0xf8] sm:$0xff] %v2136
      %3379 = vst [vmem:[%s194 + $0x100] sm:$0xff] %v2391
      %3380 = vst [vmem:[%s194 + $0x108] sm:$0xff] %v2393
      %3381 = vst [vmem:[%s194 + $0x110] sm:$0xff] %v2648
      %3382 = vst [vmem:[%s194 + $0x118] sm:$0xff] %v2650
      %3383 = vst [vmem:[%s194 + $0x120] sm:$0xff] %v2905
      %3384 = vst [vmem:[%s194 + $0x128] sm:$0xff] %v2907
      %3385 = vst [vmem:[%s194 + $0x130] sm:$0xff] %v3162
      %3386 = vst.msk [vmem:[%s194 + $0x138] sm:$0xff] %vm3365, %v3164
      %3387 = vst [vmem:[%s194 + $0x140] sm:$0xff] %v855
      %3388 = vst [vmem:[%s194 + $0x148] sm:$0xff] %v857
      %3389 = vst [vmem:[%s194 + $0x150] sm:$0xff] %v1112
      %3390 = vst [vmem:[%s194 + $0x158] sm:$0xff] %v1114
      %3391 = vst [vmem:[%s194 + $0x160] sm:$0xff] %v1369
      %3392 = vst [vmem:[%s194 + $0x168] sm:$0xff] %v1371
      %3393 = vst [vmem:[%s194 + $0x170] sm:$0xff] %v1626
      %3394 = vst [vmem:[%s194 + $0x178] sm:$0xff] %v1628
      %3395 = vst [vmem:[%s194 + $0x180] sm:$0xff] %v1883
      %3396 = vst [vmem:[%s194 + $0x188] sm:$0xff] %v1885
      %3397 = vst [vmem:[%s194 + $0x190] sm:$0xff] %v2140
      %3398 = vst [vmem:[%s194 + $0x198] sm:$0xff] %v2142
      %3399 = vst [vmem:[%s194 + $0x1a0] sm:$0xff] %v2397
      %3400 = vst [vmem:[%s194 + $0x1a8] sm:$0xff] %v2399
      %3401 = vst [vmem:[%s194 + $0x1b0] sm:$0xff] %v2654
      %3402 = vst [vmem:[%s194 + $0x1b8] sm:$0xff] %v2656
      %3403 = vst [vmem:[%s194 + $0x1c0] sm:$0xff] %v2911
      %3404 = vst [vmem:[%s194 + $0x1c8] sm:$0xff] %v2913
      %3405 = vst [vmem:[%s194 + $0x1d0] sm:$0xff] %v3168
      %3406 = vst.msk [vmem:[%s194 + $0x1d8] sm:$0xff] %vm3365, %v3170
      %3407 = vst [vmem:[%s194 + $0x1e0] sm:$0xff] %v861
      %3408 = vst [vmem:[%s194 + $0x1e8] sm:$0xff] %v863
      %3409 = vst [vmem:[%s194 + $0x1f0] sm:$0xff] %v1118
      %3410 = vst [vmem:[%s194 + $0x1f8] sm:$0xff] %v1120
      %3411 = vst [vmem:[%s194 + $0x200] sm:$0xff] %v1375
      %3412 = vst [vmem:[%s194 + $0x208] sm:$0xff] %v1377
      %3413 = vst [vmem:[%s194 + $0x210] sm:$0xff] %v1632
      %3414 = vst [vmem:[%s194 + $0x218] sm:$0xff] %v1634
      %3415 = vst [vmem:[%s194 + $0x220] sm:$0xff] %v1889
      %3416 = vst [vmem:[%s194 + $0x228] sm:$0xff] %v1891
      %3417 = vst [vmem:[%s194 + $0x230] sm:$0xff] %v2146
      %3418 = vst [vmem:[%s194 + $0x238] sm:$0xff] %v2148
      %3419 = vst [vmem:[%s194 + $0x240] sm:$0xff] %v2403
      %3420 = vst [vmem:[%s194 + $0x248] sm:$0xff] %v2405
      %3421 = vst [vmem:[%s194 + $0x250] sm:$0xff] %v2660
      %3422 = vst [vmem:[%s194 + $0x258] sm:$0xff] %v2662
      %3423 = vst [vmem:[%s194 + $0x260] sm:$0xff] %v2917
      %3424 = vst [vmem:[%s194 + $0x268] sm:$0xff] %v2919
      %3425 = vst [vmem:[%s194 + $0x270] sm:$0xff] %v3174
      %3426 = vst.msk [vmem:[%s194 + $0x278] sm:$0xff] %vm3365, %v3176
      %3427 = vst [vmem:[%s194 + $0x280] sm:$0xff] %v867
      %3428 = vst [vmem:[%s194 + $0x288] sm:$0xff] %v869
      %3429 = vst [vmem:[%s194 + $0x290] sm:$0xff] %v1124
      %3430 = vst [vmem:[%s194 + $0x298] sm:$0xff] %v1126
      %3431 = vst [vmem:[%s194 + $0x2a0] sm:$0xff] %v1381
      %3432 = vst [vmem:[%s194 + $0x2a8] sm:$0xff] %v1383
      %3433 = vst [vmem:[%s194 + $0x2b0] sm:$0xff] %v1638
      %3434 = vst [vmem:[%s194 + $0x2b8] sm:$0xff] %v1640
      %3435 = vst [vmem:[%s194 + $0x2c0] sm:$0xff] %v1895
      %3436 = vst [vmem:[%s194 + $0x2c8] sm:$0xff] %v1897
      %3437 = vst [vmem:[%s194 + $0x2d0] sm:$0xff] %v2152
      %3438 = vst [vmem:[%s194 + $0x2d8] sm:$0xff] %v2154
      %3439 = vst [vmem:[%s194 + $0x2e0] sm:$0xff] %v2409
      %3440 = vst [vmem:[%s194 + $0x2e8] sm:$0xff] %v2411
      %3441 = vst [vmem:[%s194 + $0x2f0] sm:$0xff] %v2666
      %3442 = vst [vmem:[%s194 + $0x2f8] sm:$0xff] %v2668
      %3443 = vst [vmem:[%s194 + $0x300] sm:$0xff] %v2923
      %3444 = vst [vmem:[%s194 + $0x308] sm:$0xff] %v2925
      %3445 = vst [vmem:[%s194 + $0x310] sm:$0xff] %v3180
      %3446 = vst.msk [vmem:[%s194 + $0x318] sm:$0xff] %vm3365, %v3182
      %3447 = vst [vmem:[%s194 + $0x320] sm:$0xff] %v873
      %3448 = vst [vmem:[%s194 + $0x328] sm:$0xff] %v875
      %3449 = vst [vmem:[%s194 + $0x330] sm:$0xff] %v1130
      %3450 = vst [vmem:[%s194 + $0x338] sm:$0xff] %v1132
      %3451 = vst [vmem:[%s194 + $0x340] sm:$0xff] %v1387
      %3452 = vst [vmem:[%s194 + $0x348] sm:$0xff] %v1389
      %3453 = vst [vmem:[%s194 + $0x350] sm:$0xff] %v1644
      %3454 = vst [vmem:[%s194 + $0x358] sm:$0xff] %v1646
      %3455 = vst [vmem:[%s194 + $0x360] sm:$0xff] %v1901
      %3456 = vst [vmem:[%s194 + $0x368] sm:$0xff] %v1903
      %3457 = vst [vmem:[%s194 + $0x370] sm:$0xff] %v2158
      %3458 = vst [vmem:[%s194 + $0x378] sm:$0xff] %v2160
      %3459 = vst [vmem:[%s194 + $0x380] sm:$0xff] %v2415
      %3460 = vst [vmem:[%s194 + $0x388] sm:$0xff] %v2417
      %3461 = vst [vmem:[%s194 + $0x390] sm:$0xff] %v2672
      %3462 = vst [vmem:[%s194 + $0x398] sm:$0xff] %v2674
      %3463 = vst [vmem:[%s194 + $0x3a0] sm:$0xff] %v2929
      %3464 = vst [vmem:[%s194 + $0x3a8] sm:$0xff] %v2931
      %3465 = vst [vmem:[%s194 + $0x3b0] sm:$0xff] %v3186
      %3466 = vst.msk [vmem:[%s194 + $0x3b8] sm:$0xff] %vm3365, %v3188
      %3467 = vst [vmem:[%s194 + $0x3c0] sm:$0xff] %v879
      %3468 = vst [vmem:[%s194 + $0x3c8] sm:$0xff] %v881
      %3469 = vst [vmem:[%s194 + $0x3d0] sm:$0xff] %v1136
      %3470 = vst [vmem:[%s194 + $0x3d8] sm:$0xff] %v1138
      %3471 = vst [vmem:[%s194 + $0x3e0] sm:$0xff] %v1393
      %3472 = vst [vmem:[%s194 + $0x3e8] sm:$0xff] %v1395
      %3473 = vst [vmem:[%s194 + $0x3f0] sm:$0xff] %v1650
      %3474 = vst [vmem:[%s194 + $0x3f8] sm:$0xff] %v1652
      %3475 = vst [vmem:[%s194 + $0x400] sm:$0xff] %v1907
      %3476 = vst [vmem:[%s194 + $0x408] sm:$0xff] %v1909
      %3477 = vst [vmem:[%s194 + $0x410] sm:$0xff] %v2164
      %3478 = vst [vmem:[%s194 + $0x418] sm:$0xff] %v2166
      %3479 = vst [vmem:[%s194 + $0x420] sm:$0xff] %v2421
      %3480 = vst [vmem:[%s194 + $0x428] sm:$0xff] %v2423
      %3481 = vst [vmem:[%s194 + $0x430] sm:$0xff] %v2678
      %3482 = vst [vmem:[%s194 + $0x438] sm:$0xff] %v2680
      %3483 = vst [vmem:[%s194 + $0x440] sm:$0xff] %v2935
      %3484 = vst [vmem:[%s194 + $0x448] sm:$0xff] %v2937
      %3485 = vst [vmem:[%s194 + $0x450] sm:$0xff] %v3192
      %3486 = vst.msk [vmem:[%s194 + $0x458] sm:$0xff] %vm3365, %v3194
      %3487 = vst [vmem:[%s194 + $0x460] sm:$0xff] %v885
      %3488 = vst [vmem:[%s194 + $0x468] sm:$0xff] %v887
      %3489 = vst [vmem:[%s194 + $0x470] sm:$0xff] %v1142
      %3490 = vst [vmem:[%s194 + $0x478] sm:$0xff] %v1144
      %3491 = vst [vmem:[%s194 + $0x480] sm:$0xff] %v1399
      %3492 = vst [vmem:[%s194 + $0x488] sm:$0xff] %v1401
      %3493 = vst [vmem:[%s194 + $0x490] sm:$0xff] %v1656
      %3494 = vst [vmem:[%s194 + $0x498] sm:$0xff] %v1658
      %3495 = vst [vmem:[%s194 + $0x4a0] sm:$0xff] %v1913
      %3496 = vst [vmem:[%s194 + $0x4a8] sm:$0xff] %v1915
      %3497 = vst [vmem:[%s194 + $0x4b0] sm:$0xff] %v2170
      %3498 = vst [vmem:[%s194 + $0x4b8] sm:$0xff] %v2172
      %3499 = vst [vmem:[%s194 + $0x4c0] sm:$0xff] %v2427
      %3500 = vst [vmem:[%s194 + $0x4c8] sm:$0xff] %v2429
      %3501 = vst [vmem:[%s194 + $0x4d0] sm:$0xff] %v2684
      %3502 = vst [vmem:[%s194 + $0x4d8] sm:$0xff] %v2686
      %3503 = vst [vmem:[%s194 + $0x4e0] sm:$0xff] %v2941
      %3504 = vst [vmem:[%s194 + $0x4e8] sm:$0xff] %v2943
      %3505 = vst [vmem:[%s194 + $0x4f0] sm:$0xff] %v3198
      %3506 = vst.msk [vmem:[%s194 + $0x4f8] sm:$0xff] %vm3365, %v3200
      %3507 = vst [vmem:[%s194 + $0x500] sm:$0xff] %v891
      %3508 = vst [vmem:[%s194 + $0x508] sm:$0xff] %v893
      %3509 = vst [vmem:[%s194 + $0x510] sm:$0xff] %v1148
      %3510 = vst [vmem:[%s194 + $0x518] sm:$0xff] %v1150
      %3511 = vst [vmem:[%s194 + $0x520] sm:$0xff] %v1405
      %3512 = vst [vmem:[%s194 + $0x528] sm:$0xff] %v1407
      %3513 = vst [vmem:[%s194 + $0x530] sm:$0xff] %v1662
      %3514 = vst [vmem:[%s194 + $0x538] sm:$0xff] %v1664
      %3515 = vst [vmem:[%s194 + $0x540] sm:$0xff] %v1919
      %3516 = vst [vmem:[%s194 + $0x548] sm:$0xff] %v1921
      %3517 = vst [vmem:[%s194 + $0x550] sm:$0xff] %v2176
      %3518 = vst [vmem:[%s194 + $0x558] sm:$0xff] %v2178
      %3519 = vst [vmem:[%s194 + $0x560] sm:$0xff] %v2433
      %3520 = vst [vmem:[%s194 + $0x568] sm:$0xff] %v2435
      %3521 = vst [vmem:[%s194 + $0x570] sm:$0xff] %v2690
      %3522 = vst [vmem:[%s194 + $0x578] sm:$0xff] %v2692
      %3523 = vst [vmem:[%s194 + $0x580] sm:$0xff] %v2947
      %3524 = vst [vmem:[%s194 + $0x588] sm:$0xff] %v2949
      %3525 = vst [vmem:[%s194 + $0x590] sm:$0xff] %v3204
      %3526 = vst.msk [vmem:[%s194 + $0x598] sm:$0xff] %vm3365, %v3206
      %3527 = vst [vmem:[%s194 + $0x5a0] sm:$0xff] %v897
      %3528 = vst [vmem:[%s194 + $0x5a8] sm:$0xff] %v899
      %3529 = vst [vmem:[%s194 + $0x5b0] sm:$0xff] %v1154
      %3530 = vst [vmem:[%s194 + $0x5b8] sm:$0xff] %v1156
      %3531 = vst [vmem:[%s194 + $0x5c0] sm:$0xff] %v1411
      %3532 = vst [vmem:[%s194 + $0x5c8] sm:$0xff] %v1413
      %3533 = vst [vmem:[%s194 + $0x5d0] sm:$0xff] %v1668
      %3534 = vst [vmem:[%s194 + $0x5d8] sm:$0xff] %v1670
      %3535 = vst [vmem:[%s194 + $0x5e0] sm:$0xff] %v1925
      %3536 = vst [vmem:[%s194 + $0x5e8] sm:$0xff] %v1927
      %3537 = vst [vmem:[%s194 + $0x5f0] sm:$0xff] %v2182
      %3538 = vst [vmem:[%s194 + $0x5f8] sm:$0xff] %v2184
      %3539 = vst [vmem:[%s194 + $0x600] sm:$0xff] %v2439
      %3540 = vst [vmem:[%s194 + $0x608] sm:$0xff] %v2441
      %3541 = vst [vmem:[%s194 + $0x610] sm:$0xff] %v2696
      %3542 = vst [vmem:[%s194 + $0x618] sm:$0xff] %v2698
      %3543 = vst [vmem:[%s194 + $0x620] sm:$0xff] %v2953
      %3544 = vst [vmem:[%s194 + $0x628] sm:$0xff] %v2955
      %3545 = vst [vmem:[%s194 + $0x630] sm:$0xff] %v3210
      %3546 = vst.msk [vmem:[%s194 + $0x638] sm:$0xff] %vm3365, %v3212
      %3547 = vst [vmem:[%s194 + $0x640] sm:$0xff] %v903
      %3548 = vst [vmem:[%s194 + $0x648] sm:$0xff] %v905
      %3549 = vst [vmem:[%s194 + $0x650] sm:$0xff] %v1160
      %3550 = vst [vmem:[%s194 + $0x658] sm:$0xff] %v1162
      %3551 = vst [vmem:[%s194 + $0x660] sm:$0xff] %v1417
      %3552 = vst [vmem:[%s194 + $0x668] sm:$0xff] %v1419
      %3553 = vst [vmem:[%s194 + $0x670] sm:$0xff] %v1674
      %3554 = vst [vmem:[%s194 + $0x678] sm:$0xff] %v1676
      %3555 = vst [vmem:[%s194 + $0x680] sm:$0xff] %v1931
      %3556 = vst [vmem:[%s194 + $0x688] sm:$0xff] %v1933
      %3557 = vst [vmem:[%s194 + $0x690] sm:$0xff] %v2188
      %3558 = vst [vmem:[%s194 + $0x698] sm:$0xff] %v2190
      %3559 = vst [vmem:[%s194 + $0x6a0] sm:$0xff] %v2445
      %3560 = vst [vmem:[%s194 + $0x6a8] sm:$0xff] %v2447
      %3561 = vst [vmem:[%s194 + $0x6b0] sm:$0xff] %v2702
      %3562 = vst [vmem:[%s194 + $0x6b8] sm:$0xff] %v2704
      %3563 = vst [vmem:[%s194 + $0x6c0] sm:$0xff] %v2959
      %3564 = vst [vmem:[%s194 + $0x6c8] sm:$0xff] %v2961
      %3565 = vst [vmem:[%s194 + $0x6d0] sm:$0xff] %v3216
      %3566 = vst.msk [vmem:[%s194 + $0x6d8] sm:$0xff] %vm3365, %v3218
      %3567 = vst [vmem:[%s194 + $0x6e0] sm:$0xff] %v909
      %3568 = vst [vmem:[%s194 + $0x6e8] sm:$0xff] %v911
      %3569 = vst [vmem:[%s194 + $0x6f0] sm:$0xff] %v1166
      %3570 = vst [vmem:[%s194 + $0x6f8] sm:$0xff] %v1168
      %3571 = vst [vmem:[%s194 + $0x700] sm:$0xff] %v1423
      %3572 = vst [vmem:[%s194 + $0x708] sm:$0xff] %v1425
      %3573 = vst [vmem:[%s194 + $0x710] sm:$0xff] %v1680
      %3574 = vst [vmem:[%s194 + $0x718] sm:$0xff] %v1682
      %3575 = vst [vmem:[%s194 + $0x720] sm:$0xff] %v1937
      %3576 = vst [vmem:[%s194 + $0x728] sm:$0xff] %v1939
      %3577 = vst [vmem:[%s194 + $0x730] sm:$0xff] %v2194
      %3578 = vst [vmem:[%s194 + $0x738] sm:$0xff] %v2196
      %3579 = vst [vmem:[%s194 + $0x740] sm:$0xff] %v2451
      %3580 = vst [vmem:[%s194 + $0x748] sm:$0xff] %v2453
      %3581 = vst [vmem:[%s194 + $0x750] sm:$0xff] %v2708
      %3582 = vst [vmem:[%s194 + $0x758] sm:$0xff] %v2710
      %3583 = vst [vmem:[%s194 + $0x760] sm:$0xff] %v2965
      %3584 = vst [vmem:[%s194 + $0x768] sm:$0xff] %v2967
      %3585 = vst [vmem:[%s194 + $0x770] sm:$0xff] %v3222
      %3586 = vst.msk [vmem:[%s194 + $0x778] sm:$0xff] %vm3365, %v3224
      %3587 = vst [vmem:[%s194 + $0x780] sm:$0xff] %v915
      %3588 = vst [vmem:[%s194 + $0x788] sm:$0xff] %v917
      %3589 = vst [vmem:[%s194 + $0x790] sm:$0xff] %v1172
      %3590 = vst [vmem:[%s194 + $0x798] sm:$0xff] %v1174
      %3591 = vst [vmem:[%s194 + $0x7a0] sm:$0xff] %v1429
      %3592 = vst [vmem:[%s194 + $0x7a8] sm:$0xff] %v1431
      %3593 = vst [vmem:[%s194 + $0x7b0] sm:$0xff] %v1686
      %3594 = vst [vmem:[%s194 + $0x7b8] sm:$0xff] %v1688
      %3595 = vst [vmem:[%s194 + $0x7c0] sm:$0xff] %v1943
      %3596 = vst [vmem:[%s194 + $0x7c8] sm:$0xff] %v1945
      %3597 = vst [vmem:[%s194 + $0x7d0] sm:$0xff] %v2200
      %3598 = vst [vmem:[%s194 + $0x7d8] sm:$0xff] %v2202
      %3599 = vst [vmem:[%s194 + $0x7e0] sm:$0xff] %v2457
      %3600 = vst [vmem:[%s194 + $0x7e8] sm:$0xff] %v2459
      %3601 = vst [vmem:[%s194 + $0x7f0] sm:$0xff] %v2714
      %3602 = vst [vmem:[%s194 + $0x7f8] sm:$0xff] %v2716
      %3603 = vst [vmem:[%s194 + $0x800] sm:$0xff] %v2971
      %3604 = vst [vmem:[%s194 + $0x808] sm:$0xff] %v2973
      %3605 = vst [vmem:[%s194 + $0x810] sm:$0xff] %v3228
      %3606 = vst.msk [vmem:[%s194 + $0x818] sm:$0xff] %vm3365, %v3230
      %3607 = vst [vmem:[%s194 + $0x820] sm:$0xff] %v921
      %3608 = vst [vmem:[%s194 + $0x828] sm:$0xff] %v923
      %3609 = vst [vmem:[%s194 + $0x830] sm:$0xff] %v1178
      %3610 = vst [vmem:[%s194 + $0x838] sm:$0xff] %v1180
      %3611 = vst [vmem:[%s194 + $0x840] sm:$0xff] %v1435
      %3612 = vst [vmem:[%s194 + $0x848] sm:$0xff] %v1437
      %3613 = vst [vmem:[%s194 + $0x850] sm:$0xff] %v1692
      %3614 = vst [vmem:[%s194 + $0x858] sm:$0xff] %v1694
      %3615 = vst [vmem:[%s194 + $0x860] sm:$0xff] %v1949
      %3616 = vst [vmem:[%s194 + $0x868] sm:$0xff] %v1951
      %3617 = vst [vmem:[%s194 + $0x870] sm:$0xff] %v2206
      %3618 = vst [vmem:[%s194 + $0x878] sm:$0xff] %v2208
      %3619 = vst [vmem:[%s194 + $0x880] sm:$0xff] %v2463
      %3620 = vst [vmem:[%s194 + $0x888] sm:$0xff] %v2465
      %3621 = vst [vmem:[%s194 + $0x890] sm:$0xff] %v2720
      %3622 = vst [vmem:[%s194 + $0x898] sm:$0xff] %v2722
      %3623 = vst [vmem:[%s194 + $0x8a0] sm:$0xff] %v2977
      %3624 = vst [vmem:[%s194 + $0x8a8] sm:$0xff] %v2979
      %3625 = vst [vmem:[%s194 + $0x8b0] sm:$0xff] %v3234
      %3626 = vst.msk [vmem:[%s194 + $0x8b8] sm:$0xff] %vm3365, %v3236
      %3627 = vst [vmem:[%s194 + $0x8c0] sm:$0xff] %v927
      %3628 = vst [vmem:[%s194 + $0x8c8] sm:$0xff] %v929
      %3629 = vst [vmem:[%s194 + $0x8d0] sm:$0xff] %v1184
      %3630 = vst [vmem:[%s194 + $0x8d8] sm:$0xff] %v1186
      %3631 = vst [vmem:[%s194 + $0x8e0] sm:$0xff] %v1441
      %3632 = vst [vmem:[%s194 + $0x8e8] sm:$0xff] %v1443
      %3633 = vst [vmem:[%s194 + $0x8f0] sm:$0xff] %v1698
      %3634 = vst [vmem:[%s194 + $0x8f8] sm:$0xff] %v1700
      %3635 = vst [vmem:[%s194 + $0x900] sm:$0xff] %v1955
      %3636 = vst [vmem:[%s194 + $0x908] sm:$0xff] %v1957
      %3637 = vst [vmem:[%s194 + $0x910] sm:$0xff] %v2212
      %3638 = vst [vmem:[%s194 + $0x918] sm:$0xff] %v2214
      %3639 = vst [vmem:[%s194 + $0x920] sm:$0xff] %v2469
      %3640 = vst [vmem:[%s194 + $0x928] sm:$0xff] %v2471
      %3641 = vst [vmem:[%s194 + $0x930] sm:$0xff] %v2726
      %3642 = vst [vmem:[%s194 + $0x938] sm:$0xff] %v2728
      %3643 = vst [vmem:[%s194 + $0x940] sm:$0xff] %v2983
      %3644 = vst [vmem:[%s194 + $0x948] sm:$0xff] %v2985
      %3645 = vst [vmem:[%s194 + $0x950] sm:$0xff] %v3240
      %3646 = vst.msk [vmem:[%s194 + $0x958] sm:$0xff] %vm3365, %v3242
      %3647 = vst [vmem:[%s194 + $0x960] sm:$0xff] %v933
      %3648 = vst [vmem:[%s194 + $0x968] sm:$0xff] %v935
      %3649 = vst [vmem:[%s194 + $0x970] sm:$0xff] %v1190
      %3650 = vst [vmem:[%s194 + $0x978] sm:$0xff] %v1192
      %3651 = vst [vmem:[%s194 + $0x980] sm:$0xff] %v1447
      %3652 = vst [vmem:[%s194 + $0x988] sm:$0xff] %v1449
      %3653 = vst [vmem:[%s194 + $0x990] sm:$0xff] %v1704
      %3654 = vst [vmem:[%s194 + $0x998] sm:$0xff] %v1706
      %3655 = vst [vmem:[%s194 + $0x9a0] sm:$0xff] %v1961
      %3656 = vst [vmem:[%s194 + $0x9a8] sm:$0xff] %v1963
      %3657 = vst [vmem:[%s194 + $0x9b0] sm:$0xff] %v2218
      %3658 = vst [vmem:[%s194 + $0x9b8] sm:$0xff] %v2220
      %3659 = vst [vmem:[%s194 + $0x9c0] sm:$0xff] %v2475
      %3660 = vst [vmem:[%s194 + $0x9c8] sm:$0xff] %v2477
      %3661 = vst [vmem:[%s194 + $0x9d0] sm:$0xff] %v2732
      %3662 = vst [vmem:[%s194 + $0x9d8] sm:$0xff] %v2734
      %3663 = vst [vmem:[%s194 + $0x9e0] sm:$0xff] %v2989
      %3664 = vst [vmem:[%s194 + $0x9e8] sm:$0xff] %v2991
      %3665 = vst [vmem:[%s194 + $0x9f0] sm:$0xff] %v3246
      %3666 = vst.msk [vmem:[%s194 + $0x9f8] sm:$0xff] %vm3365, %v3248
      %3667 = vst [vmem:[%s194 + $0xa00] sm:$0xff] %v939
      %3668 = vst [vmem:[%s194 + $0xa08] sm:$0xff] %v941
      %3669 = vst [vmem:[%s194 + $0xa10] sm:$0xff] %v1196
      %3670 = vst [vmem:[%s194 + $0xa18] sm:$0xff] %v1198
      %3671 = vst [vmem:[%s194 + $0xa20] sm:$0xff] %v1453
      %3672 = vst [vmem:[%s194 + $0xa28] sm:$0xff] %v1455
      %3673 = vst [vmem:[%s194 + $0xa30] sm:$0xff] %v1710
      %3674 = vst [vmem:[%s194 + $0xa38] sm:$0xff] %v1712
      %3675 = vst [vmem:[%s194 + $0xa40] sm:$0xff] %v1967
      %3676 = vst [vmem:[%s194 + $0xa48] sm:$0xff] %v1969
      %3677 = vst [vmem:[%s194 + $0xa50] sm:$0xff] %v2224
      %3678 = vst [vmem:[%s194 + $0xa58] sm:$0xff] %v2226
      %3679 = vst [vmem:[%s194 + $0xa60] sm:$0xff] %v2481
      %3680 = vst [vmem:[%s194 + $0xa68] sm:$0xff] %v2483
      %3681 = vst [vmem:[%s194 + $0xa70] sm:$0xff] %v2738
      %3682 = vst [vmem:[%s194 + $0xa78] sm:$0xff] %v2740
      %3683 = vst [vmem:[%s194 + $0xa80] sm:$0xff] %v2995
      %3684 = vst [vmem:[%s194 + $0xa88] sm:$0xff] %v2997
      %3685 = vst [vmem:[%s194 + $0xa90] sm:$0xff] %v3252
      %3686 = vst.msk [vmem:[%s194 + $0xa98] sm:$0xff] %vm3365, %v3254
      %3687 = vst [vmem:[%s194 + $0xaa0] sm:$0xff] %v945
      %3688 = vst [vmem:[%s194 + $0xaa8] sm:$0xff] %v947
      %3689 = vst [vmem:[%s194 + $0xab0] sm:$0xff] %v1202
      %3690 = vst [vmem:[%s194 + $0xab8] sm:$0xff] %v1204
      %3691 = vst [vmem:[%s194 + $0xac0] sm:$0xff] %v1459
      %3692 = vst [vmem:[%s194 + $0xac8] sm:$0xff] %v1461
      %3693 = vst [vmem:[%s194 + $0xad0] sm:$0xff] %v1716
      %3694 = vst [vmem:[%s194 + $0xad8] sm:$0xff] %v1718
      %3695 = vst [vmem:[%s194 + $0xae0] sm:$0xff] %v1973
      %3696 = vst [vmem:[%s194 + $0xae8] sm:$0xff] %v1975
      %3697 = vst [vmem:[%s194 + $0xaf0] sm:$0xff] %v2230
      %3698 = vst [vmem:[%s194 + $0xaf8] sm:$0xff] %v2232
      %3699 = vst [vmem:[%s194 + $0xb00] sm:$0xff] %v2487
      %3700 = vst [vmem:[%s194 + $0xb08] sm:$0xff] %v2489
      %3701 = vst [vmem:[%s194 + $0xb10] sm:$0xff] %v2744
      %3702 = vst [vmem:[%s194 + $0xb18] sm:$0xff] %v2746
      %3703 = vst [vmem:[%s194 + $0xb20] sm:$0xff] %v3001
      %3704 = vst [vmem:[%s194 + $0xb28] sm:$0xff] %v3003
      %3705 = vst [vmem:[%s194 + $0xb30] sm:$0xff] %v3258
      %3706 = vst.msk [vmem:[%s194 + $0xb38] sm:$0xff] %vm3365, %v3260
      %3707 = vst [vmem:[%s194 + $0xb40] sm:$0xff] %v951
      %3708 = vst [vmem:[%s194 + $0xb48] sm:$0xff] %v953
      %3709 = vst [vmem:[%s194 + $0xb50] sm:$0xff] %v1208
      %3710 = vst [vmem:[%s194 + $0xb58] sm:$0xff] %v1210
      %3711 = vst [vmem:[%s194 + $0xb60] sm:$0xff] %v1465
      %3712 = vst [vmem:[%s194 + $0xb68] sm:$0xff] %v1467
      %3713 = vst [vmem:[%s194 + $0xb70] sm:$0xff] %v1722
      %3714 = vst [vmem:[%s194 + $0xb78] sm:$0xff] %v1724
      %3715 = vst [vmem:[%s194 + $0xb80] sm:$0xff] %v1979
      %3716 = vst [vmem:[%s194 + $0xb88] sm:$0xff] %v1981
      %3717 = vst [vmem:[%s194 + $0xb90] sm:$0xff] %v2236
      %3718 = vst [vmem:[%s194 + $0xb98] sm:$0xff] %v2238
      %3719 = vst [vmem:[%s194 + $0xba0] sm:$0xff] %v2493
      %3720 = vst [vmem:[%s194 + $0xba8] sm:$0xff] %v2495
      %3721 = vst [vmem:[%s194 + $0xbb0] sm:$0xff] %v2750
      %3722 = vst [vmem:[%s194 + $0xbb8] sm:$0xff] %v2752
      %3723 = vst [vmem:[%s194 + $0xbc0] sm:$0xff] %v3007
      %3724 = vst [vmem:[%s194 + $0xbc8] sm:$0xff] %v3009
      %3725 = vst [vmem:[%s194 + $0xbd0] sm:$0xff] %v3264
      %3726 = vst.msk [vmem:[%s194 + $0xbd8] sm:$0xff] %vm3365, %v3266
      %3727 = vst [vmem:[%s194 + $0xbe0] sm:$0xff] %v957
      %3728 = vst [vmem:[%s194 + $0xbe8] sm:$0xff] %v959
      %3729 = vst [vmem:[%s194 + $0xbf0] sm:$0xff] %v1214
      %3730 = vst [vmem:[%s194 + $0xbf8] sm:$0xff] %v1216
      %3731 = vst [vmem:[%s194 + $0xc00] sm:$0xff] %v1471
      %3732 = vst [vmem:[%s194 + $0xc08] sm:$0xff] %v1473
      %3733 = vst [vmem:[%s194 + $0xc10] sm:$0xff] %v1728
      %3734 = vst [vmem:[%s194 + $0xc18] sm:$0xff] %v1730
      %3735 = vst [vmem:[%s194 + $0xc20] sm:$0xff] %v1985
      %3736 = vst [vmem:[%s194 + $0xc28] sm:$0xff] %v1987
      %3737 = vst [vmem:[%s194 + $0xc30] sm:$0xff] %v2242
      %3738 = vst [vmem:[%s194 + $0xc38] sm:$0xff] %v2244
      %3739 = vst [vmem:[%s194 + $0xc40] sm:$0xff] %v2499
      %3740 = vst [vmem:[%s194 + $0xc48] sm:$0xff] %v2501
      %3741 = vst [vmem:[%s194 + $0xc50] sm:$0xff] %v2756
      %3742 = vst [vmem:[%s194 + $0xc58] sm:$0xff] %v2758
      %3743 = vst [vmem:[%s194 + $0xc60] sm:$0xff] %v3013
      %3744 = vst [vmem:[%s194 + $0xc68] sm:$0xff] %v3015
      %3745 = vst [vmem:[%s194 + $0xc70] sm:$0xff] %v3270
      %3746 = vst.msk [vmem:[%s194 + $0xc78] sm:$0xff] %vm3365, %v3272
      %3747 = vst [vmem:[%s194 + $0xc80] sm:$0xff] %v963
      %3748 = vst [vmem:[%s194 + $0xc88] sm:$0xff] %v965
      %3749 = vst [vmem:[%s194 + $0xc90] sm:$0xff] %v1220
      %3750 = vst [vmem:[%s194 + $0xc98] sm:$0xff] %v1222
      %3751 = vst [vmem:[%s194 + $0xca0] sm:$0xff] %v1477
      %3752 = vst [vmem:[%s194 + $0xca8] sm:$0xff] %v1479
      %3753 = vst [vmem:[%s194 + $0xcb0] sm:$0xff] %v1734
      %3754 = vst [vmem:[%s194 + $0xcb8] sm:$0xff] %v1736
      %3755 = vst [vmem:[%s194 + $0xcc0] sm:$0xff] %v1991
      %3756 = vst [vmem:[%s194 + $0xcc8] sm:$0xff] %v1993
      %3757 = vst [vmem:[%s194 + $0xcd0] sm:$0xff] %v2248
      %3758 = vst [vmem:[%s194 + $0xcd8] sm:$0xff] %v2250
      %3759 = vst [vmem:[%s194 + $0xce0] sm:$0xff] %v2505
      %3760 = vst [vmem:[%s194 + $0xce8] sm:$0xff] %v2507
      %3761 = vst [vmem:[%s194 + $0xcf0] sm:$0xff] %v2762
      %3762 = vst [vmem:[%s194 + $0xcf8] sm:$0xff] %v2764
      %3763 = vst [vmem:[%s194 + $0xd00] sm:$0xff] %v3019
      %3764 = vst [vmem:[%s194 + $0xd08] sm:$0xff] %v3021
      %3765 = vst [vmem:[%s194 + $0xd10] sm:$0xff] %v3276
      %3766 = vst.msk [vmem:[%s194 + $0xd18] sm:$0xff] %vm3365, %v3278
      %3767 = vst [vmem:[%s194 + $0xd20] sm:$0xff] %v969
      %3768 = vst [vmem:[%s194 + $0xd28] sm:$0xff] %v971
      %3769 = vst [vmem:[%s194 + $0xd30] sm:$0xff] %v1226
      %3770 = vst [vmem:[%s194 + $0xd38] sm:$0xff] %v1228
      %3771 = vst [vmem:[%s194 + $0xd40] sm:$0xff] %v1483
      %3772 = vst [vmem:[%s194 + $0xd48] sm:$0xff] %v1485
      %3773 = vst [vmem:[%s194 + $0xd50] sm:$0xff] %v1740
      %3774 = vst [vmem:[%s194 + $0xd58] sm:$0xff] %v1742
      %3775 = vst [vmem:[%s194 + $0xd60] sm:$0xff] %v1997
      %3776 = vst [vmem:[%s194 + $0xd68] sm:$0xff] %v1999
      %3777 = vst [vmem:[%s194 + $0xd70] sm:$0xff] %v2254
      %3778 = vst [vmem:[%s194 + $0xd78] sm:$0xff] %v2256
      %3779 = vst [vmem:[%s194 + $0xd80] sm:$0xff] %v2511
      %3780 = vst [vmem:[%s194 + $0xd88] sm:$0xff] %v2513
      %3781 = vst [vmem:[%s194 + $0xd90] sm:$0xff] %v2768
      %3782 = vst [vmem:[%s194 + $0xd98] sm:$0xff] %v2770
      %3783 = vst [vmem:[%s194 + $0xda0] sm:$0xff] %v3025
      %3784 = vst [vmem:[%s194 + $0xda8] sm:$0xff] %v3027
      %3785 = vst [vmem:[%s194 + $0xdb0] sm:$0xff] %v3282
      %3786 = vst.msk [vmem:[%s194 + $0xdb8] sm:$0xff] %vm3365, %v3284
      %3787 = vst [vmem:[%s194 + $0xdc0] sm:$0xff] %v975
      %3788 = vst [vmem:[%s194 + $0xdc8] sm:$0xff] %v977
      %3789 = vst [vmem:[%s194 + $0xdd0] sm:$0xff] %v1232
      %3790 = vst [vmem:[%s194 + $0xdd8] sm:$0xff] %v1234
      %3791 = vst [vmem:[%s194 + $0xde0] sm:$0xff] %v1489
      %3792 = vst [vmem:[%s194 + $0xde8] sm:$0xff] %v1491
      %3793 = vst [vmem:[%s194 + $0xdf0] sm:$0xff] %v1746
      %3794 = vst [vmem:[%s194 + $0xdf8] sm:$0xff] %v1748
      %3795 = vst [vmem:[%s194 + $0xe00] sm:$0xff] %v2003
      %3796 = vst [vmem:[%s194 + $0xe08] sm:$0xff] %v2005
      %3797 = vst [vmem:[%s194 + $0xe10] sm:$0xff] %v2260
      %3798 = vst [vmem:[%s194 + $0xe18] sm:$0xff] %v2262
      %3799 = vst [vmem:[%s194 + $0xe20] sm:$0xff] %v2517
      %3800 = vst [vmem:[%s194 + $0xe28] sm:$0xff] %v2519
      %3801 = vst [vmem:[%s194 + $0xe30] sm:$0xff] %v2774
      %3802 = vst [vmem:[%s194 + $0xe38] sm:$0xff] %v2776
      %3803 = vst [vmem:[%s194 + $0xe40] sm:$0xff] %v3031
      %3804 = vst [vmem:[%s194 + $0xe48] sm:$0xff] %v3033
      %3805 = vst [vmem:[%s194 + $0xe50] sm:$0xff] %v3288
      %3806 = vst.msk [vmem:[%s194 + $0xe58] sm:$0xff] %vm3365, %v3290
      %3807 = vst [vmem:[%s194 + $0xe60] sm:$0xff] %v981
      %3808 = vst [vmem:[%s194 + $0xe68] sm:$0xff] %v983
      %3809 = vst [vmem:[%s194 + $0xe70] sm:$0xff] %v1238
      %3810 = vst [vmem:[%s194 + $0xe78] sm:$0xff] %v1240
      %3811 = vst [vmem:[%s194 + $0xe80] sm:$0xff] %v1495
      %3812 = vst [vmem:[%s194 + $0xe88] sm:$0xff] %v1497
      %3813 = vst [vmem:[%s194 + $0xe90] sm:$0xff] %v1752
      %3814 = vst [vmem:[%s194 + $0xe98] sm:$0xff] %v1754
      %3815 = vst [vmem:[%s194 + $0xea0] sm:$0xff] %v2009
      %3816 = vst [vmem:[%s194 + $0xea8] sm:$0xff] %v2011
      %3817 = vst [vmem:[%s194 + $0xeb0] sm:$0xff] %v2266
      %3818 = vst [vmem:[%s194 + $0xeb8] sm:$0xff] %v2268
      %3819 = vst [vmem:[%s194 + $0xec0] sm:$0xff] %v2523
      %3820 = vst [vmem:[%s194 + $0xec8] sm:$0xff] %v2525
      %3821 = vst [vmem:[%s194 + $0xed0] sm:$0xff] %v2780
      %3822 = vst [vmem:[%s194 + $0xed8] sm:$0xff] %v2782
      %3823 = vst [vmem:[%s194 + $0xee0] sm:$0xff] %v3037
      %3824 = vst [vmem:[%s194 + $0xee8] sm:$0xff] %v3039
      %3825 = vst [vmem:[%s194 + $0xef0] sm:$0xff] %v3294
      %3826 = vst.msk [vmem:[%s194 + $0xef8] sm:$0xff] %vm3365, %v3296
      %3827 = vst [vmem:[%s194 + $0xf00] sm:$0xff] %v987
      %3828 = vst [vmem:[%s194 + $0xf08] sm:$0xff] %v989
      %3829 = vst [vmem:[%s194 + $0xf10] sm:$0xff] %v1244
      %3830 = vst [vmem:[%s194 + $0xf18] sm:$0xff] %v1246
      %3831 = vst [vmem:[%s194 + $0xf20] sm:$0xff] %v1501
      %3832 = vst [vmem:[%s194 + $0xf28] sm:$0xff] %v1503
      %3833 = vst [vmem:[%s194 + $0xf30] sm:$0xff] %v1758
      %3834 = vst [vmem:[%s194 + $0xf38] sm:$0xff] %v1760
      %3835 = vst [vmem:[%s194 + $0xf40] sm:$0xff] %v2015
      %3836 = vst [vmem:[%s194 + $0xf48] sm:$0xff] %v2017
      %3837 = vst [vmem:[%s194 + $0xf50] sm:$0xff] %v2272
      %3838 = vst [vmem:[%s194 + $0xf58] sm:$0xff] %v2274
      %3839 = vst [vmem:[%s194 + $0xf60] sm:$0xff] %v2529
      %3840 = vst [vmem:[%s194 + $0xf68] sm:$0xff] %v2531
      %3841 = vst [vmem:[%s194 + $0xf70] sm:$0xff] %v2786
      %3842 = vst [vmem:[%s194 + $0xf78] sm:$0xff] %v2788
      %3843 = vst [vmem:[%s194 + $0xf80] sm:$0xff] %v3043
      %3844 = vst [vmem:[%s194 + $0xf88] sm:$0xff] %v3045
      %3845 = vst [vmem:[%s194 + $0xf90] sm:$0xff] %v3300
      %3846 = vst.msk [vmem:[%s194 + $0xf98] sm:$0xff] %vm3365, %v3302
      %3847 = vst [vmem:[%s194 + $0xfa0] sm:$0xff] %v993
      %3848 = vst [vmem:[%s194 + $0xfa8] sm:$0xff] %v995
      %3849 = vst [vmem:[%s194 + $0xfb0] sm:$0xff] %v1250
      %3850 = vst [vmem:[%s194 + $0xfb8] sm:$0xff] %v1252
      %3851 = vst [vmem:[%s194 + $0xfc0] sm:$0xff] %v1507
      %3852 = vst [vmem:[%s194 + $0xfc8] sm:$0xff] %v1509
      %3853 = vst [vmem:[%s194 + $0xfd0] sm:$0xff] %v1764
      %3854 = vst [vmem:[%s194 + $0xfd8] sm:$0xff] %v1766
      %3855 = vst [vmem:[%s194 + $0xfe0] sm:$0xff] %v2021
      %3856 = vst [vmem:[%s194 + $0xfe8] sm:$0xff] %v2023
      %3857 = vst [vmem:[%s194 + $0xff0] sm:$0xff] %v2278
      %3858 = vst [vmem:[%s194 + $0xff8] sm:$0xff] %v2280
      %3859 = vst [vmem:[%s194 + $0x1000] sm:$0xff] %v2535
      %3860 = vst [vmem:[%s194 + $0x1008] sm:$0xff] %v2537
      %3861 = vst [vmem:[%s194 + $0x1010] sm:$0xff] %v2792
      %3862 = vst [vmem:[%s194 + $0x1018] sm:$0xff] %v2794
      %3863 = vst [vmem:[%s194 + $0x1020] sm:$0xff] %v3049
      %3864 = vst [vmem:[%s194 + $0x1028] sm:$0xff] %v3051
      %3865 = vst [vmem:[%s194 + $0x1030] sm:$0xff] %v3306
      %3866 = vst.msk [vmem:[%s194 + $0x1038] sm:$0xff] %vm3365, %v3308
      %3867 = vst [vmem:[%s194 + $0x1040] sm:$0xff] %v999
      %3868 = vst [vmem:[%s194 + $0x1048] sm:$0xff] %v1001
      %3869 = vst [vmem:[%s194 + $0x1050] sm:$0xff] %v1256
      %3870 = vst [vmem:[%s194 + $0x1058] sm:$0xff] %v1258
      %3871 = vst [vmem:[%s194 + $0x1060] sm:$0xff] %v1513
      %3872 = vst [vmem:[%s194 + $0x1068] sm:$0xff] %v1515
      %3873 = vst [vmem:[%s194 + $0x1070] sm:$0xff] %v1770
      %3874 = vst [vmem:[%s194 + $0x1078] sm:$0xff] %v1772
      %3875 = vst [vmem:[%s194 + $0x1080] sm:$0xff] %v2027
      %3876 = vst [vmem:[%s194 + $0x1088] sm:$0xff] %v2029
      %3877 = vst [vmem:[%s194 + $0x1090] sm:$0xff] %v2284
      %3878 = vst [vmem:[%s194 + $0x1098] sm:$0xff] %v2286
      %3879 = vst [vmem:[%s194 + $0x10a0] sm:$0xff] %v2541
      %3880 = vst [vmem:[%s194 + $0x10a8] sm:$0xff] %v2543
      %3881 = vst [vmem:[%s194 + $0x10b0] sm:$0xff] %v2798
      %3882 = vst [vmem:[%s194 + $0x10b8] sm:$0xff] %v2800
      %3883 = vst [vmem:[%s194 + $0x10c0] sm:$0xff] %v3055
      %3884 = vst [vmem:[%s194 + $0x10c8] sm:$0xff] %v3057
      %3885 = vst [vmem:[%s194 + $0x10d0] sm:$0xff] %v3312
      %3886 = vst.msk [vmem:[%s194 + $0x10d8] sm:$0xff] %vm3365, %v3314
      %3887 = vst [vmem:[%s194 + $0x10e0] sm:$0xff] %v1005
      %3888 = vst [vmem:[%s194 + $0x10e8] sm:$0xff] %v1007
      %3889 = vst [vmem:[%s194 + $0x10f0] sm:$0xff] %v1262
      %3890 = vst [vmem:[%s194 + $0x10f8] sm:$0xff] %v1264
      %3891 = vst [vmem:[%s194 + $0x1100] sm:$0xff] %v1519
      %3892 = vst [vmem:[%s194 + $0x1108] sm:$0xff] %v1521
      %3893 = vst [vmem:[%s194 + $0x1110] sm:$0xff] %v1776
      %3894 = vst [vmem:[%s194 + $0x1118] sm:$0xff] %v1778
      %3895 = vst [vmem:[%s194 + $0x1120] sm:$0xff] %v2033
      %3896 = vst [vmem:[%s194 + $0x1128] sm:$0xff] %v2035
      %3897 = vst [vmem:[%s194 + $0x1130] sm:$0xff] %v2290
      %3898 = vst [vmem:[%s194 + $0x1138] sm:$0xff] %v2292
      %3899 = vst [vmem:[%s194 + $0x1140] sm:$0xff] %v2547
      %3900 = vst [vmem:[%s194 + $0x1148] sm:$0xff] %v2549
      %3901 = vst [vmem:[%s194 + $0x1150] sm:$0xff] %v2804
      %3902 = vst [vmem:[%s194 + $0x1158] sm:$0xff] %v2806
      %3903 = vst [vmem:[%s194 + $0x1160] sm:$0xff] %v3061
      %3904 = vst [vmem:[%s194 + $0x1168] sm:$0xff] %v3063
      %3905 = vst [vmem:[%s194 + $0x1170] sm:$0xff] %v3318
      %3906 = vst.msk [vmem:[%s194 + $0x1178] sm:$0xff] %vm3365, %v3320
      %3907 = vst [vmem:[%s194 + $0x1180] sm:$0xff] %v1011
      %3908 = vst [vmem:[%s194 + $0x1188] sm:$0xff] %v1013
      %3909 = vst [vmem:[%s194 + $0x1190] sm:$0xff] %v1268
      %3910 = vst [vmem:[%s194 + $0x1198] sm:$0xff] %v1270
      %3911 = vst [vmem:[%s194 + $0x11a0] sm:$0xff] %v1525
      %3912 = vst [vmem:[%s194 + $0x11a8] sm:$0xff] %v1527
      %3913 = vst [vmem:[%s194 + $0x11b0] sm:$0xff] %v1782
      %3914 = vst [vmem:[%s194 + $0x11b8] sm:$0xff] %v1784
      %3915 = vst [vmem:[%s194 + $0x11c0] sm:$0xff] %v2039
      %3916 = vst [vmem:[%s194 + $0x11c8] sm:$0xff] %v2041
      %3917 = vst [vmem:[%s194 + $0x11d0] sm:$0xff] %v2296
      %3918 = vst [vmem:[%s194 + $0x11d8] sm:$0xff] %v2298
      %3919 = vst [vmem:[%s194 + $0x11e0] sm:$0xff] %v2553
      %3920 = vst [vmem:[%s194 + $0x11e8] sm:$0xff] %v2555
      %3921 = vst [vmem:[%s194 + $0x11f0] sm:$0xff] %v2810
      %3922 = vst [vmem:[%s194 + $0x11f8] sm:$0xff] %v2812
      %3923 = vst [vmem:[%s194 + $0x1200] sm:$0xff] %v3067
      %3924 = vst [vmem:[%s194 + $0x1208] sm:$0xff] %v3069
      %3925 = vst [vmem:[%s194 + $0x1210] sm:$0xff] %v3324
      %3926 = vst.msk [vmem:[%s194 + $0x1218] sm:$0xff] %vm3365, %v3326
      %3927 = vst [vmem:[%s194 + $0x1220] sm:$0xff] %v1017
      %3928 = vst [vmem:[%s194 + $0x1228] sm:$0xff] %v1019
      %3929 = vst [vmem:[%s194 + $0x1230] sm:$0xff] %v1274
      %3930 = vst [vmem:[%s194 + $0x1238] sm:$0xff] %v1276
      %3931 = vst [vmem:[%s194 + $0x1240] sm:$0xff] %v1531
      %3932 = vst [vmem:[%s194 + $0x1248] sm:$0xff] %v1533
      %3933 = vst [vmem:[%s194 + $0x1250] sm:$0xff] %v1788
      %3934 = vst [vmem:[%s194 + $0x1258] sm:$0xff] %v1790
      %3935 = vst [vmem:[%s194 + $0x1260] sm:$0xff] %v2045
      %3936 = vst [vmem:[%s194 + $0x1268] sm:$0xff] %v2047
      %3937 = vst [vmem:[%s194 + $0x1270] sm:$0xff] %v2302
      %3938 = vst [vmem:[%s194 + $0x1278] sm:$0xff] %v2304
      %3939 = vst [vmem:[%s194 + $0x1280] sm:$0xff] %v2559
      %3940 = vst [vmem:[%s194 + $0x1288] sm:$0xff] %v2561
      %3941 = vst [vmem:[%s194 + $0x1290] sm:$0xff] %v2816
      %3942 = vst [vmem:[%s194 + $0x1298] sm:$0xff] %v2818
      %3943 = vst [vmem:[%s194 + $0x12a0] sm:$0xff] %v3073
      %3944 = vst [vmem:[%s194 + $0x12a8] sm:$0xff] %v3075
      %3945 = vst [vmem:[%s194 + $0x12b0] sm:$0xff] %v3330
      %3946 = vst.msk [vmem:[%s194 + $0x12b8] sm:$0xff] %vm3365, %v3332
      %3947 = vst [vmem:[%s194 + $0x12c0] sm:$0xff] %v1023
      %3948 = vst [vmem:[%s194 + $0x12c8] sm:$0xff] %v1025
      %3949 = vst [vmem:[%s194 + $0x12d0] sm:$0xff] %v1280
      %3950 = vst [vmem:[%s194 + $0x12d8] sm:$0xff] %v1282
      %3951 = vst [vmem:[%s194 + $0x12e0] sm:$0xff] %v1537
      %3952 = vst [vmem:[%s194 + $0x12e8] sm:$0xff] %v1539
      %3953 = vst [vmem:[%s194 + $0x12f0] sm:$0xff] %v1794
      %3954 = vst [vmem:[%s194 + $0x12f8] sm:$0xff] %v1796
      %3955 = vst [vmem:[%s194 + $0x1300] sm:$0xff] %v2051
      %3956 = vst [vmem:[%s194 + $0x1308] sm:$0xff] %v2053
      %3957 = vst [vmem:[%s194 + $0x1310] sm:$0xff] %v2308
      %3958 = vst [vmem:[%s194 + $0x1318] sm:$0xff] %v2310
      %3959 = vst [vmem:[%s194 + $0x1320] sm:$0xff] %v2565
      %3960 = vst [vmem:[%s194 + $0x1328] sm:$0xff] %v2567
      %3961 = vst [vmem:[%s194 + $0x1330] sm:$0xff] %v2822
      %3962 = vst [vmem:[%s194 + $0x1338] sm:$0xff] %v2824
      %3963 = vst [vmem:[%s194 + $0x1340] sm:$0xff] %v3079
      %3964 = vst [vmem:[%s194 + $0x1348] sm:$0xff] %v3081
      %3965 = vst [vmem:[%s194 + $0x1350] sm:$0xff] %v3336
      %3966 = vst.msk [vmem:[%s194 + $0x1358] sm:$0xff] %vm3365, %v3338
      %3967 = vst [vmem:[%s194 + $0x1360] sm:$0xff] %v1029
      %3968 = vst [vmem:[%s194 + $0x1368] sm:$0xff] %v1031
      %3969 = vst [vmem:[%s194 + $0x1370] sm:$0xff] %v1286
      %3970 = vst [vmem:[%s194 + $0x1378] sm:$0xff] %v1288
      %3971 = vst [vmem:[%s194 + $0x1380] sm:$0xff] %v1543
      %3972 = vst [vmem:[%s194 + $0x1388] sm:$0xff] %v1545
      %3973 = vst [vmem:[%s194 + $0x1390] sm:$0xff] %v1800
      %3974 = vst [vmem:[%s194 + $0x1398] sm:$0xff] %v1802
      %3975 = vst [vmem:[%s194 + $0x13a0] sm:$0xff] %v2057
      %3976 = vst [vmem:[%s194 + $0x13a8] sm:$0xff] %v2059
      %3977 = vst [vmem:[%s194 + $0x13b0] sm:$0xff] %v2314
      %3978 = vst [vmem:[%s194 + $0x13b8] sm:$0xff] %v2316
      %3979 = vst [vmem:[%s194 + $0x13c0] sm:$0xff] %v2571
      %3980 = vst [vmem:[%s194 + $0x13c8] sm:$0xff] %v2573
      %3981 = vst [vmem:[%s194 + $0x13d0] sm:$0xff] %v2828
      %3982 = vst [vmem:[%s194 + $0x13d8] sm:$0xff] %v2830
      %3983 = vst [vmem:[%s194 + $0x13e0] sm:$0xff] %v3085
      %3984 = vst [vmem:[%s194 + $0x13e8] sm:$0xff] %v3087
      %3985 = vst [vmem:[%s194 + $0x13f0] sm:$0xff] %v3342
      %3986 = vst.msk [vmem:[%s194 + $0x13f8] sm:$0xff] %vm3365, %v3344
      %p3987 = scmp.lt.s32.totalorder %s15, 1
      %s3988 = scalar_select %p3987, %s15, 1
      %s3989 = smul.addr %s3988, 640
      %s3990 = smul.addr %s3989, 8
      %s3991 = scalar_lea.vmem %s4, %s3990
      // Predicated region
      $region37: #{transformer_encoder.3} parent=35 // pred_check
        %p3992 = pneg %p122
      $region38: #{transformer_encoder.3} parent=35 // pred_check_branch
        %3994 = sbr.rel (%p3992) target = $region40
      $region39: #{transformer_encoder.3} parent=35 // pred_region
        _
      $region40: #{transformer_encoder.3} parent=35 // pred_fallthru
        _
    $region36: #{transformer_encoder.3} parent=5 // pred_fallthru
      _
    %p3995 = scmp.le.s32.totalorder 2, %s10
    // Predicated region
    $region41: #{transformer_encoder.3} parent=5 // pred_check
      %p3996 = pneg %p3995
    $region42: #{transformer_encoder.3} parent=5 // pred_check_branch
      %3998 = sbr.rel (%p3996) target = $region44
    $region43: #{transformer_encoder.3} parent=5 // pred_region
      %s3999 = ssub.s32 %s10, 2
      // Predicated region
      $region45: #{transformer_encoder.3} parent=43 // pred_check
        %p4000 = pneg %p128
      $region46: #{transformer_encoder.3} parent=43 // pred_check_branch
        %4002 = sbr.rel (%p4000) target = $region48
      $region47: #{transformer_encoder.3} parent=43 // pred_region
        %p4003 = scmp.lt.s32.totalorder %s16, 1
        %s4004 = scalar_select %p4003, %s16, 1
        %s4005 = smul.addr %s4004, 640
        %s4006 = smul.addr %s4005, 8
        %s4007 = scalar_lea.vmem %s4, %s4006
      $region48: #{transformer_encoder.3} parent=43 // pred_fallthru
        _
    $region44: #{transformer_encoder.3} parent=5 // pred_fallthru
      _
  $region6: #{transformer_encoder.3} parent=0 // loop_footer
    %s14 = sadd.s32 1, %s10
  $region7: #{transformer_encoder.3} parent=0 // loop_footer_branch
    %9 = sbr.rel target = $region3
  $region8: #{transformer_encoder.3} parent=0 // loop_exit
    _

</llo_original>
